<compile_context>
chip_gen: v7x
topology: tpu7x:2x2x1
jax: 0.10.0
libtpu: 0.0.40
codegen_flags: <defaults>
</compile_context>

<pallas_src>
from functools import partial

import jax
import jax.numpy as jnp
from jax.experimental import pallas as pl
from jax.experimental.pallas import tpu as pltpu

ATTN_SOFTCAP = 50.0      # Gemma2Config default attn_logit_softcapping
RMS_EPS = 1e-6           # Gemma2Config default rms_norm_eps
ROPE_THETA = 10000.0     # Gemma2Config default rope_theta
NEG_INF = -1e30          # finite "minus infinity" (keeps exp / max NaN-free)


# --------------------------- hardware-aware tiling ---------------------------

def _hw_config():
    """Per-generation tile / VMEM-limit defaults (v5e/v6e: 128 MiB VMEM, v7x: 64 MiB)."""
    vmem = None
    try:
        vmem = getattr(pltpu.get_tpu_info(), "vmem_capacity_bytes", None)
    except Exception:
        vmem = None
    if vmem is not None and vmem >= 100 * (1 << 20):
        return dict(vmem_limit=100 << 20, tm=512, tq=512, ti=2048, tv=2048, tv2=8192)
    return dict(vmem_limit=48 << 20, tm=256, tq=256, ti=1024, tv=1024, tv2=4096)


HW = _hw_config()


def _cparams(*sems):
    return pltpu.CompilerParams(dimension_semantics=sems,
                                vmem_limit_bytes=HW["vmem_limit"])


def _round_up(n, m):
    return ((n + m - 1) // m) * m


def _row_tile(n, pref):
    """Sublane-axis tile (multiple of 8, or the full dim) + padded extent."""
    if n <= pref:
        return n, n
    t = max(8, (pref // 8) * 8)
    return t, _round_up(n, t)


def _lane_tile(n, pref):
    """Lane-axis tile (multiple of 128, or the full dim) + padded extent."""
    if n <= pref:
        return n, n
    t = max(128, (pref // 128) * 128)
    return t, _round_up(n, t)


def _pad_rows(x, mp):
    return x if x.shape[0] == mp else jnp.pad(x, ((0, mp - x.shape[0]), (0, 0)))


def _rms(x_f32, w_row):
    var = jnp.mean(x_f32 * x_f32, axis=-1, keepdims=True)
    return (x_f32 * jax.lax.rsqrt(var + RMS_EPS)) * (1.0 + w_row)


# --------------------------------- kernels -----------------------------------

def _qkv_rope_kernel(x_ref, lnw_ref, w_ref, cos_ref, sin_ref, o_ref, *,
                     num_heads, head_dim):
    """input_layernorm(x) @ W[part], with RoPE + head split fused for q/k parts.

    grid = (B, S_tiles, 3); part 0/1/2 = q/k/v.  Output bf16 [3, B, S, D].
    """
    part = pl.program_id(2)
    h = _rms(x_ref[...].astype(jnp.float32), lnw_ref[...])
    y = jnp.dot(h.astype(jnp.bfloat16), w_ref[...],
                preferred_element_type=jnp.float32)
    # identity rotation for the v part (cos=1, sin=0) -> no select needed
    is_rope = (part < 2).astype(jnp.float32)
    cos = cos_ref[...] * is_rope + (1.0 - is_rope)
    sin = sin_ref[...] * is_rope
    half = head_dim // 2
    for hd in range(num_heads):
        lo = hd * head_dim
        yh = y[:, lo:lo + head_dim]
        rot = jnp.concatenate([-yh[:, half:], yh[:, :half]], axis=-1)
        o_ref[:, lo:lo + head_dim] = (yh * cos + rot * sin).astype(o_ref.dtype)


def qkv_rope(x, ln_w, w3, cos, sin, num_heads):
    B, S, D = x.shape
    Dh = D // num_heads
    TS, Sp = _row_tile(S, HW["tq"])
    if Sp != S:
        pad = ((0, 0), (0, Sp - S), (0, 0))
        x, cos, sin = jnp.pad(x, pad), jnp.pad(cos, pad), jnp.pad(sin, pad)
    kern = partial(_qkv_rope_kernel, num_heads=num_heads, head_dim=Dh)
    out = pl.pallas_call(
        kern,
        out_shape=jax.ShapeDtypeStruct((3, B, Sp, D), jnp.bfloat16),
        grid=(B, Sp // TS, 3),
        in_specs=[pl.BlockSpec((None, TS, D), lambda b, si, p: (b, si, 0)),
                  pl.BlockSpec((1, D), lambda b, si, p: (0, 0)),
                  pl.BlockSpec((None, D, D), lambda b, si, p: (p, 0, 0)),
                  pl.BlockSpec((None, TS, Dh), lambda b, si, p: (b, si, 0)),
                  pl.BlockSpec((None, TS, Dh), lambda b, si, p: (b, si, 0))],
        out_specs=pl.BlockSpec((None, None, TS, D),
                               lambda b, si, p: (p, b, si, 0)),
        compiler_params=_cparams("parallel", "parallel", "arbitrary"),
    )(x, ln_w.reshape(1, D), w3, cos, sin)
    return out if Sp == S else out[:, :, :S, :]


def _flash_attn_kernel(q_ref, k_ref, v_ref, o_ref, m_s, l_s, acc_s, *,
                       num_heads, head_dim, scale, softcap, tq, tk):
    """Flash-style causal attention with Gemma2 logit softcapping.

    grid = (B, q_tiles, kv_tiles); q/k/v refs are [tile, H*Dh] bf16 (RoPE
    already applied); online-softmax state lives in VMEM scratch; output is a
    lane-dense [tq, H*Dh] bf16 block written on the last kv tile.
    """
    qi = pl.program_id(1)
    ki = pl.program_id(2)

    @pl.when(ki == 0)
    def _():
        m_s[...] = jnp.full_like(m_s, NEG_INF)
        l_s[...] = jnp.zeros_like(l_s)
        acc_s[...] = jnp.zeros_like(acc_s)

    # Skip kv tiles entirely in the causal future of this q tile.
    @pl.when(ki * tk <= qi * tq + (tq - 1))
    def _():
        q_pos = qi * tq + jax.lax.broadcasted_iota(jnp.int32, (tq, tk), 0)
        k_pos = ki * tk + jax.lax.broadcasted_iota(jnp.int32, (tq, tk), 1)
        causal = k_pos <= q_pos
        for h in range(num_heads):
            sl = slice(h * head_dim, (h + 1) * head_dim)
            s = jax.lax.dot_general(q_ref[:, sl], k_ref[:, sl],
                                    (((1,), (1,)), ((), ())),
                                    preferred_element_type=jnp.float32) * scale
            s = jnp.tanh(s * (1.0 / softcap)) * softcap
            s = jnp.where(causal, s, NEG_INF)
            m_prev = m_s[h]
            m_new = jnp.maximum(m_prev, jnp.max(s, axis=-1, keepdims=True))
            alpha = jnp.exp(m_prev - m_new)
            p = jnp.where(causal, jnp.exp(s - m_new), 0.0)
            l_s[h] = alpha * l_s[h] + jnp.sum(p, axis=-1, keepdims=True)
            acc_s[h] = alpha * acc_s[h] + jax.lax.dot_general(
                p.astype(jnp.bfloat16), v_ref[:, sl], (((1,), (0,)), ((), ())),
                preferred_element_type=jnp.float32)
            m_s[h] = m_new

    @pl.when(ki == pl.num_programs(2) - 1)
    def _():
        for h in range(num_heads):
            sl = slice(h * head_dim, (h + 1) * head_dim)
            inv_l = pl.reciprocal(l_s[h], approx=True)
            o_ref[:, sl] = (acc_s[h] * inv_l).astype(o_ref.dtype)


def attention(qkv, num_heads, scale, softcap):
    # qkv: [3, B, S, D] bf16 (q/k already RoPE'd) -> [B, S, D] bf16.
    _, B, S, D = qkv.shape
    Dh = D // num_heads
    TQ, Sp = _row_tile(S, HW["tq"])
    TK = TQ
    if Sp != S:
        qkv = jnp.pad(qkv, ((0, 0), (0, 0), (0, Sp - S), (0, 0)))
    kern = partial(_flash_attn_kernel, num_heads=num_heads, head_dim=Dh,
                   scale=scale, softcap=softcap, tq=TQ, tk=TK)
    out = pl.pallas_call(
        kern,
        out_shape=jax.ShapeDtypeStruct((B, Sp, D), jnp.bfloat16),
        grid=(B, Sp // TQ, Sp // TK),
        in_specs=[pl.BlockSpec((None, None, TQ, D), lambda b, qi, ki: (0, b, qi, 0)),
                  pl.BlockSpec((None, None, TK, D), lambda b, qi, ki: (1, b, ki, 0)),
                  pl.BlockSpec((None, None, TK, D), lambda b, qi, ki: (2, b, ki, 0))],
        out_specs=pl.BlockSpec((None, TQ, D), lambda b, qi, ki: (b, qi, 0)),
        scratch_shapes=[pltpu.VMEM((num_heads, TQ, 1), jnp.float32),
                        pltpu.VMEM((num_heads, TQ, 1), jnp.float32),
                        pltpu.VMEM((num_heads, TQ, Dh), jnp.float32)],
        compiler_params=_cparams("parallel", "parallel", "arbitrary"),
    )(qkv, qkv, qkv)
    return out if Sp == S else out[:, :S, :]


def _oproj_postln_kernel(attn_ref, w_ref, lnw_ref, res_ref, o_ref):
    """residual + post_attention_layernorm(attn @ Wo)."""
    # TODO(synk): the grid-invariant Wo block could use pipeline_mode=pl.Buffered(1)
    # to skip double-buffering; left default for portability.
    y = jnp.dot(attn_ref[...], w_ref[...], preferred_element_type=jnp.float32)
    o_ref[...] = res_ref[...].astype(jnp.float32) + _rms(y, lnw_ref[...])


def oproj_postln_residual(attn2d, w, ln_w, res2d):
    M, D = attn2d.shape
    TM, Mp = _row_tile(M, HW["tm"])
    attn2d, res2d = _pad_rows(attn2d, Mp), _pad_rows(res2d, Mp)
    out = pl.pallas_call(
        _oproj_postln_kernel,
        out_shape=jax.ShapeDtypeStruct((Mp, D), jnp.float32),
        grid=(Mp // TM,),
        in_specs=[pl.BlockSpec((TM, D), lambda i: (i, 0)),
                  pl.BlockSpec((D, D), lambda i: (0, 0)),
                  pl.BlockSpec((1, D), lambda i: (0, 0)),
                  pl.BlockSpec((TM, D), lambda i: (i, 0))],
        out_specs=pl.BlockSpec((TM, D), lambda i: (i, 0)),
        compiler_params=_cparams("parallel"),
    )(attn2d, w, ln_w.reshape(1, D), res2d)
    return out if Mp == M else out[:M]


def _mlp_kernel(x_ref, ln1_ref, wg_ref, wu_ref, wd_ref, ln2_ref, o_ref, h_s, acc_s):
    """residual + post_ff_ln( down( gelu_tanh(gate(pre_ff_ln(x))) * up(pre_ff_ln(x)) ) ).

    grid = (M_tiles, I_tiles): intermediate dim streamed, f32 accumulator scratch.
    """
    ti = pl.program_id(1)

    @pl.when(ti == 0)
    def _():
        h_s[...] = _rms(x_ref[...].astype(jnp.float32), ln1_ref[...]).astype(jnp.bfloat16)
        acc_s[...] = jnp.zeros_like(acc_s)

    h = h_s[...]
    g = jnp.dot(h, wg_ref[...], preferred_element_type=jnp.float32)
    u = jnp.dot(h, wu_ref[...], preferred_element_type=jnp.float32)
    # gelu_pytorch_tanh (kept in f32: v5e has no bf16 VPU/EUP path)
    act = 0.5 * g * (1.0 + jnp.tanh(0.7978845608028654 * (g + 0.044715 * g * g * g)))
    acc_s[...] += jnp.dot((act * u).astype(jnp.bfloat16), wd_ref[...],
                          preferred_element_type=jnp.float32)

    @pl.when(ti == pl.num_programs(1) - 1)
    def _():
        o_ref[...] = x_ref[...].astype(jnp.float32) + _rms(acc_s[...], ln2_ref[...])


def mlp_residual(x2d, ln1, wg, wu, wd, ln2):
    M, D = x2d.shape
    I = wg.shape[1]
    TM, Mp = _row_tile(M, HW["tm"])
    TI, Ip = _lane_tile(I, HW["ti"])
    x2d = _pad_rows(x2d, Mp)
    if Ip != I:
        wg = jnp.pad(wg, ((0, 0), (0, Ip - I)))
        wu = jnp.pad(wu, ((0, 0), (0, Ip - I)))
        wd = jnp.pad(wd, ((0, Ip - I), (0, 0)))
    out = pl.pallas_call(
        _mlp_kernel,
        out_shape=jax.ShapeDtypeStruct((Mp, D), jnp.float32),
        grid=(Mp // TM, Ip // TI),
        in_specs=[pl.BlockSpec((TM, D), lambda i, t: (i, 0)),
                  pl.BlockSpec((1, D), lambda i, t: (0, 0)),
                  pl.BlockSpec((D, TI), lambda i, t: (0, t)),
                  pl.BlockSpec((D, TI), lambda i, t: (0, t)),
                  pl.BlockSpec((TI, D), lambda i, t: (t, 0)),
                  pl.BlockSpec((1, D), lambda i, t: (0, 0))],
        out_specs=pl.BlockSpec((TM, D), lambda i, t: (i, 0)),
        scratch_shapes=[pltpu.VMEM((TM, D), jnp.bfloat16),
                        pltpu.VMEM((TM, D), jnp.float32)],
        compiler_params=_cparams("parallel", "arbitrary"),
    )(x2d, ln1.reshape(1, D), wg, wu, wd, ln2.reshape(1, D))
    return out if Mp == M else out[:M]


def _gater_kernel(x_ref, w_ref, b_ref, logit_ref, prob_ref):
    """D->1 projection as VPU multiply + row-reduce, exact sigmoid."""
    # TODO(synk): could be fused into the last down-layer MLP epilogue to save a pass.
    x = x_ref[...].astype(jnp.float32)
    lg = jnp.sum(x * w_ref[...], axis=-1, keepdims=True) + b_ref[...]
    logit_ref[...] = lg
    prob_ref[...] = 1.0 / (1.0 + jnp.exp(-lg))


def gater(x2d, w, b):
    M, D = x2d.shape
    TM, Mp = _row_tile(M, HW["tm"])
    x2d = _pad_rows(x2d, Mp)
    lg, pr = pl.pallas_call(
        _gater_kernel,
        out_shape=(jax.ShapeDtypeStruct((Mp, 1), jnp.float32),
                   jax.ShapeDtypeStruct((Mp, 1), jnp.float32)),
        grid=(Mp // TM,),
        in_specs=[pl.BlockSpec((TM, D), lambda i: (i, 0)),
                  pl.BlockSpec((1, D), lambda i: (0, 0)),
                  pl.BlockSpec((1, 1), lambda i: (0, 0))],
        out_specs=(pl.BlockSpec((TM, 1), lambda i: (i, 0)),
                   pl.BlockSpec((TM, 1), lambda i: (i, 0))),
        compiler_params=_cparams("parallel"),
    )(x2d, w.reshape(1, D), b.reshape(1, 1))
    return (lg, pr) if Mp == M else (lg[:M], pr[:M])


def _logits_lse_kernel(x_ref, w_ref, b_ref, logits_ref, lse_ref, m_s, l_s):
    """Vocab-tiled logits with online logsumexp accumulation across V tiles."""
    j = pl.program_id(1)

    @pl.when(j == 0)
    def _():
        m_s[...] = jnp.full_like(m_s, NEG_INF)
        l_s[...] = jnp.zeros_like(l_s)

    lg = jnp.dot(x_ref[...].astype(jnp.bfloat16), w_ref[...],
                 preferred_element_type=jnp.float32) + b_ref[...]
    logits_ref[...] = lg

    m_prev = m_s[...]
    m_new = jnp.maximum(m_prev, jnp.max(lg, axis=-1, keepdims=True))
    l_s[...] = (l_s[...] * jnp.exp(m_prev - m_new)
                + jnp.sum(jnp.exp(lg - m_new), axis=-1, keepdims=True))
    m_s[...] = m_new

    @pl.when(j == pl.num_programs(1) - 1)
    def _():
        lse_ref[...] = m_s[...] + jnp.log(l_s[...])


def _sub_lse_kernel(lg_ref, lse_ref, o_ref):
    o_ref[...] = lg_ref[...] - lse_ref[...]


def output_log_softmax(x2d, w, b):
    M, D = x2d.shape
    V = w.shape[1]
    TM, Mp = _row_tile(M, HW["tm"])
    TV, Vp = _lane_tile(V, HW["tv"])
    x2d = _pad_rows(x2d, Mp)
    if Vp != V:
        w = jnp.pad(w, ((0, 0), (0, Vp - V)))
        b = jnp.pad(b, (0, Vp - V), constant_values=NEG_INF)  # padded vocab -> exp()=0

    logits, lse = pl.pallas_call(
        _logits_lse_kernel,
        out_shape=(jax.ShapeDtypeStruct((Mp, Vp), jnp.float32),
                   jax.ShapeDtypeStruct((Mp, 1), jnp.float32)),
        grid=(Mp // TM, Vp // TV),
        in_specs=[pl.BlockSpec((TM, D), lambda i, j: (i, 0)),
                  pl.BlockSpec((D, TV), lambda i, j: (0, j)),
                  pl.BlockSpec((1, TV), lambda i, j: (0, j))],
        out_specs=(pl.BlockSpec((TM, TV), lambda i, j: (i, j)),
                   pl.BlockSpec((TM, 1), lambda i, j: (i, 0))),
        scratch_shapes=[pltpu.VMEM((TM, 1), jnp.float32),
                        pltpu.VMEM((TM, 1), jnp.float32)],
        compiler_params=_cparams("parallel", "arbitrary"),
    )(x2d, w, b.reshape(1, Vp))

    # Pass 2: subtract the logsumexp in place (aliased, weight-free -> large tiles).
    TV2 = TV
    k = 2
    while TV * k <= HW["tv2"] and Vp % (TV * k) == 0:
        TV2 = TV * k
        k *= 2
    out = pl.pallas_call(
        _sub_lse_kernel,
        out_shape=jax.ShapeDtypeStruct((Mp, Vp), jnp.float32),
        grid=(Mp // TM, Vp // TV2),
        in_specs=[pl.BlockSpec((TM, TV2), lambda i, j: (i, j)),
                  pl.BlockSpec((TM, 1), lambda i, j: (i, 0))],
        out_specs=pl.BlockSpec((TM, TV2), lambda i, j: (i, j)),
        input_output_aliases={0: 0},
        compiler_params=_cparams("parallel", "parallel"),
    )(logits, lse)
    return out if (Mp == M and Vp == V) else out[:M, :V]


# -------------------------------- JAX glue -----------------------------------

def rope_cos_sin(position_ids, head_dim):
    inv_freq = 1.0 / (ROPE_THETA ** (jnp.arange(0, head_dim, 2, dtype=jnp.float32)
                                     / head_dim))
    freqs = position_ids[:, :, None].astype(jnp.float32) * inv_freq[None, None, :]
    emb = jnp.concatenate([freqs, freqs], axis=-1)     # [B, S, Dh]
    return jnp.cos(emb), jnp.sin(emb)


def decoder_layer(x, cos, sin, p, num_heads):
    B, S, D = x.shape
    Dh = D // num_heads
    scale = float(Dh) ** -0.5    # query_pre_attn_scalar = head_dim in this config
    M = B * S

    qkv = qkv_rope(x, p['input_ln'], p['qkv_w'], cos, sin, num_heads)  # [3,B,S,D] bf16
    attn = attention(qkv, num_heads, scale, ATTN_SOFTCAP)              # [B,S,D] bf16
    x = oproj_postln_residual(attn.reshape(M, D), p['o_w'], p['post_attn_ln'],
                              x.reshape(M, D)).reshape(B, S, D)
    y = mlp_residual(x.reshape(M, D), p['pre_ff_ln'], p['gate_w'], p['up_w'],
                     p['down_w'], p['post_ff_ln']).reshape(B, S, D)
    return y


def get_merge_dst(gate_samples):
    # gate_samples: [B, S] float of 0/1; matches the torch reference loop.
    g = gate_samples.astype(jnp.int32)
    inc = g[:, :-1]                       # last position never increments
    merge_dst = jnp.concatenate(
        [jnp.zeros((g.shape[0], 1), jnp.int32), jnp.cumsum(inc, axis=1)], axis=1)
    n_dst = merge_dst[:, -1] + 1
    return merge_dst, n_dst


def scatter_mean(merge_dst, src, num_segments):
    # torch.scatter_reduce(..., reduce='mean', include_self=False) equivalent.
    def per_batch(md, s):
        ones = jnp.ones((s.shape[0],), jnp.float32)
        counts = jax.ops.segment_sum(ones, md, num_segments=num_segments)
        sums = jax.ops.segment_sum(s, md, num_segments=num_segments)
        counts = jnp.maximum(counts, 1.0)
        if s.ndim == 2:
            counts = counts[:, None]
        return sums / counts
    return jax.vmap(per_batch)(merge_dst, src)


# -------------------------------- parameters ---------------------------------

def init_layer_params(key, D, I):
    keys = jax.random.split(key, 7)
    s = 0.02

    def w(k, shape):
        return (jax.random.normal(k, shape, jnp.float32) * s).astype(jnp.bfloat16)

    return {
        'input_ln': jnp.zeros((D,), jnp.float32),
        'qkv_w': jnp.stack([w(keys[0], (D, D)),
                            w(keys[1], (D, D)),
                            w(keys[2], (D, D))]),            # [3, D, D]
        'o_w': w(keys[3], (D, D)),
        'post_attn_ln': jnp.zeros((D,), jnp.float32),
        'pre_ff_ln': jnp.zeros((D,), jnp.float32),
        'gate_w': w(keys[4], (D, I)),
        'up_w': w(keys[5], (D, I)),
        'down_w': w(keys[6], (I, D)),
        'post_ff_ln': jnp.zeros((D,), jnp.float32),
    }


def init_params(key, vocab_size, D):
    keys = jax.random.split(key, 10)
    s = 0.02
    return {
        'embedding': jax.random.normal(keys[0], (vocab_size, D), jnp.float32) * s,
        'down_layers': [init_layer_params(keys[1 + i], D, D) for i in range(2)],
        'mid_layers': [init_layer_params(keys[3 + i], D, 4 * D) for i in range(2)],
        'up_layers': [init_layer_params(keys[5 + i], D, D) for i in range(2)],
        'gate_lin_w': jax.random.normal(keys[7], (D,), jnp.float32) * s,
        'gate_lin_b': jnp.zeros((1,), jnp.float32),
        'out_w': (jax.random.normal(keys[8], (D, vocab_size), jnp.float32) * s
                  ).astype(jnp.bfloat16),
        'out_b': jnp.zeros((vocab_size,), jnp.float32),
    }


# -------------------------------- forward pass --------------------------------

def forward(params, input_ids, sample_key, *, num_heads, position_ids=None):
    B, S = input_ids.shape
    D = params['embedding'].shape[1]
    V = params['out_w'].shape[1]
    Dh = D // num_heads
    M = B * S

    x = params['embedding'][input_ids]                          # [B, S, D] f32
    if position_ids is None:
        position_ids = jnp.broadcast_to(
            jnp.arange(S, dtype=jnp.float32)[None], (B, S))

    cos_b, sin_b = rope_cos_sin(position_ids, Dh)

    # TODO(synk): sliding-window (64) re-masking for the byte (down/up) layers is
    # not applied; it is a no-op for seq_len <= sliding_window.
    for p in params['down_layers']:
        x = decoder_layer(x, cos_b, sin_b, p, num_heads)

    gl, gp = gater(x.reshape(M, D), params['gate_lin_w'], params['gate_lin_b'])
    down_gate_logits = gl.reshape(B, S)
    down_gate_probs = gp.reshape(B, S)

    # torch.bernoulli -> jax.random.bernoulli with a fixed key (deterministic)
    samples = jax.random.bernoulli(sample_key, down_gate_probs).astype(jnp.float32)
    samples = samples.at[:, 0].set(1.0)

    down_merge_dst, n_dst = get_merge_dst(samples)

    # Static upper bound on the downsampled length keeps all shapes static
    # (fully jittable, no host sync).  Segments >= n_dst[b] are zero-padded and
    # causal attention means they never influence the rows gathered back.
    max_n_dst = S

    pos_ds = scatter_mean(down_merge_dst, position_ids, max_n_dst)
    x_ds = scatter_mean(down_merge_dst, x, max_n_dst)

    cos_m, sin_m = rope_cos_sin(pos_ds, Dh)
    y_ds = x_ds
    for p in params['mid_layers']:
        y_ds = decoder_layer(y_ds, cos_m, sin_m, p, num_heads)
    deviation = y_ds - x_ds

    up_gate = jnp.concatenate(
        [samples[:, 1:], jnp.ones((B, 1), samples.dtype)], axis=1)
    up_merge_dst, _ = get_merge_dst(up_gate)
    up_dev = jnp.take_along_axis(deviation, up_merge_dst[:, :, None], axis=1)

    y = x + up_dev
    for p in params['up_layers']:
        y = decoder_layer(y, cos_b, sin_b, p, num_heads)

    logits = output_log_softmax(
        y.reshape(M, D), params['out_w'], params['out_b']).reshape(B, S, V)

    return {
        'logits': logits,
        'down_gate_probs': down_gate_probs,
        'down_gate_logits': down_gate_logits,
        'down_gate_samples': samples.astype(jnp.int32),
        'down_merge_dst': down_merge_dst,
        'up_merge_dst': up_merge_dst,
        'n_dst': n_dst,
        'position_ids': position_ids,
        'key_values': None,
    }


# ----------------------------------- main -------------------------------------

if __name__ == "__main__":
    VOCAB = 64
    D = 32
    HEADS = 4
    B, S = 2, 8

    root = jax.random.PRNGKey(0)
    k_params, k_ids, k_sample = jax.random.split(root, 3)

    params = init_params(k_params, VOCAB, D)
    input_ids = jax.random.randint(k_ids, (B, S), 0, VOCAB, dtype=jnp.int32)

    fwd = jax.jit(partial(forward, num_heads=HEADS))
    out = fwd(params, input_ids, k_sample)
    jax.block_until_ready(out['logits'])

    assert out['logits'].shape == (B, S, VOCAB)
    assert out['down_gate_probs'].shape == (B, S)
    assert out['down_merge_dst'].shape == (B, S)
    assert out['up_merge_dst'].shape == (B, S)
    assert bool(jnp.all(jnp.isfinite(out['logits'])))
    print("KERNEL_OK")
</pallas_src>

<mosaic_0001>
module attributes {stable_mosaic.version = 11 : i64} {
  func.func private @main(%arg0: i32) attributes {dimension_semantics = [#tpu.dimension_semantics<core_parallel>], iteration_bounds = array<i64: 2>, tpu.core_type = #tpu.core_type<sc_scalar_subcore>, window_params = []} {
    return
  }
}

module attributes {stable_mosaic.version = 11 : i64} {
  func.func private @main(%arg0: i32) attributes {dimension_semantics = [#tpu.dimension_semantics<core_parallel>], iteration_bounds = array<i64: 2>, tpu.core_type = #tpu.core_type<sc_scalar_subcore>, window_params = []} {
    return
  }
}

module attributes {stable_mosaic.version = 11 : i64} {
  func.func @_flash_attn_kernel(%arg0: i32, %arg1: i32, %arg2: i32, %arg3: memref<1x1x8x32xbf16, #tpu.memory_space<vmem>>, %arg4: memref<1x1x8x32xbf16, #tpu.memory_space<vmem>>, %arg5: memref<1x1x8x32xbf16, #tpu.memory_space<vmem>>, %arg6: memref<1x8x32xbf16, #tpu.memory_space<vmem>>, %arg7: memref<4x8x1xf32, #tpu.memory_space<vmem>>, %arg8: memref<4x8x1xf32, #tpu.memory_space<vmem>>, %arg9: memref<4x8x8xf32, #tpu.memory_space<vmem>>) attributes {dimension_semantics = [#tpu.dimension_semantics<parallel>, #tpu.dimension_semantics<parallel>, #tpu.dimension_semantics<arbitrary>], iteration_bounds = array<i64: 2, 1, 1>, scalar_prefetch = 0 : i64, scratch_operands = 3 : i64, tpu.core_type = #tpu.core_type<tc>, window_params = [{transform_indices = @transform_0, window_bounds = array<i64: 1, 1, 8, 32>}, {transform_indices = @transform_1, window_bounds = array<i64: 1, 1, 8, 32>}, {transform_indices = @transform_2, window_bounds = array<i64: 1, 1, 8, 32>}, {transform_indices = @transform_3, window_bounds = array<i64: 1, 8, 32>}]} {
    %c0_i32 = arith.constant 0 : i32
    %0 = arith.cmpi eq, %arg2, %c0_i32 : i32
    %1 = arith.extui %0 : i1 to i32
    %c0_i32_0 = arith.constant 0 : i32
    %2 = arith.cmpi ne, %1, %c0_i32_0 : i32
    scf.if %2 {
      %cst = arith.constant -1.000000e+30 : f32
      %12 = vector.broadcast %cst : f32 to vector<4x8x1xf32>
      %c0 = arith.constant 0 : index
      %c0_5 = arith.constant 0 : index
      %c0_6 = arith.constant 0 : index
      %13 = vector.load %arg7[%c0, %c0_5, %c0_6] : memref<4x8x1xf32, #tpu.memory_space<vmem>>, vector<4x8x1xf32>
      tpu.vector_store %arg7[%c0, %c0_5, %c0_6], %12 {strides = array<i32>} : memref<4x8x1xf32, #tpu.memory_space<vmem>>, vector<4x8x1xf32>,
      %cst_7 = arith.constant 0.000000e+00 : f32
      %14 = vector.broadcast %cst_7 : f32 to vector<4x8x1xf32>
      %c0_8 = arith.constant 0 : index
      %c0_9 = arith.constant 0 : index
      %c0_10 = arith.constant 0 : index
      %15 = vector.load %arg8[%c0_8, %c0_9, %c0_10] : memref<4x8x1xf32, #tpu.memory_space<vmem>>, vector<4x8x1xf32>
      tpu.vector_store %arg8[%c0_8, %c0_9, %c0_10], %14 {strides = array<i32>} : memref<4x8x1xf32, #tpu.memory_space<vmem>>, vector<4x8x1xf32>,
      %cst_11 = arith.constant 0.000000e+00 : f32
      %16 = vector.broadcast %cst_11 : f32 to vector<4x8x8xf32>
      %c0_12 = arith.constant 0 : index
      %c0_13 = arith.constant 0 : index
      %c0_14 = arith.constant 0 : index
      %17 = vector.load %arg9[%c0_12, %c0_13, %c0_14] : memref<4x8x8xf32, #tpu.memory_space<vmem>>, vector<4x8x8xf32>
      tpu.vector_store %arg9[%c0_12, %c0_13, %c0_14], %16 {strides = array<i32>} : memref<4x8x8xf32, #tpu.memory_space<vmem>>, vector<4x8x8xf32>,
    } else {
    }
    %c8_i32 = arith.constant 8 : i32
    %3 = arith.muli %arg2, %c8_i32 : i32
    %c8_i32_1 = arith.constant 8 : i32
    %4 = arith.muli %arg1, %c8_i32_1 : i32
    %c7_i32 = arith.constant 7 : i32
    %5 = arith.addi %4, %c7_i32 : i32
    %6 = arith.cmpi sle, %3, %5 : i32
    %7 = arith.extui %6 : i1 to i32
    %c0_i32_2 = arith.constant 0 : i32
    %8 = arith.cmpi ne, %7, %c0_i32_2 : i32
    scf.if %8 {
      %c8_i32_5 = arith.constant 8 : i32
      %12 = arith.muli %arg1, %c8_i32_5 : i32
      %13 = tpu.iota {dimensions = array<i32: 0>} : vector<8x8xi32>
      %14 = vector.broadcast %12 : i32 to vector<8x8xi32>
      %15 = arith.addi %14, %13 : vector<8x8xi32>
      %c8_i32_6 = arith.constant 8 : i32
      %16 = arith.muli %arg2, %c8_i32_6 : i32
      %17 = tpu.iota {dimensions = array<i32: 1>} : vector<8x8xi32>
      %18 = vector.broadcast %16 : i32 to vector<8x8xi32>
      %19 = arith.addi %18, %17 : vector<8x8xi32>
      %20 = arith.cmpi sle, %19, %15 : vector<8x8xi32>
      %c0 = arith.constant 0 : index
      %c0_7 = arith.constant 0 : index
      %c0_8 = arith.constant 0 : index
      %c0_9 = arith.constant 0 : index
      %21 = vector.load %arg3[%c0, %c0_7, %c0_8, %c0_9] : memref<1x1x8x32xbf16, #tpu.memory_space<vmem>>, vector<1x1x8x8xbf16>
      %22 = vector.shape_cast %21 : vector<1x1x8x8xbf16> to vector<8x8xbf16>
      %c0_10 = arith.constant 0 : index
      %c0_11 = arith.constant 0 : index
      %c0_12 = arith.constant 0 : index
      %c0_13 = arith.constant 0 : index
      %23 = vector.load %arg4[%c0_10, %c0_11, %c0_12, %c0_13] : memref<1x1x8x32xbf16, #tpu.memory_space<vmem>>, vector<1x1x8x8xbf16>
      %24 = vector.shape_cast %23 : vector<1x1x8x8xbf16> to vector<8x8xbf16>
      %cst = arith.constant dense<0.000000e+00> : vector<8x8xf32>
      %25 = tpu.matmul %22, %24, %cst {dimension_numbers = #tpu.dot_dimension_numbers<[1], [1], [0], [0], [0, 0, 1, 0], [], []>} : vector<8x8xbf16>, vector<8x8xbf16>, vector<8x8xf32> -> vector<8x8xf32>
      %cst_14 = arith.constant 0.353553385 : f32
      %26 = vector.broadcast %cst_14 : f32 to vector<8x8xf32>
      %27 = arith.mulf %25, %26 : vector<8x8xf32>
      %cst_15 = arith.constant 2.000000e-02 : f32
      %28 = vector.broadcast %cst_15 : f32 to vector<8x8xf32>
      %29 = arith.mulf %27, %28 : vector<8x8xf32>
      %30 = math.tanh %29 : vector<8x8xf32>
      %cst_16 = arith.constant 5.000000e+01 : f32
      %31 = vector.broadcast %cst_16 : f32 to vector<8x8xf32>
      %32 = arith.mulf %30, %31 : vector<8x8xf32>
      %cst_17 = arith.constant -1.000000e+30 : f32
      %33 = vector.broadcast %cst_17 : f32 to vector<8x8xf32>
      %34 = arith.select %20, %32, %33 : vector<8x8xi1>, vector<8x8xf32>
      %c0_18 = arith.constant 0 : index
      %c0_19 = arith.constant 0 : index
      %c0_20 = arith.constant 0 : index
      %35 = vector.load %arg7[%c0_18, %c0_19, %c0_20] : memref<4x8x1xf32, #tpu.memory_space<vmem>>, vector<1x8x1xf32>
      %36 = vector.shape_cast %35 : vector<1x8x1xf32> to vector<8x1xf32>
      %cst_21 = arith.constant dense<0xFF800000> : vector<8xf32>
      %37 = vector.multi_reduction <maximumf>, %34, %cst_21 [1] : vector<8x8xf32> to vector<8xf32>
      %38 = vector.shape_cast %37 : vector<8xf32> to vector<8x1xf32>
      %39 = arith.maximumf %36, %38 : vector<8x1xf32>
      %40 = arith.subf %36, %39 : vector<8x1xf32>
      %41 = math.exp %40 : vector<8x1xf32>
      %42 = vector.broadcast %39 : vector<8x1xf32> to vector<8x8xf32>
      %43 = arith.subf %34, %42 : vector<8x8xf32>
      %44 = math.exp %43 : vector<8x8xf32>
      %cst_22 = arith.constant 0.000000e+00 : f32
      %45 = vector.broadcast %cst_22 : f32 to vector<8x8xf32>
      %46 = arith.select %20, %44, %45 : vector<8x8xi1>, vector<8x8xf32>
      %c0_23 = arith.constant 0 : index
      %c0_24 = arith.constant 0 : index
      %c0_25 = arith.constant 0 : index
      %47 = vector.load %arg8[%c0_23, %c0_24, %c0_25] : memref<4x8x1xf32, #tpu.memory_space<vmem>>, vector<1x8x1xf32>
      %48 = vector.shape_cast %47 : vector<1x8x1xf32> to vector<8x1xf32>
      %49 = arith.mulf %41, %48 : vector<8x1xf32>
      %cst_26 = arith.constant dense<0.000000e+00> : vector<8xf32>
      %50 = vector.multi_reduction <add>, %46, %cst_26 [1] : vector<8x8xf32> to vector<8xf32>
      %51 = vector.shape_cast %50 : vector<8xf32> to vector<8x1xf32>
      %52 = arith.addf %49, %51 : vector<8x1xf32>
      %c0_27 = arith.constant 0 : index
      %c0_28 = arith.constant 0 : index
      %c0_29 = arith.constant 0 : index
      %53 = vector.load %arg8[%c0_27, %c0_28, %c0_29] : memref<4x8x1xf32, #tpu.memory_space<vmem>>, vector<1x8x1xf32>
      %54 = vector.shape_cast %53 : vector<1x8x1xf32> to vector<8x1xf32>
      %55 = vector.shape_cast %52 : vector<8x1xf32> to vector<1x8x1xf32>
      tpu.vector_store %arg8[%c0_27, %c0_28, %c0_29], %55 {strides = array<i32>} : memref<4x8x1xf32, #tpu.memory_space<vmem>>, vector<1x8x1xf32>,
      %c0_30 = arith.constant 0 : index
      %c0_31 = arith.constant 0 : index
      %c0_32 = arith.constant 0 : index
      %56 = vector.load %arg9[%c0_30, %c0_31, %c0_32] : memref<4x8x8xf32, #tpu.memory_space<vmem>>, vector<1x8x8xf32>
      %57 = vector.shape_cast %56 : vector<1x8x8xf32> to vector<8x8xf32>
      %58 = vector.broadcast %41 : vector<8x1xf32> to vector<8x8xf32>
      %59 = arith.mulf %58, %57 : vector<8x8xf32>
      %60 = arith.truncf %46 : vector<8x8xf32> to vector<8x8xbf16>
      %c0_33 = arith.constant 0 : index
      %c0_34 = arith.constant 0 : index
      %c0_35 = arith.constant 0 : index
      %c0_36 = arith.constant 0 : index
      %61 = vector.load %arg5[%c0_33, %c0_34, %c0_35, %c0_36] : memref<1x1x8x32xbf16, #tpu.memory_space<vmem>>, vector<1x1x8x8xbf16>
      %62 = vector.shape_cast %61 : vector<1x1x8x8xbf16> to vector<8x8xbf16>
      %cst_37 = arith.constant dense<0.000000e+00> : vector<8x8xf32>
      %63 = tpu.matmul %60, %62, %cst_37 {dimension_numbers = #tpu.dot_dimension_numbers<[1], [0], [0], [1], [0, 0, 1, 1], [], []>} : vector<8x8xbf16>, vector<8x8xbf16>, vector<8x8xf32> -> vector<8x8xf32>
      %64 = arith.addf %59, %63 : vector<8x8xf32>
      %c0_38 = arith.constant 0 : index
      %c0_39 = arith.constant 0 : index
      %c0_40 = arith.constant 0 : index
      %65 = vector.load %arg9[%c0_38, %c0_39, %c0_40] : memref<4x8x8xf32, #tpu.memory_space<vmem>>, vector<1x8x8xf32>
      %66 = vector.shape_cast %65 : vector<1x8x8xf32> to vector<8x8xf32>
      %67 = vector.shape_cast %64 : vector<8x8xf32> to vector<1x8x8xf32>
      tpu.vector_store %arg9[%c0_38, %c0_39, %c0_40], %67 {strides = array<i32>} : memref<4x8x8xf32, #tpu.memory_space<vmem>>, vector<1x8x8xf32>,
      %c0_41 = arith.constant 0 : index
      %c0_42 = arith.constant 0 : index
      %c0_43 = arith.constant 0 : index
      %68 = vector.load %arg7[%c0_41, %c0_42, %c0_43] : memref<4x8x1xf32, #tpu.memory_space<vmem>>, vector<1x8x1xf32>
      %69 = vector.shape_cast %68 : vector<1x8x1xf32> to vector<8x1xf32>
      %70 = vector.shape_cast %39 : vector<8x1xf32> to vector<1x8x1xf32>
      tpu.vector_store %arg7[%c0_41, %c0_42, %c0_43], %70 {strides = array<i32>} : memref<4x8x1xf32, #tpu.memory_space<vmem>>, vector<1x8x1xf32>,
      %c0_44 = arith.constant 0 : index
      %c0_45 = arith.constant 0 : index
      %c0_46 = arith.constant 0 : index
      %c8 = arith.constant 8 : index
      %71 = vector.load %arg3[%c0_44, %c0_45, %c0_46, %c8] : memref<1x1x8x32xbf16, #tpu.memory_space<vmem>>, vector<1x1x8x8xbf16>
      %72 = vector.shape_cast %71 : vector<1x1x8x8xbf16> to vector<8x8xbf16>
      %c0_47 = arith.constant 0 : index
      %c0_48 = arith.constant 0 : index
      %c0_49 = arith.constant 0 : index
      %c8_50 = arith.constant 8 : index
      %73 = vector.load %arg4[%c0_47, %c0_48, %c0_49, %c8_50] : memref<1x1x8x32xbf16, #tpu.memory_space<vmem>>, vector<1x1x8x8xbf16>
      %74 = vector.shape_cast %73 : vector<1x1x8x8xbf16> to vector<8x8xbf16>
      %cst_51 = arith.constant dense<0.000000e+00> : vector<8x8xf32>
      %75 = tpu.matmul %72, %74, %cst_51 {dimension_numbers = #tpu.dot_dimension_numbers<[1], [1], [0], [0], [0, 0, 1, 0], [], []>} : vector<8x8xbf16>, vector<8x8xbf16>, vector<8x8xf32> -> vector<8x8xf32>
      %cst_52 = arith.constant 0.353553385 : f32
      %76 = vector.broadcast %cst_52 : f32 to vector<8x8xf32>
      %77 = arith.mulf %75, %76 : vector<8x8xf32>
      %cst_53 = arith.constant 2.000000e-02 : f32
      %78 = vector.broadcast %cst_53 : f32 to vector<8x8xf32>
      %79 = arith.mulf %77, %78 : vector<8x8xf32>
      %80 = math.tanh %79 : vector<8x8xf32>
      %cst_54 = arith.constant 5.000000e+01 : f32
      %81 = vector.broadcast %cst_54 : f32 to vector<8x8xf32>
      %82 = arith.mulf %80, %81 : vector<8x8xf32>
      %cst_55 = arith.constant -1.000000e+30 : f32
      %83 = vector.broadcast %cst_55 : f32 to vector<8x8xf32>
      %84 = arith.select %20, %82, %83 : vector<8x8xi1>, vector<8x8xf32>
      %c1 = arith.constant 1 : index
      %c0_56 = arith.constant 0 : index
      %c0_57 = arith.constant 0 : index
      %85 = vector.load %arg7[%c1, %c0_56, %c0_57] : memref<4x8x1xf32, #tpu.memory_space<vmem>>, vector<1x8x1xf32>
      %86 = vector.shape_cast %85 : vector<1x8x1xf32> to vector<8x1xf32>
      %cst_58 = arith.constant dense<0xFF800000> : vector<8xf32>
      %87 = vector.multi_reduction <maximumf>, %84, %cst_58 [1] : vector<8x8xf32> to vector<8xf32>
      %88 = vector.shape_cast %87 : vector<8xf32> to vector<8x1xf32>
      %89 = arith.maximumf %86, %88 : vector<8x1xf32>
      %90 = arith.subf %86, %89 : vector<8x1xf32>
      %91 = math.exp %90 : vector<8x1xf32>
      %92 = vector.broadcast %89 : vector<8x1xf32> to vector<8x8xf32>
      %93 = arith.subf %84, %92 : vector<8x8xf32>
      %94 = math.exp %93 : vector<8x8xf32>
      %cst_59 = arith.constant 0.000000e+00 : f32
      %95 = vector.broadcast %cst_59 : f32 to vector<8x8xf32>
      %96 = arith.select %20, %94, %95 : vector<8x8xi1>, vector<8x8xf32>
      %c1_60 = arith.constant 1 : index
      %c0_61 = arith.constant 0 : index
      %c0_62 = arith.constant 0 : index
      %97 = vector.load %arg8[%c1_60, %c0_61, %c0_62] : memref<4x8x1xf32, #tpu.memory_space<vmem>>, vector<1x8x1xf32>
      %98 = vector.shape_cast %97 : vector<1x8x1xf32> to vector<8x1xf32>
      %99 = arith.mulf %91, %98 : vector<8x1xf32>
      %cst_63 = arith.constant dense<0.000000e+00> : vector<8xf32>
      %100 = vector.multi_reduction <add>, %96, %cst_63 [1] : vector<8x8xf32> to vector<8xf32>
      %101 = vector.shape_cast %100 : vector<8xf32> to vector<8x1xf32>
      %102 = arith.addf %99, %101 : vector<8x1xf32>
      %c1_64 = arith.constant 1 : index
      %c0_65 = arith.constant 0 : index
      %c0_66 = arith.constant 0 : index
      %103 = vector.load %arg8[%c1_64, %c0_65, %c0_66] : memref<4x8x1xf32, #tpu.memory_space<vmem>>, vector<1x8x1xf32>
      %104 = vector.shape_cast %103 : vector<1x8x1xf32> to vector<8x1xf32>
      %105 = vector.shape_cast %102 : vector<8x1xf32> to vector<1x8x1xf32>
      tpu.vector_store %arg8[%c1_64, %c0_65, %c0_66], %105 {strides = array<i32>} : memref<4x8x1xf32, #tpu.memory_space<vmem>>, vector<1x8x1xf32>,
      %c1_67 = arith.constant 1 : index
      %c0_68 = arith.constant 0 : index
      %c0_69 = arith.constant 0 : index
      %106 = vector.load %arg9[%c1_67, %c0_68, %c0_69] : memref<4x8x8xf32, #tpu.memory_space<vmem>>, vector<1x8x8xf32>
      %107 = vector.shape_cast %106 : vector<1x8x8xf32> to vector<8x8xf32>
      %108 = vector.broadcast %91 : vector<8x1xf32> to vector<8x8xf32>
      %109 = arith.mulf %108, %107 : vector<8x8xf32>
      %110 = arith.truncf %96 : vector<8x8xf32> to vector<8x8xbf16>
      %c0_70 = arith.constant 0 : index
      %c0_71 = arith.constant 0 : index
      %c0_72 = arith.constant 0 : index
      %c8_73 = arith.constant 8 : index
      %111 = vector.load %arg5[%c0_70, %c0_71, %c0_72, %c8_73] : memref<1x1x8x32xbf16, #tpu.memory_space<vmem>>, vector<1x1x8x8xbf16>
      %112 = vector.shape_cast %111 : vector<1x1x8x8xbf16> to vector<8x8xbf16>
      %cst_74 = arith.constant dense<0.000000e+00> : vector<8x8xf32>
      %113 = tpu.matmul %110, %112, %cst_74 {dimension_numbers = #tpu.dot_dimension_numbers<[1], [0], [0], [1], [0, 0, 1, 1], [], []>} : vector<8x8xbf16>, vector<8x8xbf16>, vector<8x8xf32> -> vector<8x8xf32>
      %114 = arith.addf %109, %113 : vector<8x8xf32>
      %c1_75 = arith.constant 1 : index
      %c0_76 = arith.constant 0 : index
      %c0_77 = arith.constant 0 : index
      %115 = vector.load %arg9[%c1_75, %c0_76, %c0_77] : memref<4x8x8xf32, #tpu.memory_space<vmem>>, vector<1x8x8xf32>
      %116 = vector.shape_cast %115 : vector<1x8x8xf32> to vector<8x8xf32>
      %117 = vector.shape_cast %114 : vector<8x8xf32> to vector<1x8x8xf32>
      tpu.vector_store %arg9[%c1_75, %c0_76, %c0_77], %117 {strides = array<i32>} : memref<4x8x8xf32, #tpu.memory_space<vmem>>, vector<1x8x8xf32>,
      %c1_78 = arith.constant 1 : index
      %c0_79 = arith.constant 0 : index
      %c0_80 = arith.constant 0 : index
      %118 = vector.load %arg7[%c1_78, %c0_79, %c0_80] : memref<4x8x1xf32, #tpu.memory_space<vmem>>, vector<1x8x1xf32>
      %119 = vector.shape_cast %118 : vector<1x8x1xf32> to vector<8x1xf32>
      %120 = vector.shape_cast %89 : vector<8x1xf32> to vector<1x8x1xf32>
      tpu.vector_store %arg7[%c1_78, %c0_79, %c0_80], %120 {strides = array<i32>} : memref<4x8x1xf32, #tpu.memory_space<vmem>>, vector<1x8x1xf32>,
      %c0_81 = arith.constant 0 : index
      %c0_82 = arith.constant 0 : index
      %c0_83 = arith.constant 0 : index
      %c16 = arith.constant 16 : index
      %121 = vector.load %arg3[%c0_81, %c0_82, %c0_83, %c16] : memref<1x1x8x32xbf16, #tpu.memory_space<vmem>>, vector<1x1x8x8xbf16>
      %122 = vector.shape_cast %121 : vector<1x1x8x8xbf16> to vector<8x8xbf16>
      %c0_84 = arith.constant 0 : index
      %c0_85 = arith.constant 0 : index
      %c0_86 = arith.constant 0 : index
      %c16_87 = arith.constant 16 : index
      %123 = vector.load %arg4[%c0_84, %c0_85, %c0_86, %c16_87] : memref<1x1x8x32xbf16, #tpu.memory_space<vmem>>, vector<1x1x8x8xbf16>
      %124 = vector.shape_cast %123 : vector<1x1x8x8xbf16> to vector<8x8xbf16>
      %cst_88 = arith.constant dense<0.000000e+00> : vector<8x8xf32>
      %125 = tpu.matmul %122, %124, %cst_88 {dimension_numbers = #tpu.dot_dimension_numbers<[1], [1], [0], [0], [0, 0, 1, 0], [], []>} : vector<8x8xbf16>, vector<8x8xbf16>, vector<8x8xf32> -> vector<8x8xf32>
      %cst_89 = arith.constant 0.353553385 : f32
      %126 = vector.broadcast %cst_89 : f32 to vector<8x8xf32>
      %127 = arith.mulf %125, %126 : vector<8x8xf32>
      %cst_90 = arith.constant 2.000000e-02 : f32
      %128 = vector.broadcast %cst_90 : f32 to vector<8x8xf32>
      %129 = arith.mulf %127, %128 : vector<8x8xf32>
      %130 = math.tanh %129 : vector<8x8xf32>
      %cst_91 = arith.constant 5.000000e+01 : f32
      %131 = vector.broadcast %cst_91 : f32 to vector<8x8xf32>
      %132 = arith.mulf %130, %131 : vector<8x8xf32>
      %cst_92 = arith.constant -1.000000e+30 : f32
      %133 = vector.broadcast %cst_92 : f32 to vector<8x8xf32>
      %134 = arith.select %20, %132, %133 : vector<8x8xi1>, vector<8x8xf32>
      %c2 = arith.constant 2 : index
      %c0_93 = arith.constant 0 : index
      %c0_94 = arith.constant 0 : index
      %135 = vector.load %arg7[%c2, %c0_93, %c0_94] : memref<4x8x1xf32, #tpu.memory_space<vmem>>, vector<1x8x1xf32>
      %136 = vector.shape_cast %135 : vector<1x8x1xf32> to vector<8x1xf32>
      %cst_95 = arith.constant dense<0xFF800000> : vector<8xf32>
      %137 = vector.multi_reduction <maximumf>, %134, %cst_95 [1] : vector<8x8xf32> to vector<8xf32>
      %138 = vector.shape_cast %137 : vector<8xf32> to vector<8x1xf32>
      %139 = arith.maximumf %136, %138 : vector<8x1xf32>
      %140 = arith.subf %136, %139 : vector<8x1xf32>
      %141 = math.exp %140 : vector<8x1xf32>
      %142 = vector.broadcast %139 : vector<8x1xf32> to vector<8x8xf32>
      %143 = arith.subf %134, %142 : vector<8x8xf32>
      %144 = math.exp %143 : vector<8x8xf32>
      %cst_96 = arith.constant 0.000000e+00 : f32
      %145 = vector.broadcast %cst_96 : f32 to vector<8x8xf32>
      %146 = arith.select %20, %144, %145 : vector<8x8xi1>, vector<8x8xf32>
      %c2_97 = arith.constant 2 : index
      %c0_98 = arith.constant 0 : index
      %c0_99 = arith.constant 0 : index
      %147 = vector.load %arg8[%c2_97, %c0_98, %c0_99] : memref<4x8x1xf32, #tpu.memory_space<vmem>>, vector<1x8x1xf32>
      %148 = vector.shape_cast %147 : vector<1x8x1xf32> to vector<8x1xf32>
      %149 = arith.mulf %141, %148 : vector<8x1xf32>
      %cst_100 = arith.constant dense<0.000000e+00> : vector<8xf32>
      %150 = vector.multi_reduction <add>, %146, %cst_100 [1] : vector<8x8xf32> to vector<8xf32>
      %151 = vector.shape_cast %150 : vector<8xf32> to vector<8x1xf32>
      %152 = arith.addf %149, %151 : vector<8x1xf32>
      %c2_101 = arith.constant 2 : index
      %c0_102 = arith.constant 0 : index
      %c0_103 = arith.constant 0 : index
      %153 = vector.load %arg8[%c2_101, %c0_102, %c0_103] : memref<4x8x1xf32, #tpu.memory_space<vmem>>, vector<1x8x1xf32>
      %154 = vector.shape_cast %153 : vector<1x8x1xf32> to vector<8x1xf32>
      %155 = vector.shape_cast %152 : vector<8x1xf32> to vector<1x8x1xf32>
      tpu.vector_store %arg8[%c2_101, %c0_102, %c0_103], %155 {strides = array<i32>} : memref<4x8x1xf32, #tpu.memory_space<vmem>>, vector<1x8x1xf32>,
      %c2_104 = arith.constant 2 : index
      %c0_105 = arith.constant 0 : index
      %c0_106 = arith.constant 0 : index
      %156 = vector.load %arg9[%c2_104, %c0_105, %c0_106] : memref<4x8x8xf32, #tpu.memory_space<vmem>>, vector<1x8x8xf32>
      %157 = vector.shape_cast %156 : vector<1x8x8xf32> to vector<8x8xf32>
      %158 = vector.broadcast %141 : vector<8x1xf32> to vector<8x8xf32>
      %159 = arith.mulf %158, %157 : vector<8x8xf32>
      %160 = arith.truncf %146 : vector<8x8xf32> to vector<8x8xbf16>
      %c0_107 = arith.constant 0 : index
      %c0_108 = arith.constant 0 : index
      %c0_109 = arith.constant 0 : index
      %c16_110 = arith.constant 16 : index
      %161 = vector.load %arg5[%c0_107, %c0_108, %c0_109, %c16_110] : memref<1x1x8x32xbf16, #tpu.memory_space<vmem>>, vector<1x1x8x8xbf16>
      %162 = vector.shape_cast %161 : vector<1x1x8x8xbf16> to vector<8x8xbf16>
      %cst_111 = arith.constant dense<0.000000e+00> : vector<8x8xf32>
      %163 = tpu.matmul %160, %162, %cst_111 {dimension_numbers = #tpu.dot_dimension_numbers<[1], [0], [0], [1], [0, 0, 1, 1], [], []>} : vector<8x8xbf16>, vector<8x8xbf16>, vector<8x8xf32> -> vector<8x8xf32>
      %164 = arith.addf %159, %163 : vector<8x8xf32>
      %c2_112 = arith.constant 2 : index
      %c0_113 = arith.constant 0 : index
      %c0_114 = arith.constant 0 : index
      %165 = vector.load %arg9[%c2_112, %c0_113, %c0_114] : memref<4x8x8xf32, #tpu.memory_space<vmem>>, vector<1x8x8xf32>
      %166 = vector.shape_cast %165 : vector<1x8x8xf32> to vector<8x8xf32>
      %167 = vector.shape_cast %164 : vector<8x8xf32> to vector<1x8x8xf32>
      tpu.vector_store %arg9[%c2_112, %c0_113, %c0_114], %167 {strides = array<i32>} : memref<4x8x8xf32, #tpu.memory_space<vmem>>, vector<1x8x8xf32>,
      %c2_115 = arith.constant 2 : index
      %c0_116 = arith.constant 0 : index
      %c0_117 = arith.constant 0 : index
      %168 = vector.load %arg7[%c2_115, %c0_116, %c0_117] : memref<4x8x1xf32, #tpu.memory_space<vmem>>, vector<1x8x1xf32>
      %169 = vector.shape_cast %168 : vector<1x8x1xf32> to vector<8x1xf32>
      %170 = vector.shape_cast %139 : vector<8x1xf32> to vector<1x8x1xf32>
      tpu.vector_store %arg7[%c2_115, %c0_116, %c0_117], %170 {strides = array<i32>} : memref<4x8x1xf32, #tpu.memory_space<vmem>>, vector<1x8x1xf32>,
      %c0_118 = arith.constant 0 : index
      %c0_119 = arith.constant 0 : index
      %c0_120 = arith.constant 0 : index
      %c24 = arith.constant 24 : index
      %171 = vector.load %arg3[%c0_118, %c0_119, %c0_120, %c24] : memref<1x1x8x32xbf16, #tpu.memory_space<vmem>>, vector<1x1x8x8xbf16>
      %172 = vector.shape_cast %171 : vector<1x1x8x8xbf16> to vector<8x8xbf16>
      %c0_121 = arith.constant 0 : index
      %c0_122 = arith.constant 0 : index
      %c0_123 = arith.constant 0 : index
      %c24_124 = arith.constant 24 : index
      %173 = vector.load %arg4[%c0_121, %c0_122, %c0_123, %c24_124] : memref<1x1x8x32xbf16, #tpu.memory_space<vmem>>, vector<1x1x8x8xbf16>
      %174 = vector.shape_cast %173 : vector<1x1x8x8xbf16> to vector<8x8xbf16>
      %cst_125 = arith.constant dense<0.000000e+00> : vector<8x8xf32>
      %175 = tpu.matmul %172, %174, %cst_125 {dimension_numbers = #tpu.dot_dimension_numbers<[1], [1], [0], [0], [0, 0, 1, 0], [], []>} : vector<8x8xbf16>, vector<8x8xbf16>, vector<8x8xf32> -> vector<8x8xf32>
      %cst_126 = arith.constant 0.353553385 : f32
      %176 = vector.broadcast %cst_126 : f32 to vector<8x8xf32>
      %177 = arith.mulf %175, %176 : vector<8x8xf32>
      %cst_127 = arith.constant 2.000000e-02 : f32
      %178 = vector.broadcast %cst_127 : f32 to vector<8x8xf32>
      %179 = arith.mulf %177, %178 : vector<8x8xf32>
      %180 = math.tanh %179 : vector<8x8xf32>
      %cst_128 = arith.constant 5.000000e+01 : f32
      %181 = vector.broadcast %cst_128 : f32 to vector<8x8xf32>
      %182 = arith.mulf %180, %181 : vector<8x8xf32>
      %cst_129 = arith.constant -1.000000e+30 : f32
      %183 = vector.broadcast %cst_129 : f32 to vector<8x8xf32>
      %184 = arith.select %20, %182, %183 : vector<8x8xi1>, vector<8x8xf32>
      %c3 = arith.constant 3 : index
      %c0_130 = arith.constant 0 : index
      %c0_131 = arith.constant 0 : index
      %185 = vector.load %arg7[%c3, %c0_130, %c0_131] : memref<4x8x1xf32, #tpu.memory_space<vmem>>, vector<1x8x1xf32>
      %186 = vector.shape_cast %185 : vector<1x8x1xf32> to vector<8x1xf32>
      %cst_132 = arith.constant dense<0xFF800000> : vector<8xf32>
      %187 = vector.multi_reduction <maximumf>, %184, %cst_132 [1] : vector<8x8xf32> to vector<8xf32>
      %188 = vector.shape_cast %187 : vector<8xf32> to vector<8x1xf32>
      %189 = arith.maximumf %186, %188 : vector<8x1xf32>
      %190 = arith.subf %186, %189 : vector<8x1xf32>
      %191 = math.exp %190 : vector<8x1xf32>
      %192 = vector.broadcast %189 : vector<8x1xf32> to vector<8x8xf32>
      %193 = arith.subf %184, %192 : vector<8x8xf32>
      %194 = math.exp %193 : vector<8x8xf32>
      %cst_133 = arith.constant 0.000000e+00 : f32
      %195 = vector.broadcast %cst_133 : f32 to vector<8x8xf32>
      %196 = arith.select %20, %194, %195 : vector<8x8xi1>, vector<8x8xf32>
      %c3_134 = arith.constant 3 : index
      %c0_135 = arith.constant 0 : index
      %c0_136 = arith.constant 0 : index
      %197 = vector.load %arg8[%c3_134, %c0_135, %c0_136] : memref<4x8x1xf32, #tpu.memory_space<vmem>>, vector<1x8x1xf32>
      %198 = vector.shape_cast %197 : vector<1x8x1xf32> to vector<8x1xf32>
      %199 = arith.mulf %191, %198 : vector<8x1xf32>
      %cst_137 = arith.constant dense<0.000000e+00> : vector<8xf32>
      %200 = vector.multi_reduction <add>, %196, %cst_137 [1] : vector<8x8xf32> to vector<8xf32>
      %201 = vector.shape_cast %200 : vector<8xf32> to vector<8x1xf32>
      %202 = arith.addf %199, %201 : vector<8x1xf32>
      %c3_138 = arith.constant 3 : index
      %c0_139 = arith.constant 0 : index
      %c0_140 = arith.constant 0 : index
      %203 = vector.load %arg8[%c3_138, %c0_139, %c0_140] : memref<4x8x1xf32, #tpu.memory_space<vmem>>, vector<1x8x1xf32>
      %204 = vector.shape_cast %203 : vector<1x8x1xf32> to vector<8x1xf32>
      %205 = vector.shape_cast %202 : vector<8x1xf32> to vector<1x8x1xf32>
      tpu.vector_store %arg8[%c3_138, %c0_139, %c0_140], %205 {strides = array<i32>} : memref<4x8x1xf32, #tpu.memory_space<vmem>>, vector<1x8x1xf32>,
      %c3_141 = arith.constant 3 : index
      %c0_142 = arith.constant 0 : index
      %c0_143 = arith.constant 0 : index
      %206 = vector.load %arg9[%c3_141, %c0_142, %c0_143] : memref<4x8x8xf32, #tpu.memory_space<vmem>>, vector<1x8x8xf32>
      %207 = vector.shape_cast %206 : vector<1x8x8xf32> to vector<8x8xf32>
      %208 = vector.broadcast %191 : vector<8x1xf32> to vector<8x8xf32>
      %209 = arith.mulf %208, %207 : vector<8x8xf32>
      %210 = arith.truncf %196 : vector<8x8xf32> to vector<8x8xbf16>
      %c0_144 = arith.constant 0 : index
      %c0_145 = arith.constant 0 : index
      %c0_146 = arith.constant 0 : index
      %c24_147 = arith.constant 24 : index
      %211 = vector.load %arg5[%c0_144, %c0_145, %c0_146, %c24_147] : memref<1x1x8x32xbf16, #tpu.memory_space<vmem>>, vector<1x1x8x8xbf16>
      %212 = vector.shape_cast %211 : vector<1x1x8x8xbf16> to vector<8x8xbf16>
      %cst_148 = arith.constant dense<0.000000e+00> : vector<8x8xf32>
      %213 = tpu.matmul %210, %212, %cst_148 {dimension_numbers = #tpu.dot_dimension_numbers<[1], [0], [0], [1], [0, 0, 1, 1], [], []>} : vector<8x8xbf16>, vector<8x8xbf16>, vector<8x8xf32> -> vector<8x8xf32>
      %214 = arith.addf %209, %213 : vector<8x8xf32>
      %c3_149 = arith.constant 3 : index
      %c0_150 = arith.constant 0 : index
      %c0_151 = arith.constant 0 : index
      %215 = vector.load %arg9[%c3_149, %c0_150, %c0_151] : memref<4x8x8xf32, #tpu.memory_space<vmem>>, vector<1x8x8xf32>
      %216 = vector.shape_cast %215 : vector<1x8x8xf32> to vector<8x8xf32>
      %217 = vector.shape_cast %214 : vector<8x8xf32> to vector<1x8x8xf32>
      tpu.vector_store %arg9[%c3_149, %c0_150, %c0_151], %217 {strides = array<i32>} : memref<4x8x8xf32, #tpu.memory_space<vmem>>, vector<1x8x8xf32>,
      %c3_152 = arith.constant 3 : index
      %c0_153 = arith.constant 0 : index
      %c0_154 = arith.constant 0 : index
      %218 = vector.load %arg7[%c3_152, %c0_153, %c0_154] : memref<4x8x1xf32, #tpu.memory_space<vmem>>, vector<1x8x1xf32>
      %219 = vector.shape_cast %218 : vector<1x8x1xf32> to vector<8x1xf32>
      %220 = vector.shape_cast %189 : vector<8x1xf32> to vector<1x8x1xf32>
      tpu.vector_store %arg7[%c3_152, %c0_153, %c0_154], %220 {strides = array<i32>} : memref<4x8x1xf32, #tpu.memory_space<vmem>>, vector<1x8x1xf32>,
    } else {
    }
    %c0_i32_3 = arith.constant 0 : i32
    %9 = arith.cmpi eq, %arg2, %c0_i32_3 : i32
    %10 = arith.extui %9 : i1 to i32
    %c0_i32_4 = arith.constant 0 : i32
    %11 = arith.cmpi ne, %10, %c0_i32_4 : i32
    scf.if %11 {
      %c0 = arith.constant 0 : index
      %c0_5 = arith.constant 0 : index
      %c0_6 = arith.constant 0 : index
      %12 = vector.load %arg8[%c0, %c0_5, %c0_6] : memref<4x8x1xf32, #tpu.memory_space<vmem>>, vector<1x8x1xf32>
      %13 = vector.shape_cast %12 : vector<1x8x1xf32> to vector<8x1xf32>
      %14 = tpu.reciprocal %13 {approx = true} : vector<8x1xf32> -> vector<8x1xf32>
      %c0_7 = arith.constant 0 : index
      %c0_8 = arith.constant 0 : index
      %c0_9 = arith.constant 0 : index
      %15 = vector.load %arg9[%c0_7, %c0_8, %c0_9] : memref<4x8x8xf32, #tpu.memory_space<vmem>>, vector<1x8x8xf32>
      %16 = vector.shape_cast %15 : vector<1x8x8xf32> to vector<8x8xf32>
      %17 = vector.broadcast %14 : vector<8x1xf32> to vector<8x8xf32>
      %18 = arith.mulf %16, %17 : vector<8x8xf32>
      %19 = arith.truncf %18 : vector<8x8xf32> to vector<8x8xbf16>
      %c0_10 = arith.constant 0 : index
      %c0_11 = arith.constant 0 : index
      %c0_12 = arith.constant 0 : index
      %20 = vector.load %arg6[%c0_10, %c0_11, %c0_12] : memref<1x8x32xbf16, #tpu.memory_space<vmem>>, vector<1x8x8xbf16>
      %21 = vector.shape_cast %20 : vector<1x8x8xbf16> to vector<8x8xbf16>
      %22 = vector.shape_cast %19 : vector<8x8xbf16> to vector<1x8x8xbf16>
      tpu.vector_store %arg6[%c0_10, %c0_11, %c0_12], %22 {strides = array<i32>} : memref<1x8x32xbf16, #tpu.memory_space<vmem>>, vector<1x8x8xbf16>,
      %c1 = arith.constant 1 : index
      %c0_13 = arith.constant 0 : index
      %c0_14 = arith.constant 0 : index
      %23 = vector.load %arg8[%c1, %c0_13, %c0_14] : memref<4x8x1xf32, #tpu.memory_space<vmem>>, vector<1x8x1xf32>
      %24 = vector.shape_cast %23 : vector<1x8x1xf32> to vector<8x1xf32>
      %25 = tpu.reciprocal %24 {approx = true} : vector<8x1xf32> -> vector<8x1xf32>
      %c1_15 = arith.constant 1 : index
      %c0_16 = arith.constant 0 : index
      %c0_17 = arith.constant 0 : index
      %26 = vector.load %arg9[%c1_15, %c0_16, %c0_17] : memref<4x8x8xf32, #tpu.memory_space<vmem>>, vector<1x8x8xf32>
      %27 = vector.shape_cast %26 : vector<1x8x8xf32> to vector<8x8xf32>
      %28 = vector.broadcast %25 : vector<8x1xf32> to vector<8x8xf32>
      %29 = arith.mulf %27, %28 : vector<8x8xf32>
      %30 = arith.truncf %29 : vector<8x8xf32> to vector<8x8xbf16>
      %c0_18 = arith.constant 0 : index
      %c0_19 = arith.constant 0 : index
      %c8 = arith.constant 8 : index
      %31 = vector.load %arg6[%c0_18, %c0_19, %c8] : memref<1x8x32xbf16, #tpu.memory_space<vmem>>, vector<1x8x8xbf16>
      %32 = vector.shape_cast %31 : vector<1x8x8xbf16> to vector<8x8xbf16>
      %33 = vector.shape_cast %30 : vector<8x8xbf16> to vector<1x8x8xbf16>
      tpu.vector_store %arg6[%c0_18, %c0_19, %c8], %33 {strides = array<i32>} : memref<1x8x32xbf16, #tpu.memory_space<vmem>>, vector<1x8x8xbf16>,
      %c2 = arith.constant 2 : index
      %c0_20 = arith.constant 0 : index
      %c0_21 = arith.constant 0 : index
      %34 = vector.load %arg8[%c2, %c0_20, %c0_21] : memref<4x8x1xf32, #tpu.memory_space<vmem>>, vector<1x8x1xf32>
      %35 = vector.shape_cast %34 : vector<1x8x1xf32> to vector<8x1xf32>
      %36 = tpu.reciprocal %35 {approx = true} : vector<8x1xf32> -> vector<8x1xf32>
      %c2_22 = arith.constant 2 : index
      %c0_23 = arith.constant 0 : index
      %c0_24 = arith.constant 0 : index
      %37 = vector.load %arg9[%c2_22, %c0_23, %c0_24] : memref<4x8x8xf32, #tpu.memory_space<vmem>>, vector<1x8x8xf32>
      %38 = vector.shape_cast %37 : vector<1x8x8xf32> to vector<8x8xf32>
      %39 = vector.broadcast %36 : vector<8x1xf32> to vector<8x8xf32>
      %40 = arith.mulf %38, %39 : vector<8x8xf32>
      %41 = arith.truncf %40 : vector<8x8xf32> to vector<8x8xbf16>
      %c0_25 = arith.constant 0 : index
      %c0_26 = arith.constant 0 : index
      %c16 = arith.constant 16 : index
      %42 = vector.load %arg6[%c0_25, %c0_26, %c16] : memref<1x8x32xbf16, #tpu.memory_space<vmem>>, vector<1x8x8xbf16>
      %43 = vector.shape_cast %42 : vector<1x8x8xbf16> to vector<8x8xbf16>
      %44 = vector.shape_cast %41 : vector<8x8xbf16> to vector<1x8x8xbf16>
      tpu.vector_store %arg6[%c0_25, %c0_26, %c16], %44 {strides = array<i32>} : memref<1x8x32xbf16, #tpu.memory_space<vmem>>, vector<1x8x8xbf16>,
      %c3 = arith.constant 3 : index
      %c0_27 = arith.constant 0 : index
      %c0_28 = arith.constant 0 : index
      %45 = vector.load %arg8[%c3, %c0_27, %c0_28] : memref<4x8x1xf32, #tpu.memory_space<vmem>>, vector<1x8x1xf32>
      %46 = vector.shape_cast %45 : vector<1x8x1xf32> to vector<8x1xf32>
      %47 = tpu.reciprocal %46 {approx = true} : vector<8x1xf32> -> vector<8x1xf32>
      %c3_29 = arith.constant 3 : index
      %c0_30 = arith.constant 0 : index
      %c0_31 = arith.constant 0 : index
      %48 = vector.load %arg9[%c3_29, %c0_30, %c0_31] : memref<4x8x8xf32, #tpu.memory_space<vmem>>, vector<1x8x8xf32>
      %49 = vector.shape_cast %48 : vector<1x8x8xf32> to vector<8x8xf32>
      %50 = vector.broadcast %47 : vector<8x1xf32> to vector<8x8xf32>
      %51 = arith.mulf %49, %50 : vector<8x8xf32>
      %52 = arith.truncf %51 : vector<8x8xf32> to vector<8x8xbf16>
      %c0_32 = arith.constant 0 : index
      %c0_33 = arith.constant 0 : index
      %c24 = arith.constant 24 : index
      %53 = vector.load %arg6[%c0_32, %c0_33, %c24] : memref<1x8x32xbf16, #tpu.memory_space<vmem>>, vector<1x8x8xbf16>
      %54 = vector.shape_cast %53 : vector<1x8x8xbf16> to vector<8x8xbf16>
      %55 = vector.shape_cast %52 : vector<8x8xbf16> to vector<1x8x8xbf16>
      tpu.vector_store %arg6[%c0_32, %c0_33, %c24], %55 {strides = array<i32>} : memref<1x8x32xbf16, #tpu.memory_space<vmem>>, vector<1x8x8xbf16>,
    } else {
    }
    return
  }
  func.func @transform_0(%arg0: i32, %arg1: i32, %arg2: i32) -> (i32, i32, i32, i32) {
    %c0_i32 = arith.constant 0 : i32
    %c0_i32_0 = arith.constant 0 : i32
    %c0_i32_1 = arith.constant 0 : i32
    return %c0_i32, %arg0, %arg1, %c0_i32_0 : i32, i32, i32, i32
  }
  func.func @transform_1(%arg0: i32, %arg1: i32, %arg2: i32) -> (i32, i32, i32, i32) {
    %c1_i32 = arith.constant 1 : i32
    %c0_i32 = arith.constant 0 : i32
    %c0_i32_0 = arith.constant 0 : i32
    return %c1_i32, %arg0, %arg2, %c0_i32 : i32, i32, i32, i32
  }
  func.func @transform_2(%arg0: i32, %arg1: i32, %arg2: i32) -> (i32, i32, i32, i32) {
    %c2_i32 = arith.constant 2 : i32
    %c0_i32 = arith.constant 0 : i32
    %c0_i32_0 = arith.constant 0 : i32
    return %c2_i32, %arg0, %arg2, %c0_i32 : i32, i32, i32, i32
  }
  func.func @transform_3(%arg0: i32, %arg1: i32, %arg2: i32) -> (i32, i32, i32) {
    %c0_i32 = arith.constant 0 : i32
    %c0_i32_0 = arith.constant 0 : i32
    return %arg0, %arg1, %c0_i32 : i32, i32, i32
  }
}

module attributes {stable_mosaic.version = 11 : i64} {
  func.func @_oproj_postln_kernel(%arg0: i32, %arg1: memref<16x32xbf16, #tpu.memory_space<vmem>>, %arg2: memref<32x32xbf16, #tpu.memory_space<vmem>>, %arg3: memref<1x32xf32, #tpu.memory_space<vmem>>, %arg4: memref<16x32xf32, #tpu.memory_space<vmem>>, %arg5: memref<16x32xf32, #tpu.memory_space<vmem>>) attributes {dimension_semantics = [#tpu.dimension_semantics<parallel>], iteration_bounds = array<i64: 1>, scalar_prefetch = 0 : i64, scratch_operands = 0 : i64, tpu.core_type = #tpu.core_type<tc>, window_params = [{transform_indices = @transform_0, window_bounds = array<i64: 16, 32>}, {pipeline_mode = #tpu.pipeline_mode<synchronous>, transform_indices = @transform_1, window_bounds = array<i64: 32, 32>}, {pipeline_mode = #tpu.pipeline_mode<synchronous>, transform_indices = @transform_2, window_bounds = array<i64: 1, 32>}, {transform_indices = @transform_3, window_bounds = array<i64: 16, 32>}, {transform_indices = @transform_4, window_bounds = array<i64: 16, 32>}]} {
    %c0 = arith.constant 0 : index
    %c0_0 = arith.constant 0 : index
    %0 = vector.load %arg1[%c0, %c0_0] : memref<16x32xbf16, #tpu.memory_space<vmem>>, vector<16x32xbf16>
    %c0_1 = arith.constant 0 : index
    %c0_2 = arith.constant 0 : index
    %1 = vector.load %arg2[%c0_1, %c0_2] : memref<32x32xbf16, #tpu.memory_space<vmem>>, vector<32x32xbf16>
    %cst = arith.constant dense<0.000000e+00> : vector<16x32xf32>
    %2 = tpu.matmul %0, %1, %cst {dimension_numbers = #tpu.dot_dimension_numbers<[1], [0], [0], [1], [0, 0, 1, 1], [], []>} : vector<16x32xbf16>, vector<32x32xbf16>, vector<16x32xf32> -> vector<16x32xf32>
    %c0_3 = arith.constant 0 : index
    %c0_4 = arith.constant 0 : index
    %3 = vector.load %arg4[%c0_3, %c0_4] : memref<16x32xf32, #tpu.memory_space<vmem>>, vector<16x32xf32>
    %c0_5 = arith.constant 0 : index
    %c0_6 = arith.constant 0 : index
    %4 = vector.load %arg3[%c0_5, %c0_6] : memref<1x32xf32, #tpu.memory_space<vmem>>, vector<1x32xf32>
    %5 = arith.mulf %2, %2 : vector<16x32xf32>
    %cst_7 = arith.constant dense<0.000000e+00> : vector<16xf32>
    %6 = vector.multi_reduction <add>, %5, %cst_7 [1] : vector<16x32xf32> to vector<16xf32>
    %7 = vector.shape_cast %6 : vector<16xf32> to vector<16x1xf32>
    %cst_8 = arith.constant 3.200000e+01 : f32
    %8 = vector.broadcast %cst_8 : f32 to vector<16x1xf32>
    %9 = arith.divf %7, %8 : vector<16x1xf32>
    %cst_9 = arith.constant 9.99999997E-7 : f32
    %10 = vector.broadcast %cst_9 : f32 to vector<16x1xf32>
    %11 = arith.addf %9, %10 : vector<16x1xf32>
    %12 = math.rsqrt %11 : vector<16x1xf32>
    %13 = vector.broadcast %12 : vector<16x1xf32> to vector<16x32xf32>
    %14 = arith.mulf %2, %13 : vector<16x32xf32>
    %cst_10 = arith.constant 1.000000e+00 : f32
    %15 = vector.broadcast %cst_10 : f32 to vector<1x32xf32>
    %16 = arith.addf %15, %4 : vector<1x32xf32>
    %17 = vector.broadcast %16 : vector<1x32xf32> to vector<16x32xf32>
    %18 = arith.mulf %14, %17 : vector<16x32xf32>
    %19 = arith.addf %3, %18 : vector<16x32xf32>
    %c0_11 = arith.constant 0 : index
    %c0_12 = arith.constant 0 : index
    %20 = vector.load %arg5[%c0_11, %c0_12] : memref<16x32xf32, #tpu.memory_space<vmem>>, vector<16x32xf32>
    tpu.vector_store %arg5[%c0_11, %c0_12], %19 {strides = array<i32>} : memref<16x32xf32, #tpu.memory_space<vmem>>, vector<16x32xf32>,
    return
  }
  func.func @transform_0(%arg0: i32) -> (i32, i32) {
    %c0_i32 = arith.constant 0 : i32
    %c0_i32_0 = arith.constant 0 : i32
    return %arg0, %c0_i32 : i32, i32
  }
  func.func @transform_1(%arg0: i32) -> (i32, i32) {
    %c0_i32 = arith.constant 0 : i32
    %c0_i32_0 = arith.constant 0 : i32
    %c0_i32_1 = arith.constant 0 : i32
    return %c0_i32, %c0_i32_0 : i32, i32
  }
  func.func @transform_2(%arg0: i32) -> (i32, i32) {
    %c0_i32 = arith.constant 0 : i32
    %c0_i32_0 = arith.constant 0 : i32
    %c0_i32_1 = arith.constant 0 : i32
    return %c0_i32, %c0_i32_0 : i32, i32
  }
  func.func @transform_3(%arg0: i32) -> (i32, i32) {
    %c0_i32 = arith.constant 0 : i32
    %c0_i32_0 = arith.constant 0 : i32
    return %arg0, %c0_i32 : i32, i32
  }
  func.func @transform_4(%arg0: i32) -> (i32, i32) {
    %c0_i32 = arith.constant 0 : i32
    %c0_i32_0 = arith.constant 0 : i32
    return %arg0, %c0_i32 : i32, i32
  }
}

module attributes {stable_mosaic.version = 11 : i64} {
  func.func @_mlp_kernel(%arg0: i32, %arg1: i32, %arg2: memref<16x32xf32, #tpu.memory_space<vmem>>, %arg3: memref<1x32xf32, #tpu.memory_space<vmem>>, %arg4: memref<32x32xbf16, #tpu.memory_space<vmem>>, %arg5: memref<32x32xbf16, #tpu.memory_space<vmem>>, %arg6: memref<32x32xbf16, #tpu.memory_space<vmem>>, %arg7: memref<1x32xf32, #tpu.memory_space<vmem>>, %arg8: memref<16x32xf32, #tpu.memory_space<vmem>>, %arg9: memref<16x32xbf16, #tpu.memory_space<vmem>>, %arg10: memref<16x32xf32, #tpu.memory_space<vmem>>) attributes {dimension_semantics = [#tpu.dimension_semantics<parallel>, #tpu.dimension_semantics<arbitrary>], iteration_bounds = array<i64: 1, 1>, scalar_prefetch = 0 : i64, scratch_operands = 2 : i64, tpu.core_type = #tpu.core_type<tc>, window_params = [{transform_indices = @transform_0, window_bounds = array<i64: 16, 32>}, {pipeline_mode = #tpu.pipeline_mode<synchronous>, transform_indices = @transform_1, window_bounds = array<i64: 1, 32>}, {transform_indices = @transform_2, window_bounds = array<i64: 32, 32>}, {transform_indices = @transform_3, window_bounds = array<i64: 32, 32>}, {transform_indices = @transform_4, window_bounds = array<i64: 32, 32>}, {pipeline_mode = #tpu.pipeline_mode<synchronous>, transform_indices = @transform_5, window_bounds = array<i64: 1, 32>}, {transform_indices = @transform_6, window_bounds = array<i64: 16, 32>}]} {
    %c0_i32 = arith.constant 0 : i32
    %0 = arith.cmpi eq, %arg1, %c0_i32 : i32
    %1 = arith.extui %0 : i1 to i32
    %c0_i32_0 = arith.constant 0 : i32
    %2 = arith.cmpi ne, %1, %c0_i32_0 : i32
    scf.if %2 {
      %c0_20 = arith.constant 0 : index
      %c0_21 = arith.constant 0 : index
      %31 = vector.load %arg2[%c0_20, %c0_21] : memref<16x32xf32, #tpu.memory_space<vmem>>, vector<16x32xf32>
      %c0_22 = arith.constant 0 : index
      %c0_23 = arith.constant 0 : index
      %32 = vector.load %arg3[%c0_22, %c0_23] : memref<1x32xf32, #tpu.memory_space<vmem>>, vector<1x32xf32>
      %33 = arith.mulf %31, %31 : vector<16x32xf32>
      %cst_24 = arith.constant dense<0.000000e+00> : vector<16xf32>
      %34 = vector.multi_reduction <add>, %33, %cst_24 [1] : vector<16x32xf32> to vector<16xf32>
      %35 = vector.shape_cast %34 : vector<16xf32> to vector<16x1xf32>
      %cst_25 = arith.constant 3.200000e+01 : f32
      %36 = vector.broadcast %cst_25 : f32 to vector<16x1xf32>
      %37 = arith.divf %35, %36 : vector<16x1xf32>
      %cst_26 = arith.constant 9.99999997E-7 : f32
      %38 = vector.broadcast %cst_26 : f32 to vector<16x1xf32>
      %39 = arith.addf %37, %38 : vector<16x1xf32>
      %40 = math.rsqrt %39 : vector<16x1xf32>
      %41 = vector.broadcast %40 : vector<16x1xf32> to vector<16x32xf32>
      %42 = arith.mulf %31, %41 : vector<16x32xf32>
      %cst_27 = arith.constant 1.000000e+00 : f32
      %43 = vector.broadcast %cst_27 : f32 to vector<1x32xf32>
      %44 = arith.addf %43, %32 : vector<1x32xf32>
      %45 = vector.broadcast %44 : vector<1x32xf32> to vector<16x32xf32>
      %46 = arith.mulf %42, %45 : vector<16x32xf32>
      %47 = arith.truncf %46 : vector<16x32xf32> to vector<16x32xbf16>
      %c0_28 = arith.constant 0 : index
      %c0_29 = arith.constant 0 : index
      %48 = vector.load %arg9[%c0_28, %c0_29] : memref<16x32xbf16, #tpu.memory_space<vmem>>, vector<16x32xbf16>
      tpu.vector_store %arg9[%c0_28, %c0_29], %47 {strides = array<i32>} : memref<16x32xbf16, #tpu.memory_space<vmem>>, vector<16x32xbf16>,
      %cst_30 = arith.constant 0.000000e+00 : f32
      %49 = vector.broadcast %cst_30 : f32 to vector<16x32xf32>
      %c0_31 = arith.constant 0 : index
      %c0_32 = arith.constant 0 : index
      %50 = vector.load %arg10[%c0_31, %c0_32] : memref<16x32xf32, #tpu.memory_space<vmem>>, vector<16x32xf32>
      tpu.vector_store %arg10[%c0_31, %c0_32], %49 {strides = array<i32>} : memref<16x32xf32, #tpu.memory_space<vmem>>, vector<16x32xf32>,
    } else {
    }
    %c0 = arith.constant 0 : index
    %c0_1 = arith.constant 0 : index
    %3 = vector.load %arg9[%c0, %c0_1] : memref<16x32xbf16, #tpu.memory_space<vmem>>, vector<16x32xbf16>
    %c0_2 = arith.constant 0 : index
    %c0_3 = arith.constant 0 : index
    %4 = vector.load %arg4[%c0_2, %c0_3] : memref<32x32xbf16, #tpu.memory_space<vmem>>, vector<32x32xbf16>
    %cst = arith.constant dense<0.000000e+00> : vector<16x32xf32>
    %5 = tpu.matmul %3, %4, %cst {dimension_numbers = #tpu.dot_dimension_numbers<[1], [0], [0], [1], [0, 0, 1, 1], [], []>} : vector<16x32xbf16>, vector<32x32xbf16>, vector<16x32xf32> -> vector<16x32xf32>
    %c0_4 = arith.constant 0 : index
    %c0_5 = arith.constant 0 : index
    %6 = vector.load %arg5[%c0_4, %c0_5] : memref<32x32xbf16, #tpu.memory_space<vmem>>, vector<32x32xbf16>
    %cst_6 = arith.constant dense<0.000000e+00> : vector<16x32xf32>
    %7 = tpu.matmul %3, %6, %cst_6 {dimension_numbers = #tpu.dot_dimension_numbers<[1], [0], [0], [1], [0, 0, 1, 1], [], []>} : vector<16x32xbf16>, vector<32x32xbf16>, vector<16x32xf32> -> vector<16x32xf32>
    %cst_7 = arith.constant 5.000000e-01 : f32
    %8 = vector.broadcast %cst_7 : f32 to vector<16x32xf32>
    %9 = arith.mulf %8, %5 : vector<16x32xf32>
    %cst_8 = arith.constant 4.471500e-02 : f32
    %10 = vector.broadcast %cst_8 : f32 to vector<16x32xf32>
    %11 = arith.mulf %10, %5 : vector<16x32xf32>
    %12 = arith.mulf %11, %5 : vector<16x32xf32>
    %13 = arith.mulf %12, %5 : vector<16x32xf32>
    %14 = arith.addf %5, %13 : vector<16x32xf32>
    %cst_9 = arith.constant 0.797884583 : f32
    %15 = vector.broadcast %cst_9 : f32 to vector<16x32xf32>
    %16 = arith.mulf %15, %14 : vector<16x32xf32>
    %17 = math.tanh %16 : vector<16x32xf32>
    %cst_10 = arith.constant 1.000000e+00 : f32
    %18 = vector.broadcast %cst_10 : f32 to vector<16x32xf32>
    %19 = arith.addf %18, %17 : vector<16x32xf32>
    %20 = arith.mulf %9, %19 : vector<16x32xf32>
    %c0_11 = arith.constant 0 : index
    %c0_12 = arith.constant 0 : index
    %21 = vector.load %arg10[%c0_11, %c0_12] : memref<16x32xf32, #tpu.memory_space<vmem>>, vector<16x32xf32>
    %22 = arith.mulf %20, %7 : vector<16x32xf32>
    %23 = arith.truncf %22 : vector<16x32xf32> to vector<16x32xbf16>
    %c0_13 = arith.constant 0 : index
    %c0_14 = arith.constant 0 : index
    %24 = vector.load %arg6[%c0_13, %c0_14] : memref<32x32xbf16, #tpu.memory_space<vmem>>, vector<32x32xbf16>
    %cst_15 = arith.constant dense<0.000000e+00> : vector<16x32xf32>
    %25 = tpu.matmul %23, %24, %cst_15 {dimension_numbers = #tpu.dot_dimension_numbers<[1], [0], [0], [1], [0, 0, 1, 1], [], []>} : vector<16x32xbf16>, vector<32x32xbf16>, vector<16x32xf32> -> vector<16x32xf32>
    %26 = arith.addf %21, %25 : vector<16x32xf32>
    %c0_16 = arith.constant 0 : index
    %c0_17 = arith.constant 0 : index
    %27 = vector.load %arg10[%c0_16, %c0_17] : memref<16x32xf32, #tpu.memory_space<vmem>>, vector<16x32xf32>
    tpu.vector_store %arg10[%c0_16, %c0_17], %26 {strides = array<i32>} : memref<16x32xf32, #tpu.memory_space<vmem>>, vector<16x32xf32>,
    %c0_i32_18 = arith.constant 0 : i32
    %28 = arith.cmpi eq, %arg1, %c0_i32_18 : i32
    %29 = arith.extui %28 : i1 to i32
    %c0_i32_19 = arith.constant 0 : i32
    %30 = arith.cmpi ne, %29, %c0_i32_19 : i32
    scf.if %30 {
      %c0_20 = arith.constant 0 : index
      %c0_21 = arith.constant 0 : index
      %31 = vector.load %arg2[%c0_20, %c0_21] : memref<16x32xf32, #tpu.memory_space<vmem>>, vector<16x32xf32>
      %c0_22 = arith.constant 0 : index
      %c0_23 = arith.constant 0 : index
      %32 = vector.load %arg10[%c0_22, %c0_23] : memref<16x32xf32, #tpu.memory_space<vmem>>, vector<16x32xf32>
      %c0_24 = arith.constant 0 : index
      %c0_25 = arith.constant 0 : index
      %33 = vector.load %arg7[%c0_24, %c0_25] : memref<1x32xf32, #tpu.memory_space<vmem>>, vector<1x32xf32>
      %34 = arith.mulf %32, %32 : vector<16x32xf32>
      %cst_26 = arith.constant dense<0.000000e+00> : vector<16xf32>
      %35 = vector.multi_reduction <add>, %34, %cst_26 [1] : vector<16x32xf32> to vector<16xf32>
      %36 = vector.shape_cast %35 : vector<16xf32> to vector<16x1xf32>
      %cst_27 = arith.constant 3.200000e+01 : f32
      %37 = vector.broadcast %cst_27 : f32 to vector<16x1xf32>
      %38 = arith.divf %36, %37 : vector<16x1xf32>
      %cst_28 = arith.constant 9.99999997E-7 : f32
      %39 = vector.broadcast %cst_28 : f32 to vector<16x1xf32>
      %40 = arith.addf %38, %39 : vector<16x1xf32>
      %41 = math.rsqrt %40 : vector<16x1xf32>
      %42 = vector.broadcast %41 : vector<16x1xf32> to vector<16x32xf32>
      %43 = arith.mulf %32, %42 : vector<16x32xf32>
      %cst_29 = arith.constant 1.000000e+00 : f32
      %44 = vector.broadcast %cst_29 : f32 to vector<1x32xf32>
      %45 = arith.addf %44, %33 : vector<1x32xf32>
      %46 = vector.broadcast %45 : vector<1x32xf32> to vector<16x32xf32>
      %47 = arith.mulf %43, %46 : vector<16x32xf32>
      %48 = arith.addf %31, %47 : vector<16x32xf32>
      %c0_30 = arith.constant 0 : index
      %c0_31 = arith.constant 0 : index
      %49 = vector.load %arg8[%c0_30, %c0_31] : memref<16x32xf32, #tpu.memory_space<vmem>>, vector<16x32xf32>
      tpu.vector_store %arg8[%c0_30, %c0_31], %48 {strides = array<i32>} : memref<16x32xf32, #tpu.memory_space<vmem>>, vector<16x32xf32>,
    } else {
    }
    return
  }
  func.func @transform_0(%arg0: i32, %arg1: i32) -> (i32, i32) {
    %c0_i32 = arith.constant 0 : i32
    %c0_i32_0 = arith.constant 0 : i32
    return %arg0, %c0_i32 : i32, i32
  }
  func.func @transform_1(%arg0: i32, %arg1: i32) -> (i32, i32) {
    %c0_i32 = arith.constant 0 : i32
    %c0_i32_0 = arith.constant 0 : i32
    %c0_i32_1 = arith.constant 0 : i32
    return %c0_i32, %c0_i32_0 : i32, i32
  }
  func.func @transform_2(%arg0: i32, %arg1: i32) -> (i32, i32) {
    %c0_i32 = arith.constant 0 : i32
    %c0_i32_0 = arith.constant 0 : i32
    return %c0_i32, %arg1 : i32, i32
  }
  func.func @transform_3(%arg0: i32, %arg1: i32) -> (i32, i32) {
    %c0_i32 = arith.constant 0 : i32
    %c0_i32_0 = arith.constant 0 : i32
    return %c0_i32, %arg1 : i32, i32
  }
  func.func @transform_4(%arg0: i32, %arg1: i32) -> (i32, i32) {
    %c0_i32 = arith.constant 0 : i32
    %c0_i32_0 = arith.constant 0 : i32
    return %arg1, %c0_i32 : i32, i32
  }
  func.func @transform_5(%arg0: i32, %arg1: i32) -> (i32, i32) {
    %c0_i32 = arith.constant 0 : i32
    %c0_i32_0 = arith.constant 0 : i32
    %c0_i32_1 = arith.constant 0 : i32
    return %c0_i32, %c0_i32_0 : i32, i32
  }
  func.func @transform_6(%arg0: i32, %arg1: i32) -> (i32, i32) {
    %c0_i32 = arith.constant 0 : i32
    %c0_i32_0 = arith.constant 0 : i32
    return %arg0, %c0_i32 : i32, i32
  }
}

module attributes {stable_mosaic.version = 11 : i64} {
  func.func @_qkv_rope_kernel(%arg0: i32, %arg1: i32, %arg2: i32, %arg3: memref<1x8x32xf32, #tpu.memory_space<vmem>>, %arg4: memref<1x32xf32, #tpu.memory_space<vmem>>, %arg5: memref<1x32x32xbf16, #tpu.memory_space<vmem>>, %arg6: memref<1x8x8xf32, #tpu.memory_space<vmem>>, %arg7: memref<1x8x8xf32, #tpu.memory_space<vmem>>, %arg8: memref<1x1x8x32xbf16, #tpu.memory_space<vmem>>) attributes {dimension_semantics = [#tpu.dimension_semantics<parallel>, #tpu.dimension_semantics<parallel>, #tpu.dimension_semantics<arbitrary>], iteration_bounds = array<i64: 2, 1, 3>, scalar_prefetch = 0 : i64, scratch_operands = 0 : i64, tpu.core_type = #tpu.core_type<tc>, window_params = [{transform_indices = @transform_0, window_bounds = array<i64: 1, 8, 32>}, {pipeline_mode = #tpu.pipeline_mode<synchronous>, transform_indices = @transform_1, window_bounds = array<i64: 1, 32>}, {transform_indices = @transform_2, window_bounds = array<i64: 1, 32, 32>}, {transform_indices = @transform_3, window_bounds = array<i64: 1, 8, 8>}, {transform_indices = @transform_4, window_bounds = array<i64: 1, 8, 8>}, {transform_indices = @transform_5, window_bounds = array<i64: 1, 1, 8, 32>}]} {
    %c0 = arith.constant 0 : index
    %c0_0 = arith.constant 0 : index
    %c0_1 = arith.constant 0 : index
    %0 = vector.load %arg3[%c0, %c0_0, %c0_1] : memref<1x8x32xf32, #tpu.memory_space<vmem>>, vector<1x8x32xf32>
    %1 = vector.shape_cast %0 : vector<1x8x32xf32> to vector<8x32xf32>
    %c0_2 = arith.constant 0 : index
    %c0_3 = arith.constant 0 : index
    %2 = vector.load %arg4[%c0_2, %c0_3] : memref<1x32xf32, #tpu.memory_space<vmem>>, vector<1x32xf32>
    %3 = arith.mulf %1, %1 : vector<8x32xf32>
    %cst = arith.constant dense<0.000000e+00> : vector<8xf32>
    %4 = vector.multi_reduction <add>, %3, %cst [1] : vector<8x32xf32> to vector<8xf32>
    %5 = vector.shape_cast %4 : vector<8xf32> to vector<8x1xf32>
    %cst_4 = arith.constant 3.200000e+01 : f32
    %6 = vector.broadcast %cst_4 : f32 to vector<8x1xf32>
    %7 = arith.divf %5, %6 : vector<8x1xf32>
    %cst_5 = arith.constant 9.99999997E-7 : f32
    %8 = vector.broadcast %cst_5 : f32 to vector<8x1xf32>
    %9 = arith.addf %7, %8 : vector<8x1xf32>
    %10 = math.rsqrt %9 : vector<8x1xf32>
    %11 = vector.broadcast %10 : vector<8x1xf32> to vector<8x32xf32>
    %12 = arith.mulf %1, %11 : vector<8x32xf32>
    %cst_6 = arith.constant 1.000000e+00 : f32
    %13 = vector.broadcast %cst_6 : f32 to vector<1x32xf32>
    %14 = arith.addf %13, %2 : vector<1x32xf32>
    %15 = vector.broadcast %14 : vector<1x32xf32> to vector<8x32xf32>
    %16 = arith.mulf %12, %15 : vector<8x32xf32>
    %17 = arith.truncf %16 : vector<8x32xf32> to vector<8x32xbf16>
    %c0_7 = arith.constant 0 : index
    %c0_8 = arith.constant 0 : index
    %c0_9 = arith.constant 0 : index
    %18 = vector.load %arg5[%c0_7, %c0_8, %c0_9] : memref<1x32x32xbf16, #tpu.memory_space<vmem>>, vector<1x32x32xbf16>
    %19 = vector.shape_cast %18 : vector<1x32x32xbf16> to vector<32x32xbf16>
    %cst_10 = arith.constant dense<0.000000e+00> : vector<8x32xf32>
    %20 = tpu.matmul %17, %19, %cst_10 {dimension_numbers = #tpu.dot_dimension_numbers<[1], [0], [0], [1], [0, 0, 1, 1], [], []>} : vector<8x32xbf16>, vector<32x32xbf16>, vector<8x32xf32> -> vector<8x32xf32>
    %c2_i32 = arith.constant 2 : i32
    %21 = arith.cmpi slt, %arg2, %c2_i32 : i32
    %22 = arith.extui %21 : i1 to i32
    %23 = arith.sitofp %22 : i32 to f32
    %c0_11 = arith.constant 0 : index
    %c0_12 = arith.constant 0 : index
    %c0_13 = arith.constant 0 : index
    %24 = vector.load %arg6[%c0_11, %c0_12, %c0_13] : memref<1x8x8xf32, #tpu.memory_space<vmem>>, vector<1x8x8xf32>
    %25 = vector.shape_cast %24 : vector<1x8x8xf32> to vector<8x8xf32>
    %26 = vector.broadcast %23 : f32 to vector<8x8xf32>
    %27 = arith.mulf %25, %26 : vector<8x8xf32>
    %cst_14 = arith.constant 1.000000e+00 : f32
    %28 = arith.subf %cst_14, %23 : f32
    %29 = vector.broadcast %28 : f32 to vector<8x8xf32>
    %30 = arith.addf %27, %29 : vector<8x8xf32>
    %c0_15 = arith.constant 0 : index
    %c0_16 = arith.constant 0 : index
    %c0_17 = arith.constant 0 : index
    %31 = vector.load %arg7[%c0_15, %c0_16, %c0_17] : memref<1x8x8xf32, #tpu.memory_space<vmem>>, vector<1x8x8xf32>
    %32 = vector.shape_cast %31 : vector<1x8x8xf32> to vector<8x8xf32>
    %33 = vector.broadcast %23 : f32 to vector<8x8xf32>
    %34 = arith.mulf %32, %33 : vector<8x8xf32>
    %35 = vector.extract_strided_slice %20 {offsets = [0, 0], sizes = [8, 8], strides = [1, 1]} : vector<8x32xf32> to vector<8x8xf32>
    %36 = vector.extract_strided_slice %35 {offsets = [0, 4], sizes = [8, 4], strides = [1, 1]} : vector<8x8xf32> to vector<8x4xf32>
    %cst_18 = arith.constant 0.000000e+00 : f32
    %37 = vector.broadcast %cst_18 : f32 to vector<8x4xf32>
    %38 = arith.subf %37, %36 : vector<8x4xf32>
    %39 = vector.extract_strided_slice %35 {offsets = [0, 0], sizes = [8, 4], strides = [1, 1]} : vector<8x8xf32> to vector<8x4xf32>
    %40 = tpu.concatenate %38, %39 in 1 : vector<8x4xf32>, vector<8x4xf32> -> vector<8x8xf32>
    %41 = arith.mulf %35, %30 : vector<8x8xf32>
    %42 = arith.mulf %40, %34 : vector<8x8xf32>
    %43 = arith.addf %41, %42 : vector<8x8xf32>
    %44 = arith.truncf %43 : vector<8x8xf32> to vector<8x8xbf16>
    %c0_19 = arith.constant 0 : index
    %c0_20 = arith.constant 0 : index
    %c0_21 = arith.constant 0 : index
    %c0_22 = arith.constant 0 : index
    %45 = vector.load %arg8[%c0_19, %c0_20, %c0_21, %c0_22] : memref<1x1x8x32xbf16, #tpu.memory_space<vmem>>, vector<1x1x8x8xbf16>
    %46 = vector.shape_cast %45 : vector<1x1x8x8xbf16> to vector<8x8xbf16>
    %47 = vector.shape_cast %44 : vector<8x8xbf16> to vector<1x1x8x8xbf16>
    tpu.vector_store %arg8[%c0_19, %c0_20, %c0_21, %c0_22], %47 {strides = array<i32>} : memref<1x1x8x32xbf16, #tpu.memory_space<vmem>>, vector<1x1x8x8xbf16>,
    %48 = vector.extract_strided_slice %20 {offsets = [0, 8], sizes = [8, 8], strides = [1, 1]} : vector<8x32xf32> to vector<8x8xf32>
    %49 = vector.extract_strided_slice %48 {offsets = [0, 4], sizes = [8, 4], strides = [1, 1]} : vector<8x8xf32> to vector<8x4xf32>
    %cst_23 = arith.constant 0.000000e+00 : f32
    %50 = vector.broadcast %cst_23 : f32 to vector<8x4xf32>
    %51 = arith.subf %50, %49 : vector<8x4xf32>
    %52 = vector.extract_strided_slice %48 {offsets = [0, 0], sizes = [8, 4], strides = [1, 1]} : vector<8x8xf32> to vector<8x4xf32>
    %53 = tpu.concatenate %51, %52 in 1 : vector<8x4xf32>, vector<8x4xf32> -> vector<8x8xf32>
    %54 = arith.mulf %48, %30 : vector<8x8xf32>
    %55 = arith.mulf %53, %34 : vector<8x8xf32>
    %56 = arith.addf %54, %55 : vector<8x8xf32>
    %57 = arith.truncf %56 : vector<8x8xf32> to vector<8x8xbf16>
    %c0_24 = arith.constant 0 : index
    %c0_25 = arith.constant 0 : index
    %c0_26 = arith.constant 0 : index
    %c8 = arith.constant 8 : index
    %58 = vector.load %arg8[%c0_24, %c0_25, %c0_26, %c8] : memref<1x1x8x32xbf16, #tpu.memory_space<vmem>>, vector<1x1x8x8xbf16>
    %59 = vector.shape_cast %58 : vector<1x1x8x8xbf16> to vector<8x8xbf16>
    %60 = vector.shape_cast %57 : vector<8x8xbf16> to vector<1x1x8x8xbf16>
    tpu.vector_store %arg8[%c0_24, %c0_25, %c0_26, %c8], %60 {strides = array<i32>} : memref<1x1x8x32xbf16, #tpu.memory_space<vmem>>, vector<1x1x8x8xbf16>,
    %61 = vector.extract_strided_slice %20 {offsets = [0, 16], sizes = [8, 8], strides = [1, 1]} : vector<8x32xf32> to vector<8x8xf32>
    %62 = vector.extract_strided_slice %61 {offsets = [0, 4], sizes = [8, 4], strides = [1, 1]} : vector<8x8xf32> to vector<8x4xf32>
    %cst_27 = arith.constant 0.000000e+00 : f32
    %63 = vector.broadcast %cst_27 : f32 to vector<8x4xf32>
    %64 = arith.subf %63, %62 : vector<8x4xf32>
    %65 = vector.extract_strided_slice %61 {offsets = [0, 0], sizes = [8, 4], strides = [1, 1]} : vector<8x8xf32> to vector<8x4xf32>
    %66 = tpu.concatenate %64, %65 in 1 : vector<8x4xf32>, vector<8x4xf32> -> vector<8x8xf32>
    %67 = arith.mulf %61, %30 : vector<8x8xf32>
    %68 = arith.mulf %66, %34 : vector<8x8xf32>
    %69 = arith.addf %67, %68 : vector<8x8xf32>
    %70 = arith.truncf %69 : vector<8x8xf32> to vector<8x8xbf16>
    %c0_28 = arith.constant 0 : index
    %c0_29 = arith.constant 0 : index
    %c0_30 = arith.constant 0 : index
    %c16 = arith.constant 16 : index
    %71 = vector.load %arg8[%c0_28, %c0_29, %c0_30, %c16] : memref<1x1x8x32xbf16, #tpu.memory_space<vmem>>, vector<1x1x8x8xbf16>
    %72 = vector.shape_cast %71 : vector<1x1x8x8xbf16> to vector<8x8xbf16>
    %73 = vector.shape_cast %70 : vector<8x8xbf16> to vector<1x1x8x8xbf16>
    tpu.vector_store %arg8[%c0_28, %c0_29, %c0_30, %c16], %73 {strides = array<i32>} : memref<1x1x8x32xbf16, #tpu.memory_space<vmem>>, vector<1x1x8x8xbf16>,
    %74 = vector.extract_strided_slice %20 {offsets = [0, 24], sizes = [8, 8], strides = [1, 1]} : vector<8x32xf32> to vector<8x8xf32>
    %75 = vector.extract_strided_slice %74 {offsets = [0, 4], sizes = [8, 4], strides = [1, 1]} : vector<8x8xf32> to vector<8x4xf32>
    %cst_31 = arith.constant 0.000000e+00 : f32
    %76 = vector.broadcast %cst_31 : f32 to vector<8x4xf32>
    %77 = arith.subf %76, %75 : vector<8x4xf32>
    %78 = vector.extract_strided_slice %74 {offsets = [0, 0], sizes = [8, 4], strides = [1, 1]} : vector<8x8xf32> to vector<8x4xf32>
    %79 = tpu.concatenate %77, %78 in 1 : vector<8x4xf32>, vector<8x4xf32> -> vector<8x8xf32>
    %80 = arith.mulf %74, %30 : vector<8x8xf32>
    %81 = arith.mulf %79, %34 : vector<8x8xf32>
    %82 = arith.addf %80, %81 : vector<8x8xf32>
    %83 = arith.truncf %82 : vector<8x8xf32> to vector<8x8xbf16>
    %c0_32 = arith.constant 0 : index
    %c0_33 = arith.constant 0 : index
    %c0_34 = arith.constant 0 : index
    %c24 = arith.constant 24 : index
    %84 = vector.load %arg8[%c0_32, %c0_33, %c0_34, %c24] : memref<1x1x8x32xbf16, #tpu.memory_space<vmem>>, vector<1x1x8x8xbf16>
    %85 = vector.shape_cast %84 : vector<1x1x8x8xbf16> to vector<8x8xbf16>
    %86 = vector.shape_cast %83 : vector<8x8xbf16> to vector<1x1x8x8xbf16>
    tpu.vector_store %arg8[%c0_32, %c0_33, %c0_34, %c24], %86 {strides = array<i32>} : memref<1x1x8x32xbf16, #tpu.memory_space<vmem>>, vector<1x1x8x8xbf16>,
    return
  }
  func.func @transform_0(%arg0: i32, %arg1: i32, %arg2: i32) -> (i32, i32, i32) {
    %c0_i32 = arith.constant 0 : i32
    %c0_i32_0 = arith.constant 0 : i32
    return %arg0, %arg1, %c0_i32 : i32, i32, i32
  }
  func.func @transform_1(%arg0: i32, %arg1: i32, %arg2: i32) -> (i32, i32) {
    %c0_i32 = arith.constant 0 : i32
    %c0_i32_0 = arith.constant 0 : i32
    %c0_i32_1 = arith.constant 0 : i32
    return %c0_i32, %c0_i32_0 : i32, i32
  }
  func.func @transform_2(%arg0: i32, %arg1: i32, %arg2: i32) -> (i32, i32, i32) {
    %c0_i32 = arith.constant 0 : i32
    %c0_i32_0 = arith.constant 0 : i32
    %c0_i32_1 = arith.constant 0 : i32
    return %arg2, %c0_i32, %c0_i32_0 : i32, i32, i32
  }
  func.func @transform_3(%arg0: i32, %arg1: i32, %arg2: i32) -> (i32, i32, i32) {
    %c0_i32 = arith.constant 0 : i32
    %c0_i32_0 = arith.constant 0 : i32
    return %arg0, %arg1, %c0_i32 : i32, i32, i32
  }
  func.func @transform_4(%arg0: i32, %arg1: i32, %arg2: i32) -> (i32, i32, i32) {
    %c0_i32 = arith.constant 0 : i32
    %c0_i32_0 = arith.constant 0 : i32
    return %arg0, %arg1, %c0_i32 : i32, i32, i32
  }
  func.func @transform_5(%arg0: i32, %arg1: i32, %arg2: i32) -> (i32, i32, i32, i32) {
    %c0_i32 = arith.constant 0 : i32
    %c0_i32_0 = arith.constant 0 : i32
    return %arg2, %arg0, %arg1, %c0_i32 : i32, i32, i32, i32
  }
}

module attributes {stable_mosaic.version = 11 : i64} {
  func.func @_gater_kernel(%arg0: i32, %arg1: memref<16x32xf32, #tpu.memory_space<vmem>>, %arg2: memref<1x32xf32, #tpu.memory_space<vmem>>, %arg3: memref<1x1xf32, #tpu.memory_space<vmem>>, %arg4: memref<16x1xf32, #tpu.memory_space<vmem>>, %arg5: memref<16x1xf32, #tpu.memory_space<vmem>>) attributes {dimension_semantics = [#tpu.dimension_semantics<parallel>], iteration_bounds = array<i64: 1>, scalar_prefetch = 0 : i64, scratch_operands = 0 : i64, tpu.core_type = #tpu.core_type<tc>, window_params = [{transform_indices = @transform_0, window_bounds = array<i64: 16, 32>}, {pipeline_mode = #tpu.pipeline_mode<synchronous>, transform_indices = @transform_1, window_bounds = array<i64: 1, 32>}, {pipeline_mode = #tpu.pipeline_mode<synchronous>, transform_indices = @transform_2, window_bounds = array<i64: 1, 1>}, {transform_indices = @transform_3, window_bounds = array<i64: 16, 1>}, {transform_indices = @transform_4, window_bounds = array<i64: 16, 1>}]} {
    %c0 = arith.constant 0 : index
    %c0_0 = arith.constant 0 : index
    %0 = vector.load %arg1[%c0, %c0_0] : memref<16x32xf32, #tpu.memory_space<vmem>>, vector<16x32xf32>
    %c0_1 = arith.constant 0 : index
    %c0_2 = arith.constant 0 : index
    %1 = vector.load %arg2[%c0_1, %c0_2] : memref<1x32xf32, #tpu.memory_space<vmem>>, vector<1x32xf32>
    %2 = vector.broadcast %1 : vector<1x32xf32> to vector<16x32xf32>
    %3 = arith.mulf %0, %2 : vector<16x32xf32>
    %cst = arith.constant dense<0.000000e+00> : vector<16xf32>
    %4 = vector.multi_reduction <add>, %3, %cst [1] : vector<16x32xf32> to vector<16xf32>
    %5 = vector.shape_cast %4 : vector<16xf32> to vector<16x1xf32>
    %c0_3 = arith.constant 0 : index
    %c0_4 = arith.constant 0 : index
    %6 = vector.load %arg3[%c0_3, %c0_4] : memref<1x1xf32, #tpu.memory_space<vmem>>, vector<1x1xf32>
    %7 = vector.broadcast %6 : vector<1x1xf32> to vector<16x1xf32>
    %8 = arith.addf %5, %7 : vector<16x1xf32>
    %c0_5 = arith.constant 0 : index
    %c0_6 = arith.constant 0 : index
    %9 = vector.load %arg4[%c0_5, %c0_6] : memref<16x1xf32, #tpu.memory_space<vmem>>, vector<16x1xf32>
    tpu.vector_store %arg4[%c0_5, %c0_6], %8 {strides = array<i32>} : memref<16x1xf32, #tpu.memory_space<vmem>>, vector<16x1xf32>,
    %cst_7 = arith.constant 0.000000e+00 : f32
    %10 = vector.broadcast %cst_7 : f32 to vector<16x1xf32>
    %11 = arith.subf %10, %8 : vector<16x1xf32>
    %12 = math.exp %11 : vector<16x1xf32>
    %cst_8 = arith.constant 1.000000e+00 : f32
    %13 = vector.broadcast %cst_8 : f32 to vector<16x1xf32>
    %14 = arith.addf %13, %12 : vector<16x1xf32>
    %cst_9 = arith.constant 1.000000e+00 : f32
    %15 = vector.broadcast %cst_9 : f32 to vector<16x1xf32>
    %16 = arith.divf %15, %14 : vector<16x1xf32>
    %c0_10 = arith.constant 0 : index
    %c0_11 = arith.constant 0 : index
    %17 = vector.load %arg5[%c0_10, %c0_11] : memref<16x1xf32, #tpu.memory_space<vmem>>, vector<16x1xf32>
    tpu.vector_store %arg5[%c0_10, %c0_11], %16 {strides = array<i32>} : memref<16x1xf32, #tpu.memory_space<vmem>>, vector<16x1xf32>,
    return
  }
  func.func @transform_0(%arg0: i32) -> (i32, i32) {
    %c0_i32 = arith.constant 0 : i32
    %c0_i32_0 = arith.constant 0 : i32
    return %arg0, %c0_i32 : i32, i32
  }
  func.func @transform_1(%arg0: i32) -> (i32, i32) {
    %c0_i32 = arith.constant 0 : i32
    %c0_i32_0 = arith.constant 0 : i32
    %c0_i32_1 = arith.constant 0 : i32
    return %c0_i32, %c0_i32_0 : i32, i32
  }
  func.func @transform_2(%arg0: i32) -> (i32, i32) {
    %c0_i32 = arith.constant 0 : i32
    %c0_i32_0 = arith.constant 0 : i32
    %c0_i32_1 = arith.constant 0 : i32
    return %c0_i32, %c0_i32_0 : i32, i32
  }
  func.func @transform_3(%arg0: i32) -> (i32, i32) {
    %c0_i32 = arith.constant 0 : i32
    %c0_i32_0 = arith.constant 0 : i32
    return %arg0, %c0_i32 : i32, i32
  }
  func.func @transform_4(%arg0: i32) -> (i32, i32) {
    %c0_i32 = arith.constant 0 : i32
    %c0_i32_0 = arith.constant 0 : i32
    return %arg0, %c0_i32 : i32, i32
  }
}

module attributes {stable_mosaic.version = 11 : i64} {
  func.func @_mlp_kernel(%arg0: i32, %arg1: i32, %arg2: memref<16x32xf32, #tpu.memory_space<vmem>>, %arg3: memref<1x32xf32, #tpu.memory_space<vmem>>, %arg4: memref<32x128xbf16, #tpu.memory_space<vmem>>, %arg5: memref<32x128xbf16, #tpu.memory_space<vmem>>, %arg6: memref<128x32xbf16, #tpu.memory_space<vmem>>, %arg7: memref<1x32xf32, #tpu.memory_space<vmem>>, %arg8: memref<16x32xf32, #tpu.memory_space<vmem>>, %arg9: memref<16x32xbf16, #tpu.memory_space<vmem>>, %arg10: memref<16x32xf32, #tpu.memory_space<vmem>>) attributes {dimension_semantics = [#tpu.dimension_semantics<parallel>, #tpu.dimension_semantics<arbitrary>], iteration_bounds = array<i64: 1, 1>, scalar_prefetch = 0 : i64, scratch_operands = 2 : i64, tpu.core_type = #tpu.core_type<tc>, window_params = [{transform_indices = @transform_0, window_bounds = array<i64: 16, 32>}, {pipeline_mode = #tpu.pipeline_mode<synchronous>, transform_indices = @transform_1, window_bounds = array<i64: 1, 32>}, {transform_indices = @transform_2, window_bounds = array<i64: 32, 128>}, {transform_indices = @transform_3, window_bounds = array<i64: 32, 128>}, {transform_indices = @transform_4, window_bounds = array<i64: 128, 32>}, {pipeline_mode = #tpu.pipeline_mode<synchronous>, transform_indices = @transform_5, window_bounds = array<i64: 1, 32>}, {transform_indices = @transform_6, window_bounds = array<i64: 16, 32>}]} {
    %c0_i32 = arith.constant 0 : i32
    %0 = arith.cmpi eq, %arg1, %c0_i32 : i32
    %1 = arith.extui %0 : i1 to i32
    %c0_i32_0 = arith.constant 0 : i32
    %2 = arith.cmpi ne, %1, %c0_i32_0 : i32
    scf.if %2 {
      %c0_20 = arith.constant 0 : index
      %c0_21 = arith.constant 0 : index
      %31 = vector.load %arg2[%c0_20, %c0_21] : memref<16x32xf32, #tpu.memory_space<vmem>>, vector<16x32xf32>
      %c0_22 = arith.constant 0 : index
      %c0_23 = arith.constant 0 : index
      %32 = vector.load %arg3[%c0_22, %c0_23] : memref<1x32xf32, #tpu.memory_space<vmem>>, vector<1x32xf32>
      %33 = arith.mulf %31, %31 : vector<16x32xf32>
      %cst_24 = arith.constant dense<0.000000e+00> : vector<16xf32>
      %34 = vector.multi_reduction <add>, %33, %cst_24 [1] : vector<16x32xf32> to vector<16xf32>
      %35 = vector.shape_cast %34 : vector<16xf32> to vector<16x1xf32>
      %cst_25 = arith.constant 3.200000e+01 : f32
      %36 = vector.broadcast %cst_25 : f32 to vector<16x1xf32>
      %37 = arith.divf %35, %36 : vector<16x1xf32>
      %cst_26 = arith.constant 9.99999997E-7 : f32
      %38 = vector.broadcast %cst_26 : f32 to vector<16x1xf32>
      %39 = arith.addf %37, %38 : vector<16x1xf32>
      %40 = math.rsqrt %39 : vector<16x1xf32>
      %41 = vector.broadcast %40 : vector<16x1xf32> to vector<16x32xf32>
      %42 = arith.mulf %31, %41 : vector<16x32xf32>
      %cst_27 = arith.constant 1.000000e+00 : f32
      %43 = vector.broadcast %cst_27 : f32 to vector<1x32xf32>
      %44 = arith.addf %43, %32 : vector<1x32xf32>
      %45 = vector.broadcast %44 : vector<1x32xf32> to vector<16x32xf32>
      %46 = arith.mulf %42, %45 : vector<16x32xf32>
      %47 = arith.truncf %46 : vector<16x32xf32> to vector<16x32xbf16>
      %c0_28 = arith.constant 0 : index
      %c0_29 = arith.constant 0 : index
      %48 = vector.load %arg9[%c0_28, %c0_29] : memref<16x32xbf16, #tpu.memory_space<vmem>>, vector<16x32xbf16>
      tpu.vector_store %arg9[%c0_28, %c0_29], %47 {strides = array<i32>} : memref<16x32xbf16, #tpu.memory_space<vmem>>, vector<16x32xbf16>,
      %cst_30 = arith.constant 0.000000e+00 : f32
      %49 = vector.broadcast %cst_30 : f32 to vector<16x32xf32>
      %c0_31 = arith.constant 0 : index
      %c0_32 = arith.constant 0 : index
      %50 = vector.load %arg10[%c0_31, %c0_32] : memref<16x32xf32, #tpu.memory_space<vmem>>, vector<16x32xf32>
      tpu.vector_store %arg10[%c0_31, %c0_32], %49 {strides = array<i32>} : memref<16x32xf32, #tpu.memory_space<vmem>>, vector<16x32xf32>,
    } else {
    }
    %c0 = arith.constant 0 : index
    %c0_1 = arith.constant 0 : index
    %3 = vector.load %arg9[%c0, %c0_1] : memref<16x32xbf16, #tpu.memory_space<vmem>>, vector<16x32xbf16>
    %c0_2 = arith.constant 0 : index
    %c0_3 = arith.constant 0 : index
    %4 = vector.load %arg4[%c0_2, %c0_3] : memref<32x128xbf16, #tpu.memory_space<vmem>>, vector<32x128xbf16>
    %cst = arith.constant dense<0.000000e+00> : vector<16x128xf32>
    %5 = tpu.matmul %3, %4, %cst {dimension_numbers = #tpu.dot_dimension_numbers<[1], [0], [0], [1], [0, 0, 1, 1], [], []>} : vector<16x32xbf16>, vector<32x128xbf16>, vector<16x128xf32> -> vector<16x128xf32>
    %c0_4 = arith.constant 0 : index
    %c0_5 = arith.constant 0 : index
    %6 = vector.load %arg5[%c0_4, %c0_5] : memref<32x128xbf16, #tpu.memory_space<vmem>>, vector<32x128xbf16>
    %cst_6 = arith.constant dense<0.000000e+00> : vector<16x128xf32>
    %7 = tpu.matmul %3, %6, %cst_6 {dimension_numbers = #tpu.dot_dimension_numbers<[1], [0], [0], [1], [0, 0, 1, 1], [], []>} : vector<16x32xbf16>, vector<32x128xbf16>, vector<16x128xf32> -> vector<16x128xf32>
    %cst_7 = arith.constant 5.000000e-01 : f32
    %8 = vector.broadcast %cst_7 : f32 to vector<16x128xf32>
    %9 = arith.mulf %8, %5 : vector<16x128xf32>
    %cst_8 = arith.constant 4.471500e-02 : f32
    %10 = vector.broadcast %cst_8 : f32 to vector<16x128xf32>
    %11 = arith.mulf %10, %5 : vector<16x128xf32>
    %12 = arith.mulf %11, %5 : vector<16x128xf32>
    %13 = arith.mulf %12, %5 : vector<16x128xf32>
    %14 = arith.addf %5, %13 : vector<16x128xf32>
    %cst_9 = arith.constant 0.797884583 : f32
    %15 = vector.broadcast %cst_9 : f32 to vector<16x128xf32>
    %16 = arith.mulf %15, %14 : vector<16x128xf32>
    %17 = math.tanh %16 : vector<16x128xf32>
    %cst_10 = arith.constant 1.000000e+00 : f32
    %18 = vector.broadcast %cst_10 : f32 to vector<16x128xf32>
    %19 = arith.addf %18, %17 : vector<16x128xf32>
    %20 = arith.mulf %9, %19 : vector<16x128xf32>
    %c0_11 = arith.constant 0 : index
    %c0_12 = arith.constant 0 : index
    %21 = vector.load %arg10[%c0_11, %c0_12] : memref<16x32xf32, #tpu.memory_space<vmem>>, vector<16x32xf32>
    %22 = arith.mulf %20, %7 : vector<16x128xf32>
    %23 = arith.truncf %22 : vector<16x128xf32> to vector<16x128xbf16>
    %c0_13 = arith.constant 0 : index
    %c0_14 = arith.constant 0 : index
    %24 = vector.load %arg6[%c0_13, %c0_14] : memref<128x32xbf16, #tpu.memory_space<vmem>>, vector<128x32xbf16>
    %cst_15 = arith.constant dense<0.000000e+00> : vector<16x32xf32>
    %25 = tpu.matmul %23, %24, %cst_15 {dimension_numbers = #tpu.dot_dimension_numbers<[1], [0], [0], [1], [0, 0, 1, 1], [], []>} : vector<16x128xbf16>, vector<128x32xbf16>, vector<16x32xf32> -> vector<16x32xf32>
    %26 = arith.addf %21, %25 : vector<16x32xf32>
    %c0_16 = arith.constant 0 : index
    %c0_17 = arith.constant 0 : index
    %27 = vector.load %arg10[%c0_16, %c0_17] : memref<16x32xf32, #tpu.memory_space<vmem>>, vector<16x32xf32>
    tpu.vector_store %arg10[%c0_16, %c0_17], %26 {strides = array<i32>} : memref<16x32xf32, #tpu.memory_space<vmem>>, vector<16x32xf32>,
    %c0_i32_18 = arith.constant 0 : i32
    %28 = arith.cmpi eq, %arg1, %c0_i32_18 : i32
    %29 = arith.extui %28 : i1 to i32
    %c0_i32_19 = arith.constant 0 : i32
    %30 = arith.cmpi ne, %29, %c0_i32_19 : i32
    scf.if %30 {
      %c0_20 = arith.constant 0 : index
      %c0_21 = arith.constant 0 : index
      %31 = vector.load %arg2[%c0_20, %c0_21] : memref<16x32xf32, #tpu.memory_space<vmem>>, vector<16x32xf32>
      %c0_22 = arith.constant 0 : index
      %c0_23 = arith.constant 0 : index
      %32 = vector.load %arg10[%c0_22, %c0_23] : memref<16x32xf32, #tpu.memory_space<vmem>>, vector<16x32xf32>
      %c0_24 = arith.constant 0 : index
      %c0_25 = arith.constant 0 : index
      %33 = vector.load %arg7[%c0_24, %c0_25] : memref<1x32xf32, #tpu.memory_space<vmem>>, vector<1x32xf32>
      %34 = arith.mulf %32, %32 : vector<16x32xf32>
      %cst_26 = arith.constant dense<0.000000e+00> : vector<16xf32>
      %35 = vector.multi_reduction <add>, %34, %cst_26 [1] : vector<16x32xf32> to vector<16xf32>
      %36 = vector.shape_cast %35 : vector<16xf32> to vector<16x1xf32>
      %cst_27 = arith.constant 3.200000e+01 : f32
      %37 = vector.broadcast %cst_27 : f32 to vector<16x1xf32>
      %38 = arith.divf %36, %37 : vector<16x1xf32>
      %cst_28 = arith.constant 9.99999997E-7 : f32
      %39 = vector.broadcast %cst_28 : f32 to vector<16x1xf32>
      %40 = arith.addf %38, %39 : vector<16x1xf32>
      %41 = math.rsqrt %40 : vector<16x1xf32>
      %42 = vector.broadcast %41 : vector<16x1xf32> to vector<16x32xf32>
      %43 = arith.mulf %32, %42 : vector<16x32xf32>
      %cst_29 = arith.constant 1.000000e+00 : f32
      %44 = vector.broadcast %cst_29 : f32 to vector<1x32xf32>
      %45 = arith.addf %44, %33 : vector<1x32xf32>
      %46 = vector.broadcast %45 : vector<1x32xf32> to vector<16x32xf32>
      %47 = arith.mulf %43, %46 : vector<16x32xf32>
      %48 = arith.addf %31, %47 : vector<16x32xf32>
      %c0_30 = arith.constant 0 : index
      %c0_31 = arith.constant 0 : index
      %49 = vector.load %arg8[%c0_30, %c0_31] : memref<16x32xf32, #tpu.memory_space<vmem>>, vector<16x32xf32>
      tpu.vector_store %arg8[%c0_30, %c0_31], %48 {strides = array<i32>} : memref<16x32xf32, #tpu.memory_space<vmem>>, vector<16x32xf32>,
    } else {
    }
    return
  }
  func.func @transform_0(%arg0: i32, %arg1: i32) -> (i32, i32) {
    %c0_i32 = arith.constant 0 : i32
    %c0_i32_0 = arith.constant 0 : i32
    return %arg0, %c0_i32 : i32, i32
  }
  func.func @transform_1(%arg0: i32, %arg1: i32) -> (i32, i32) {
    %c0_i32 = arith.constant 0 : i32
    %c0_i32_0 = arith.constant 0 : i32
    %c0_i32_1 = arith.constant 0 : i32
    return %c0_i32, %c0_i32_0 : i32, i32
  }
  func.func @transform_2(%arg0: i32, %arg1: i32) -> (i32, i32) {
    %c0_i32 = arith.constant 0 : i32
    %c0_i32_0 = arith.constant 0 : i32
    return %c0_i32, %arg1 : i32, i32
  }
  func.func @transform_3(%arg0: i32, %arg1: i32) -> (i32, i32) {
    %c0_i32 = arith.constant 0 : i32
    %c0_i32_0 = arith.constant 0 : i32
    return %c0_i32, %arg1 : i32, i32
  }
  func.func @transform_4(%arg0: i32, %arg1: i32) -> (i32, i32) {
    %c0_i32 = arith.constant 0 : i32
    %c0_i32_0 = arith.constant 0 : i32
    return %arg1, %c0_i32 : i32, i32
  }
  func.func @transform_5(%arg0: i32, %arg1: i32) -> (i32, i32) {
    %c0_i32 = arith.constant 0 : i32
    %c0_i32_0 = arith.constant 0 : i32
    %c0_i32_1 = arith.constant 0 : i32
    return %c0_i32, %c0_i32_0 : i32, i32
  }
  func.func @transform_6(%arg0: i32, %arg1: i32) -> (i32, i32) {
    %c0_i32 = arith.constant 0 : i32
    %c0_i32_0 = arith.constant 0 : i32
    return %arg0, %c0_i32 : i32, i32
  }
}

module attributes {stable_mosaic.version = 11 : i64} {
  func.func @_logits_lse_kernel(%arg0: i32, %arg1: i32, %arg2: memref<16x32xf32, #tpu.memory_space<vmem>>, %arg3: memref<32x64xbf16, #tpu.memory_space<vmem>>, %arg4: memref<1x64xf32, #tpu.memory_space<vmem>>, %arg5: memref<16x64xf32, #tpu.memory_space<vmem>>, %arg6: memref<16x1xf32, #tpu.memory_space<vmem>>, %arg7: memref<16x1xf32, #tpu.memory_space<vmem>>, %arg8: memref<16x1xf32, #tpu.memory_space<vmem>>) attributes {dimension_semantics = [#tpu.dimension_semantics<parallel>, #tpu.dimension_semantics<arbitrary>], iteration_bounds = array<i64: 1, 1>, scalar_prefetch = 0 : i64, scratch_operands = 2 : i64, tpu.core_type = #tpu.core_type<tc>, window_params = [{transform_indices = @transform_0, window_bounds = array<i64: 16, 32>}, {transform_indices = @transform_1, window_bounds = array<i64: 32, 64>}, {transform_indices = @transform_2, window_bounds = array<i64: 1, 64>}, {transform_indices = @transform_3, window_bounds = array<i64: 16, 64>}, {transform_indices = @transform_4, window_bounds = array<i64: 16, 1>}]} {
    %c0_i32 = arith.constant 0 : i32
    %0 = arith.cmpi eq, %arg1, %c0_i32 : i32
    %1 = arith.extui %0 : i1 to i32
    %c0_i32_0 = arith.constant 0 : i32
    %2 = arith.cmpi ne, %1, %c0_i32_0 : i32
    scf.if %2 {
      %cst_20 = arith.constant -1.000000e+30 : f32
      %30 = vector.broadcast %cst_20 : f32 to vector<16x1xf32>
      %c0_21 = arith.constant 0 : index
      %c0_22 = arith.constant 0 : index
      %31 = vector.load %arg7[%c0_21, %c0_22] : memref<16x1xf32, #tpu.memory_space<vmem>>, vector<16x1xf32>
      tpu.vector_store %arg7[%c0_21, %c0_22], %30 {strides = array<i32>} : memref<16x1xf32, #tpu.memory_space<vmem>>, vector<16x1xf32>,
      %cst_23 = arith.constant 0.000000e+00 : f32
      %32 = vector.broadcast %cst_23 : f32 to vector<16x1xf32>
      %c0_24 = arith.constant 0 : index
      %c0_25 = arith.constant 0 : index
      %33 = vector.load %arg8[%c0_24, %c0_25] : memref<16x1xf32, #tpu.memory_space<vmem>>, vector<16x1xf32>
      tpu.vector_store %arg8[%c0_24, %c0_25], %32 {strides = array<i32>} : memref<16x1xf32, #tpu.memory_space<vmem>>, vector<16x1xf32>,
    } else {
    }
    %c0 = arith.constant 0 : index
    %c0_1 = arith.constant 0 : index
    %3 = vector.load %arg2[%c0, %c0_1] : memref<16x32xf32, #tpu.memory_space<vmem>>, vector<16x32xf32>
    %4 = arith.truncf %3 : vector<16x32xf32> to vector<16x32xbf16>
    %c0_2 = arith.constant 0 : index
    %c0_3 = arith.constant 0 : index
    %5 = vector.load %arg3[%c0_2, %c0_3] : memref<32x64xbf16, #tpu.memory_space<vmem>>, vector<32x64xbf16>
    %cst = arith.constant dense<0.000000e+00> : vector<16x64xf32>
    %6 = tpu.matmul %4, %5, %cst {dimension_numbers = #tpu.dot_dimension_numbers<[1], [0], [0], [1], [0, 0, 1, 1], [], []>} : vector<16x32xbf16>, vector<32x64xbf16>, vector<16x64xf32> -> vector<16x64xf32>
    %c0_4 = arith.constant 0 : index
    %c0_5 = arith.constant 0 : index
    %7 = vector.load %arg4[%c0_4, %c0_5] : memref<1x64xf32, #tpu.memory_space<vmem>>, vector<1x64xf32>
    %8 = vector.broadcast %7 : vector<1x64xf32> to vector<16x64xf32>
    %9 = arith.addf %6, %8 : vector<16x64xf32>
    %c0_6 = arith.constant 0 : index
    %c0_7 = arith.constant 0 : index
    %10 = vector.load %arg5[%c0_6, %c0_7] : memref<16x64xf32, #tpu.memory_space<vmem>>, vector<16x64xf32>
    tpu.vector_store %arg5[%c0_6, %c0_7], %9 {strides = array<i32>} : memref<16x64xf32, #tpu.memory_space<vmem>>, vector<16x64xf32>,
    %c0_8 = arith.constant 0 : index
    %c0_9 = arith.constant 0 : index
    %11 = vector.load %arg7[%c0_8, %c0_9] : memref<16x1xf32, #tpu.memory_space<vmem>>, vector<16x1xf32>
    %cst_10 = arith.constant dense<0xFF800000> : vector<16xf32>
    %12 = vector.multi_reduction <maximumf>, %9, %cst_10 [1] : vector<16x64xf32> to vector<16xf32>
    %13 = vector.shape_cast %12 : vector<16xf32> to vector<16x1xf32>
    %14 = arith.maximumf %11, %13 : vector<16x1xf32>
    %c0_11 = arith.constant 0 : index
    %c0_12 = arith.constant 0 : index
    %15 = vector.load %arg8[%c0_11, %c0_12] : memref<16x1xf32, #tpu.memory_space<vmem>>, vector<16x1xf32>
    %16 = arith.subf %11, %14 : vector<16x1xf32>
    %17 = math.exp %16 : vector<16x1xf32>
    %18 = arith.mulf %15, %17 : vector<16x1xf32>
    %19 = vector.broadcast %14 : vector<16x1xf32> to vector<16x64xf32>
    %20 = arith.subf %9, %19 : vector<16x64xf32>
    %21 = math.exp %20 : vector<16x64xf32>
    %cst_13 = arith.constant dense<0.000000e+00> : vector<16xf32>
    %22 = vector.multi_reduction <add>, %21, %cst_13 [1] : vector<16x64xf32> to vector<16xf32>
    %23 = vector.shape_cast %22 : vector<16xf32> to vector<16x1xf32>
    %24 = arith.addf %18, %23 : vector<16x1xf32>
    %c0_14 = arith.constant 0 : index
    %c0_15 = arith.constant 0 : index
    %25 = vector.load %arg8[%c0_14, %c0_15] : memref<16x1xf32, #tpu.memory_space<vmem>>, vector<16x1xf32>
    tpu.vector_store %arg8[%c0_14, %c0_15], %24 {strides = array<i32>} : memref<16x1xf32, #tpu.memory_space<vmem>>, vector<16x1xf32>,
    %c0_16 = arith.constant 0 : index
    %c0_17 = arith.constant 0 : index
    %26 = vector.load %arg7[%c0_16, %c0_17] : memref<16x1xf32, #tpu.memory_space<vmem>>, vector<16x1xf32>
    tpu.vector_store %arg7[%c0_16, %c0_17], %14 {strides = array<i32>} : memref<16x1xf32, #tpu.memory_space<vmem>>, vector<16x1xf32>,
    %c0_i32_18 = arith.constant 0 : i32
    %27 = arith.cmpi eq, %arg1, %c0_i32_18 : i32
    %28 = arith.extui %27 : i1 to i32
    %c0_i32_19 = arith.constant 0 : i32
    %29 = arith.cmpi ne, %28, %c0_i32_19 : i32
    scf.if %29 {
      %c0_20 = arith.constant 0 : index
      %c0_21 = arith.constant 0 : index
      %30 = vector.load %arg7[%c0_20, %c0_21] : memref<16x1xf32, #tpu.memory_space<vmem>>, vector<16x1xf32>
      %c0_22 = arith.constant 0 : index
      %c0_23 = arith.constant 0 : index
      %31 = vector.load %arg8[%c0_22, %c0_23] : memref<16x1xf32, #tpu.memory_space<vmem>>, vector<16x1xf32>
      %32 = math.log %31 : vector<16x1xf32>
      %33 = arith.addf %30, %32 : vector<16x1xf32>
      %c0_24 = arith.constant 0 : index
      %c0_25 = arith.constant 0 : index
      %34 = vector.load %arg6[%c0_24, %c0_25] : memref<16x1xf32, #tpu.memory_space<vmem>>, vector<16x1xf32>
      tpu.vector_store %arg6[%c0_24, %c0_25], %33 {strides = array<i32>} : memref<16x1xf32, #tpu.memory_space<vmem>>, vector<16x1xf32>,
    } else {
    }
    return
  }
  func.func @transform_0(%arg0: i32, %arg1: i32) -> (i32, i32) {
    %c0_i32 = arith.constant 0 : i32
    %c0_i32_0 = arith.constant 0 : i32
    return %arg0, %c0_i32 : i32, i32
  }
  func.func @transform_1(%arg0: i32, %arg1: i32) -> (i32, i32) {
    %c0_i32 = arith.constant 0 : i32
    %c0_i32_0 = arith.constant 0 : i32
    return %c0_i32, %arg1 : i32, i32
  }
  func.func @transform_2(%arg0: i32, %arg1: i32) -> (i32, i32) {
    %c0_i32 = arith.constant 0 : i32
    %c0_i32_0 = arith.constant 0 : i32
    return %c0_i32, %arg1 : i32, i32
  }
  func.func @transform_3(%arg0: i32, %arg1: i32) -> (i32, i32) {
    %c0_i32 = arith.constant 0 : i32
    return %arg0, %arg1 : i32, i32
  }
  func.func @transform_4(%arg0: i32, %arg1: i32) -> (i32, i32) {
    %c0_i32 = arith.constant 0 : i32
    %c0_i32_0 = arith.constant 0 : i32
    return %arg0, %c0_i32 : i32, i32
  }
}

module attributes {stable_mosaic.version = 11 : i64} {
  func.func @_sub_lse_kernel(%arg0: i32, %arg1: i32, %arg2: memref<16x64xf32, #tpu.memory_space<vmem>>, %arg3: memref<16x1xf32, #tpu.memory_space<vmem>>, %arg4: memref<16x64xf32, #tpu.memory_space<vmem>>) attributes {dimension_semantics = [#tpu.dimension_semantics<parallel>, #tpu.dimension_semantics<parallel>], iteration_bounds = array<i64: 1, 1>, scalar_prefetch = 0 : i64, scratch_operands = 0 : i64, tpu.core_type = #tpu.core_type<tc>, window_params = [{transform_indices = @transform_0, window_bounds = array<i64: 16, 64>}, {transform_indices = @transform_1, window_bounds = array<i64: 16, 1>}, {transform_indices = @transform_2, window_bounds = array<i64: 16, 64>}]} {
    %c0 = arith.constant 0 : index
    %c0_0 = arith.constant 0 : index
    %0 = vector.load %arg2[%c0, %c0_0] : memref<16x64xf32, #tpu.memory_space<vmem>>, vector<16x64xf32>
    %c0_1 = arith.constant 0 : index
    %c0_2 = arith.constant 0 : index
    %1 = vector.load %arg3[%c0_1, %c0_2] : memref<16x1xf32, #tpu.memory_space<vmem>>, vector<16x1xf32>
    %2 = vector.broadcast %1 : vector<16x1xf32> to vector<16x64xf32>
    %3 = arith.subf %0, %2 : vector<16x64xf32>
    %c0_3 = arith.constant 0 : index
    %c0_4 = arith.constant 0 : index
    %4 = vector.load %arg4[%c0_3, %c0_4] : memref<16x64xf32, #tpu.memory_space<vmem>>, vector<16x64xf32>
    tpu.vector_store %arg4[%c0_3, %c0_4], %3 {strides = array<i32>} : memref<16x64xf32, #tpu.memory_space<vmem>>, vector<16x64xf32>,
    return
  }
  func.func @transform_0(%arg0: i32, %arg1: i32) -> (i32, i32) {
    %c0_i32 = arith.constant 0 : i32
    return %arg0, %arg1 : i32, i32
  }
  func.func @transform_1(%arg0: i32, %arg1: i32) -> (i32, i32) {
    %c0_i32 = arith.constant 0 : i32
    %c0_i32_0 = arith.constant 0 : i32
    return %arg0, %c0_i32 : i32, i32
  }
  func.func @transform_2(%arg0: i32, %arg1: i32) -> (i32, i32) {
    %c0_i32 = arith.constant 0 : i32
    return %arg0, %arg1 : i32, i32
  }
}

</mosaic_0001>

<llo_original>
// kernel: forward.29
$region0: #{forward.29}
  #allocation0 [shape = 'u32[]', space=smem, size = 0x4, offset = 0x4, fixed_abs, tag = 'smem constant byte address 0x4 - core index']
  #allocation1 [shape = 'u32[144,128]{1,0:T(1,128)}', space=vmem, size = 0x12000, scoped, tag = 'internal scratch']
  %s0 = inlined_call_operand.vmem [shape: bf16[16,32], index: 0, kind: input, shape index: {}]
  %s1 = inlined_call_operand.vmem [shape: bf16[32,32], index: 1, kind: input, shape index: {}]
  %s2 = inlined_call_operand.vmem [shape: f32[1,32], index: 2, kind: input, shape index: {}]
  %s3 = inlined_call_operand.vmem [shape: f32[16,32], index: 3, kind: input, shape index: {}]
  %s4 = inlined_call_operand.vmem [shape: f32[16,32], index: 4, kind: output, shape index: {}]
  %s5 = sld [smem:[#allocation0]]
  $region26: #{forward.29} parent=0
    _
  %s7 = ssub.s32 1, %s5
  %s8 = scalar_select 0, %s7, %s5
  // Predicated region
  $region2: #{forward.29} parent=0 // pred_check
    _
  $region3: #{forward.29} parent=0 // pred_check_branch
    %10 = sbr.rel (0) target = $region5
  $region4: #{forward.29} parent=0 // pred_region
    _
  $region5: #{forward.29} parent=0 // pred_fallthru
    _
  // Predicated region
  $region6: #{forward.29} parent=0 // pred_check
    _
  $region7: #{forward.29} parent=0 // pred_check_branch
    %12 = sbr.rel (0) target = $region9
  $region8: #{forward.29} parent=0 // pred_region
    _
  $region9: #{forward.29} parent=0 // pred_fallthru
    _
  // Predicated region
  $region10: #{forward.29} parent=0 // pred_check
    _
  $region11: #{forward.29} parent=0 // pred_check_branch
    %14 = sbr.rel (0) target = $region13
  $region12: #{forward.29} parent=0 // pred_region
    _
  $region13: #{forward.29} parent=0 // pred_fallthru
    _
  // Predicated region
  $region14: #{forward.29} parent=0 // pred_check
    _
  $region15: #{forward.29} parent=0 // pred_check_branch
    %16 = sbr.rel (0) target = $region17
  $region16: #{forward.29} parent=0 // pred_region
    _
  $region17: #{forward.29} parent=0 // pred_fallthru
    _
  %v18 = vld [vmem:[%s0] sm:$0xf]
  %v19 = vld [vmem:[%s0 + $0x4] sm:$0xf]
  %v20 = vld [vmem:[%s1] sm:$0xf]
  %v21 = vld [vmem:[%s1 + $0x4] sm:$0xf]
  %v22 = vld [vmem:[%s1 + $0x8] sm:$0xf]
  %v23 = vld [vmem:[%s1 + $0xc] sm:$0xf]
  %v26 = vunpack.c.l.b16 %v18
  %v27 = vunpack.c.l.b16 %v19
  %v28 = vpack.c.b16 %v27, %v26
  %v33 = vunpack.c.l.b16 %v20
  %v34 = vunpack.c.l.b16 %v21
  %v35 = vunpack.c.l.b16 %v22
  %v36 = vunpack.c.l.b16 %v23
  %v37 = vpack.c.b16 %v34, %v33
  %v38 = vpack.c.b16 %v36, %v35
  %vm41 = vcmask 261120
  %v43 = vsel %vm41, %v28, 0
  %45 = vmatprep.subr.bf16.mxu0 0
  %46 = vmatpush1.bf16.msra.mxu0 %v37
  %47 = vmatprep.subr.bf16.mxu0 0
  %48 = vmatpush1.bf16.msra.mxu0 %v38
  %49 = vmatprep.subr.bf16.mxu0 0
  %50 = vmatpush1.bf16.msra.mxu0 0
  %51 = vmatprep.subr.bf16.mxu0 0
  %52 = vmatpush1.bf16.msra.mxu0 0
  %53 = vmatprep.subr.bf16.mxu0 0
  %54 = vmatpush1.bf16.msra.mxu0 0
  %55 = vmatprep.subr.bf16.mxu0 0
  %56 = vmatpush1.bf16.msra.mxu0 0
  %57 = vmatprep.subr.bf16.mxu0 0
  %58 = vmatpush1.bf16.msra.mxu0 0
  %59 = vmatprep.subr.bf16.mxu0 0
  %60 = vmatpush1.bf16.msra.mxu0 0
  %61 = vmatprep.subr.bf16.mxu0 0
  %62 = vmatpush1.bf16.msra.mxu0 0
  %63 = vmatprep.subr.bf16.mxu0 0
  %64 = vmatpush1.bf16.msra.mxu0 0
  %65 = vmatprep.subr.bf16.mxu0 0
  %66 = vmatpush1.bf16.msra.mxu0 0
  %67 = vmatprep.subr.bf16.mxu0 0
  %68 = vmatpush1.bf16.msra.mxu0 0
  %69 = vmatprep.subr.bf16.mxu0 0
  %70 = vmatpush1.bf16.msra.mxu0 0
  %71 = vmatprep.subr.bf16.mxu0 0
  %72 = vmatpush1.bf16.msra.mxu0 0
  %73 = vmatprep.subr.bf16.mxu0 0
  %74 = vmatpush1.bf16.msra.mxu0 0
  %75 = vmatprep.subr.bf16.mxu0 0
  %76 = vmatpush1.bf16.msra.mxu0 0
  %77 = vmatprep.mubr.bf16.mxu0 0
  %78 = vmatmul.mubr.bf16.gmra.mrb[0].mxu0 %v43
  %v79 = vpop.f32.mrb[0].mxu0
  %v80 = vadd.f32 0.0, %v79
  %v81 = vpop.f32.mrb[0].mxu0
  %v82 = vpop.f32.mrb[0].mxu0
  %v83 = vadd.f32 0.0, %v82
  %v84 = vpop.f32.mrb[0].mxu0
  %85 = vdwg.mxu0
  %v86 = vld [vmem:[%s3] sm:$0xff]
  %v87 = vld [vmem:[%s3 + $0x8] sm:$0xff]
  %v88 = vld [vmem:[%s2] sm:$0x1]
  %v89 = vmul.f32 %v80, %v80
  %v90 = vmul.f32 %v83, %v83
  %v91 = vsel %vm41, %v89, 0.0
  %92 = vadd.xlane.f32.xlu0 %v91
  %v93 = vpop.xlane.xlu0 %92
  %v94 = vsel %vm41, %v90, 0.0
  %95 = vadd.xlane.f32.xlu0 %v94
  %v96 = vpop.xlane.xlu0 %95
  %v97 = vrcp.pop 32.0
  %v98 = vmul.f32 %v93, %v97
  %v99 = vmul.f32 %v96, %v97
  %v100 = vadd.f32 %v98, 1e-06
  %v101 = vadd.f32 %v99, 1e-06
  %v102 = vrsqrt.pop %v100
  %v103 = vrsqrt.pop %v101
  %v104 = vmul.f32 %v80, %v102
  %v105 = vmul.f32 %v83, %v103
  %v106 = vadd.f32 %v88, 1.0
  %v108 = vlaneseq
  %v109 = vshrl.u32 %v108, 7
  %v110 = vsub.s32 0, %v109
  %v111 = vrot.slane %v106, %v110
  %v113 = vmul.f32 %v104, %v111
  %v114 = vmul.f32 %v105, %v111
  %v115 = vadd.f32 %v86, %v113
  %v116 = vadd.f32 %v87, %v114
  %117 = vst.msk [vmem:[%s4] sm:$0xff] %vm41, %v115
  %118 = vst.msk [vmem:[%s4 + $0x8] sm:$0xff] %vm41, %v116
  // Predicated region
  $region18: #{forward.29} parent=0 // pred_check
    _
  $region19: #{forward.29} parent=0 // pred_check_branch
    %120 = sbr.rel (0) target = $region21
  $region20: #{forward.29} parent=0 // pred_region
    _
  $region21: #{forward.29} parent=0 // pred_fallthru
    _
  // Predicated region
  $region22: #{forward.29} parent=0 // pred_check
    _
  $region23: #{forward.29} parent=0 // pred_check_branch
    %122 = sbr.rel (0) target = $region25
  $region24: #{forward.29} parent=0 // pred_region
    _
  $region25: #{forward.29} parent=0 // pred_fallthru
    _

// kernel: forward.28
$region0: #{forward.28}
  #allocation0 [shape = 'u32[]', space=smem, size = 0x4, offset = 0x4, fixed_abs, tag = 'smem constant byte address 0x4 - core index']
  #allocation1 [shape = 'u32[144,128]{1,0:T(1,128)}', space=vmem, size = 0x12000, scoped, tag = 'internal scratch']
  #allocation2 [shape = 'f32[4,8,1]{2,1,0:T(8,128)}', space=vmem, size = 0x4000, scoped, tag = 'scratch operand']
  #allocation3 [shape = 'f32[4,8,1]{2,1,0:T(8,128)}', space=vmem, size = 0x4000, scoped, tag = 'scratch operand']
  #allocation4 [shape = 'f32[4,8,8]{2,1,0:T(8,128)}', space=vmem, size = 0x4000, scoped, tag = 'scratch operand']
  %s0 = inlined_call_operand.vmem [shape: bf16[3,2,8,32], index: 0, kind: input, shape index: {}, may-alias: {0,1,2}]
  %s1 = inlined_call_operand.vmem [shape: bf16[3,2,8,32], index: 1, kind: input, shape index: {}, may-alias: {0,1,2}]
  %s2 = inlined_call_operand.vmem [shape: bf16[3,2,8,32], index: 2, kind: input, shape index: {}, may-alias: {0,1,2}]
  %s3 = inlined_call_operand.vmem [shape: bf16[2,8,32], index: 3, kind: output, shape index: {}]
  %s4 = sld [smem:[#allocation0]]
  $region57: #{forward.28} parent=0
    _
  %s6 = ssub.s32 1, %s4
  %s7 = scalar_select 0, %s6, %s4
  loop: start=0, step=1, limit=4
  $region2: #{forward.28} parent=0 // loop_pre_header
    _
  $region3: #{forward.28} parent=0 // loop_header
    %s9 = sphi 0, %s13
    %p10 = scmp.ge.s32.totalorder %s9, 4
    %s16 = sphi 0, %s35
    %s17 = sphi 0, %s31
    %s18 = sphi 0, %s27
    %s19 = sphi 0, %s16
    %s20 = sphi 0, %s17
    %s21 = sphi 0, %s18
    %s22 = sphi 0, %s19
    %s23 = sphi 0, %s20
    %s24 = sphi 0, %s21
    %s40 = sphi 0, %s42
    %s43 = sphi 0, %s40
    %s44 = sphi 0, %s43
    %s60 = sphi 0, %s44
    %s68 = sphi 0, %s70
    %s71 = sphi 0, %s68
    %s72 = sphi 0, %s71
    %s88 = sphi 0, %s72
    %s96 = sphi 0, %s98
    %s99 = sphi 0, %s96
    %s100 = sphi 0, %s99
    %s116 = sphi 0, %s100
    %s124 = sphi 0, %s126
    %s127 = sphi 0, %s124
    %s128 = sphi 0, %s127
    %s144 = sphi 0, %s128
  $region4: #{forward.28} parent=0 // loop_header_branch
    %12 = sbr.rel (%p10) target = $region8
  $region5: #{forward.28} parent=0 // loop_body
    %s14 = ssub.s32 %s9, 1
    %s15 = ssub.s32 %s9, 2
    %s25 = sadd.s32 1, %s18
    %p26 = scmp.ge.s32.totalorder %s25, 1
    %s27 = scalar_select %p26, 0, %s25
    %s28 = sadd.s32 1, %s17
    %s29 = scalar_select %p26, %s28, %s17
    %p30 = scmp.ge.s32.totalorder %s29, 1
    %s31 = scalar_select %p30, 0, %s29
    %s32 = sadd.s32 1, %s16
    %s33 = scalar_select %p30, %s32, %s16
    %p34 = scmp.ge.s32.totalorder %s33, 2
    %s35 = scalar_select %p34, 0, %s33
    %s36 = ssub.s32 %s16, %s35
    %s37 = ssub.s32 %s17, %s31
    %s38 = sor.u32 %s36, %s37
    %p39 = scmp.eq.s32.totalorder %s38, 0
    %s41 = sadd.s32 %s40, 1
    %s42 = scalar_select %p39, %s40, %s41
    %p45 = pneg %p39
    %p46 = scmp.eq.s32.totalorder %s9, 1
    %p47 = por %p45, %p46
    %p48 = scmp.ne.s32.totalorder %s40, %s43
    %p49 = scmp.eq.s32.totalorder %s9, 0
    %p50 = por %p48, %p49
    %p51 = scmp.ne.s32.totalorder %s40, %s43
    %p52 = scmp.eq.s32.totalorder %s14, 1
    %p53 = por %p51, %p52
    %p54 = scmp.ne.s32.totalorder %s43, %s44
    %p55 = scmp.eq.s32.totalorder %s14, 0
    %p56 = por %p54, %p55
    %p57 = scmp.ne.s32.totalorder %s43, %s44
    %p58 = scmp.eq.s32.totalorder %s15, 1
    %p59 = por %p57, %p58
    %p61 = scmp.ne.s32.totalorder %s44, %s60
    %p62 = scmp.eq.s32.totalorder %s15, 0
    %p63 = por %p61, %p62
    %s64 = ssub.s32 %s16, %s35
    %s65 = ssub.s32 %s18, %s27
    %s66 = sor.u32 %s64, %s65
    %p67 = scmp.eq.s32.totalorder %s66, 0
    %s69 = sadd.s32 %s68, 1
    %s70 = scalar_select %p67, %s68, %s69
    %p73 = pneg %p67
    %p74 = scmp.eq.s32.totalorder %s9, 1
    %p75 = por %p73, %p74
    %p76 = scmp.ne.s32.totalorder %s68, %s71
    %p77 = scmp.eq.s32.totalorder %s9, 0
    %p78 = por %p76, %p77
    %p79 = scmp.ne.s32.totalorder %s68, %s71
    %p80 = scmp.eq.s32.totalorder %s14, 1
    %p81 = por %p79, %p80
    %p82 = scmp.ne.s32.totalorder %s71, %s72
    %p83 = scmp.eq.s32.totalorder %s14, 0
    %p84 = por %p82, %p83
    %p85 = scmp.ne.s32.totalorder %s71, %s72
    %p86 = scmp.eq.s32.totalorder %s15, 1
    %p87 = por %p85, %p86
    %p89 = scmp.ne.s32.totalorder %s72, %s88
    %p90 = scmp.eq.s32.totalorder %s15, 0
    %p91 = por %p89, %p90
    %s92 = ssub.s32 %s16, %s35
    %s93 = ssub.s32 %s18, %s27
    %s94 = sor.u32 %s92, %s93
    %p95 = scmp.eq.s32.totalorder %s94, 0
    %s97 = sadd.s32 %s96, 1
    %s98 = scalar_select %p95, %s96, %s97
    %p101 = pneg %p95
    %p102 = scmp.eq.s32.totalorder %s9, 1
    %p103 = por %p101, %p102
    %p104 = scmp.ne.s32.totalorder %s96, %s99
    %p105 = scmp.eq.s32.totalorder %s9, 0
    %p106 = por %p104, %p105
    %p107 = scmp.ne.s32.totalorder %s96, %s99
    %p108 = scmp.eq.s32.totalorder %s14, 1
    %p109 = por %p107, %p108
    %p110 = scmp.ne.s32.totalorder %s99, %s100
    %p111 = scmp.eq.s32.totalorder %s14, 0
    %p112 = por %p110, %p111
    %p113 = scmp.ne.s32.totalorder %s99, %s100
    %p114 = scmp.eq.s32.totalorder %s15, 1
    %p115 = por %p113, %p114
    %p117 = scmp.ne.s32.totalorder %s100, %s116
    %p118 = scmp.eq.s32.totalorder %s15, 0
    %p119 = por %p117, %p118
    %s120 = ssub.s32 %s16, %s35
    %s121 = ssub.s32 %s17, %s31
    %s122 = sor.u32 %s120, %s121
    %p123 = scmp.eq.s32.totalorder %s122, 0
    %s125 = sadd.s32 %s124, 1
    %s126 = scalar_select %p123, %s124, %s125
    %p129 = pneg %p123
    %p130 = scmp.eq.s32.totalorder %s9, 1
    %p131 = por %p129, %p130
    %p132 = scmp.ne.s32.totalorder %s124, %s127
    %p133 = scmp.eq.s32.totalorder %s9, 0
    %p134 = por %p132, %p133
    %p135 = scmp.ne.s32.totalorder %s124, %s127
    %p136 = scmp.eq.s32.totalorder %s14, 1
    %p137 = por %p135, %p136
    %p138 = scmp.ne.s32.totalorder %s127, %s128
    %p139 = scmp.eq.s32.totalorder %s14, 0
    %p140 = por %p138, %p139
    %p141 = scmp.ne.s32.totalorder %s127, %s128
    %p142 = scmp.eq.s32.totalorder %s15, 1
    %p143 = por %p141, %p142
    %p145 = scmp.ne.s32.totalorder %s128, %s144
    %p146 = scmp.eq.s32.totalorder %s15, 0
    %p147 = por %p145, %p146
    %p148 = scmp.le.s32.totalorder 1, %s9
    %p149 = scmp.lt.s32.totalorder %s9, 3
    %p150 = pnand %p148, %p149
    %p151 = pneg %p150
    // Predicated region
    $region9: #{forward.28} parent=5 // pred_check
      _
    $region10: #{forward.28} parent=5 // pred_check_branch
      %153 = sbr.rel (%p150) target = $region12
    $region11: #{forward.28} parent=5 // pred_region
      %s154 = ssub.s32 %s9, 1
    $region12: #{forward.28} parent=5 // pred_fallthru
      _
    %p155 = scmp.lt.s32.totalorder %s9, 2
    // Predicated region
    $region13: #{forward.28} parent=5 // pred_check
      %p156 = pneg %p155
    $region14: #{forward.28} parent=5 // pred_check_branch
      %158 = sbr.rel (%p156) target = $region16
    $region15: #{forward.28} parent=5 // pred_region
      // Predicated region
      $region17: #{forward.28} parent=15 // pred_check
        %p159 = pneg %p50
      $region18: #{forward.28} parent=15 // pred_check_branch
        %161 = sbr.rel (%p159) target = $region20
      $region19: #{forward.28} parent=15 // pred_region
        %p162 = scmp.lt.s32.totalorder %s16, 1
        %s163 = scalar_select %p162, %s16, 1
        %p164 = scmp.lt.s32.totalorder %s17, 0
        %s165 = scalar_select %p164, %s17, 0
        %s166 = sadd.s32 %s165, %s163
        %s167 = smul.addr %s166, 4
        %s168 = scalar_lea.vmem %s0, %s167
      $region20: #{forward.28} parent=15 // pred_fallthru
        _
      // Predicated region
      $region21: #{forward.28} parent=15 // pred_check
        %p169 = pneg %p78
      $region22: #{forward.28} parent=15 // pred_check_branch
        %171 = sbr.rel (%p169) target = $region24
      $region23: #{forward.28} parent=15 // pred_region
        %p172 = scmp.lt.s32.totalorder %s16, 1
        %s173 = scalar_select %p172, %s16, 1
        %p174 = scmp.lt.s32.totalorder %s18, 0
        %s175 = scalar_select %p174, %s18, 0
        %s176 = sadd.s32 %s175, %s173
        %s177 = sadd.s32 %s176, 2
        %s178 = smul.addr %s177, 4
        %s179 = scalar_lea.vmem %s1, %s178
      $region24: #{forward.28} parent=15 // pred_fallthru
        _
      // Predicated region
      $region25: #{forward.28} parent=15 // pred_check
        %p180 = pneg %p106
      $region26: #{forward.28} parent=15 // pred_check_branch
        %182 = sbr.rel (%p180) target = $region28
      $region27: #{forward.28} parent=15 // pred_region
        %p183 = scmp.lt.s32.totalorder %s16, 1
        %s184 = scalar_select %p183, %s16, 1
        %p185 = scmp.lt.s32.totalorder %s18, 0
        %s186 = scalar_select %p185, %s18, 0
        %s187 = sadd.s32 %s186, %s184
        %s188 = sadd.s32 %s187, 4
        %s189 = smul.addr %s188, 4
        %s190 = scalar_lea.vmem %s2, %s189
      $region28: #{forward.28} parent=15 // pred_fallthru
        _
    $region16: #{forward.28} parent=5 // pred_fallthru
      _
    %p191 = scmp.le.s32.totalorder 1, %s9
    %p192 = scmp.lt.s32.totalorder %s9, 3
    %p193 = pnand %p191, %p192
    %p194 = pneg %p193
    // Predicated region
    $region29: #{forward.28} parent=5 // pred_check
      _
    $region30: #{forward.28} parent=5 // pred_check_branch
      %196 = sbr.rel (%p193) target = $region32
    $region31: #{forward.28} parent=5 // pred_region
      %s197 = ssub.s32 %s9, 1
      %p198 = scmp.lt.s32.totalorder %s19, 1
      %s199 = scalar_select %p198, %s19, 1
      %p200 = scmp.lt.s32.totalorder %s20, 0
      %s201 = scalar_select %p200, %s20, 0
      %s202 = sadd.s32 %s201, %s199
      %s203 = smul.addr %s202, 4
      %s204 = scalar_lea.vmem %s0, %s203
      %p205 = pneg %p56
      %p206 = pneg %p53
      %p207 = scmp.lt.s32.totalorder %s19, 1
      %s208 = scalar_select %p207, %s19, 1
      %p209 = scmp.lt.s32.totalorder %s21, 0
      %s210 = scalar_select %p209, %s21, 0
      %s211 = sadd.s32 %s210, %s208
      %s212 = sadd.s32 %s211, 2
      %s213 = smul.addr %s212, 4
      %s214 = scalar_lea.vmem %s1, %s213
      %p215 = pneg %p84
      %p216 = pneg %p81
      %p217 = scmp.lt.s32.totalorder %s19, 1
      %s218 = scalar_select %p217, %s19, 1
      %p219 = scmp.lt.s32.totalorder %s21, 0
      %s220 = scalar_select %p219, %s21, 0
      %s221 = sadd.s32 %s220, %s218
      %s222 = sadd.s32 %s221, 4
      %s223 = smul.addr %s222, 4
      %s224 = scalar_lea.vmem %s2, %s223
      %p225 = pneg %p112
      %p226 = pneg %p109
      %p227 = pneg %p140
      %p228 = pneg %p137
      %p229 = scmp.lt.s32.totalorder %s19, 1
      %s230 = scalar_select %p229, %s19, 1
      %p231 = scmp.lt.s32.totalorder %s20, 0
      %s232 = scalar_select %p231, %s20, 0
      %s233 = sadd.s32 %s232, %s230
      %s234 = smul.addr %s233, 4
      %s235 = scalar_lea.vmem %s3, %s234
      %p236 = scmp.lt.s32.totalorder %s19, 1
      %s237 = scalar_select %p236, %s19, 1
      %p238 = scmp.lt.s32.totalorder %s20, 0
      %s239 = scalar_select %p238, %s20, 0
      %s240 = sadd.s32 %s239, %s237
      %s241 = smul.addr %s240, 4
      %s242 = scalar_lea.vmem %s0, %s241
      %p243 = scmp.lt.s32.totalorder %s19, 1
      %s244 = scalar_select %p243, %s19, 1
      %p245 = scmp.lt.s32.totalorder %s21, 0
      %s246 = scalar_select %p245, %s21, 0
      %s247 = sadd.s32 %s246, %s244
      %s248 = sadd.s32 %s247, 2
      %s249 = smul.addr %s248, 4
      %s250 = scalar_lea.vmem %s1, %s249
      %p251 = scmp.lt.s32.totalorder %s19, 1
      %s252 = scalar_select %p251, %s19, 1
      %p253 = scmp.lt.s32.totalorder %s21, 0
      %s254 = scalar_select %p253, %s21, 0
      %s255 = sadd.s32 %s254, %s252
      %s256 = sadd.s32 %s255, 4
      %s257 = smul.addr %s256, 4
      %s258 = scalar_lea.vmem %s2, %s257
      %p259 = scmp.lt.s32.totalorder %s19, 1
      %s260 = scalar_select %p259, %s19, 1
      %p261 = scmp.lt.s32.totalorder %s20, 0
      %s262 = scalar_select %p261, %s20, 0
      %s263 = sadd.s32 %s262, %s260
      %s264 = smul.addr %s263, 4
      %s265 = scalar_lea.vmem %s3, %s264
      %p267 = scmp.eq.s32.totalorder %s21, 0
      // Predicated region
      $region33: #{forward.28} parent=31 // pred_check
        %p268 = pneg %p267
      $region34: #{forward.28} parent=31 // pred_check_branch
        %270 = sbr.rel (%p268) target = $region36
      $region35: #{forward.28} parent=31 // pred_region
        %vm271 = vcmask 7168
        %272 = vst.msk [vmem:[#allocation2] sm:$0xff] %vm271, -1e+30
        %273 = vst.msk [vmem:[#allocation2 + $0x8] sm:$0xff] %vm271, -1e+30
        %274 = vst.msk [vmem:[#allocation2 + $0x10] sm:$0xff] %vm271, -1e+30
        %275 = vst.msk [vmem:[#allocation2 + $0x18] sm:$0xff] %vm271, -1e+30
        %276 = vst.msk [vmem:[#allocation3] sm:$0xff] %vm271, 0.0
        %277 = vst.msk [vmem:[#allocation3 + $0x8] sm:$0xff] %vm271, 0.0
        %278 = vst.msk [vmem:[#allocation3 + $0x10] sm:$0xff] %vm271, 0.0
        %279 = vst.msk [vmem:[#allocation3 + $0x18] sm:$0xff] %vm271, 0.0
        %vm280 = vcmask 64512
        %281 = vst.msk [vmem:[#allocation4] sm:$0xff] %vm280, 0.0
        %282 = vst.msk [vmem:[#allocation4 + $0x8] sm:$0xff] %vm280, 0.0
        %283 = vst.msk [vmem:[#allocation4 + $0x10] sm:$0xff] %vm280, 0.0
        %284 = vst.msk [vmem:[#allocation4 + $0x18] sm:$0xff] %vm280, 0.0
      $region36: #{forward.28} parent=31 // pred_fallthru
        _
      %s285 = smul.u32 %s21, 8
      %s286 = smul.u32 %s20, 8
      %s287 = sadd.s32 %s286, 7
      %p288 = scmp.le.s32.totalorder %s285, %s287
      // Predicated region
      $region37: #{forward.28} parent=31 // pred_check
        %p289 = pneg %p288
      $region38: #{forward.28} parent=31 // pred_check_branch
        %291 = sbr.rel (%p289) target = $region40
      $region39: #{forward.28} parent=31 // pred_region
        %v292 = vlaneseq
        %v293 = vshrl.u32 %v292, 7
        %v294 = vstv %s286
        %v295 = vadd.s32 %v294, %v293
        %v296 = vlaneseq
        %v297 = vand.u32 %v296, 127
        %v298 = vstv %s285
        %v299 = vadd.s32 %v298, %v297
        %vm300 = vcmp.le.s32.totalorder %v299, %v295
        %v301 = vld [vmem:[%s242] sm:$0xf]
        %v302 = vld [vmem:[%s250] sm:$0xf]
        %vm303 = vcmask 64512
        %v305 = vsel %vm303, %v301, 0
        %v308 = vsel %vm303, %v302, 0
        %310 = vmatprep.subr.bf16.mxu0 0
        %311 = vmatpush1.bf16.xpose.msra.mxu0 %v308
        %312 = vmatprep.subr.bf16.mxu0 0
        %313 = vmatpush1.bf16.xpose.msra.mxu0 0
        %314 = vmatprep.subr.bf16.mxu0 0
        %315 = vmatpush1.bf16.xpose.msra.mxu0 0
        %316 = vmatprep.subr.bf16.mxu0 0
        %317 = vmatpush1.bf16.xpose.msra.mxu0 0
        %318 = vmatprep.subr.bf16.mxu0 0
        %319 = vmatpush1.bf16.xpose.msra.mxu0 0
        %320 = vmatprep.subr.bf16.mxu0 0
        %321 = vmatpush1.bf16.xpose.msra.mxu0 0
        %322 = vmatprep.subr.bf16.mxu0 0
        %323 = vmatpush1.bf16.xpose.msra.mxu0 0
        %324 = vmatprep.subr.bf16.mxu0 0
        %325 = vmatpush1.bf16.xpose.msra.mxu0 0
        %326 = vmatprep.subr.bf16.mxu0 0
        %327 = vmatpush1.bf16.xpose.msra.mxu0 0
        %328 = vmatprep.subr.bf16.mxu0 0
        %329 = vmatpush1.bf16.xpose.msra.mxu0 0
        %330 = vmatprep.subr.bf16.mxu0 0
        %331 = vmatpush1.bf16.xpose.msra.mxu0 0
        %332 = vmatprep.subr.bf16.mxu0 0
        %333 = vmatpush1.bf16.xpose.msra.mxu0 0
        %334 = vmatprep.subr.bf16.mxu0 0
        %335 = vmatpush1.bf16.xpose.msra.mxu0 0
        %336 = vmatprep.subr.bf16.mxu0 0
        %337 = vmatpush1.bf16.xpose.msra.mxu0 0
        %338 = vmatprep.subr.bf16.mxu0 0
        %339 = vmatpush1.bf16.xpose.msra.mxu0 0
        %340 = vmatprep.subr.bf16.mxu0 0
        %341 = vmatpush1.bf16.xpose.msra.mxu0 0
        %342 = vmatprep.mubr.bf16.mxu0 0
        %343 = vmatmul.mubr.bf16.gmra.mrb[0].mxu0 %v305
        %v344 = vpop.f32.mrb[0].mxu0
        %v345 = vadd.f32 0.0, %v344
        %v346 = vpop.f32.mrb[0].mxu0
        %v347 = vpop.f32.mrb[0].mxu0
        %v348 = vpop.f32.mrb[0].mxu0
        %349 = vdwg.mxu0
        %v350 = vmul.f32 %v345, 0.35355338
        %v351 = vmul.f32 %v350, 0.02
        %v352 = vtanh.pop %v351
        %v353 = vmul.f32 %v352, 50.0
        %v354 = vsel %vm300, %v353, -1e+30
        %v355 = vld [vmem:[#allocation2] sm:$0xff]
        %v356 = vsel %vm303, %v354, -inf
        %357 = vmax.xlane.f32.xlu0 %v356
        %v358 = vpop.xlane.xlu0 %357
        %v359 = vmax.f32 %v355, %v358
        %v360 = vsub.f32 %v355, %v359
        %v361 = vmul.f32 %v360, 1.442695
        %v362 = vpow.pop %v361
        %364 = vset.pattern.permute.xlu0 0
        %365 = vperm.xlu0 %364, %v359
        %v366 = vpop.permute.xlu0 %365
        %v368 = vsub.f32 %v354, %v366
        %v369 = vmul.f32 %v368, 1.442695
        %v370 = vpow.pop %v369
        %v371 = vsel %vm300, %v370, 0.0
        %v372 = vld [vmem:[#allocation3] sm:$0xff]
        %v373 = vmul.f32 %v362, %v372
        %v374 = vsel %vm303, %v371, 0.0
        %375 = vadd.xlane.f32.xlu0 %v374
        %v376 = vpop.xlane.xlu0 %375
        %v377 = vadd.f32 %v373, %v376
        %vm378 = vcmask 7168
        %379 = vst.msk [vmem:[#allocation3] sm:$0xff] %vm378, %v377
        %v380 = vld [vmem:[#allocation4] sm:$0xff]
        %382 = vset.pattern.permute.xlu0 0
        %383 = vperm.xlu0 %382, %v362
        %v384 = vpop.permute.xlu0 %383
        %v386 = vmul.f32 %v384, %v380
        %v387 = vpack.c.bf16 %v371, %v371
        %v388 = vld [vmem:[%s258] sm:$0xf]
        %v390 = vsel %vm303, %v387, 0
        %vm392 = vcmask 1043456
        %v394 = vsel %vm392, %v388, 0
        %396 = vmatprep.subr.bf16.mxu0 0
        %397 = vmatpush1.bf16.msra.mxu0 %v394
        %398 = vmatprep.subr.bf16.mxu0 0
        %399 = vmatpush1.bf16.msra.mxu0 0
        %400 = vmatprep.subr.bf16.mxu0 0
        %401 = vmatpush1.bf16.msra.mxu0 0
        %402 = vmatprep.subr.bf16.mxu0 0
        %403 = vmatpush1.bf16.msra.mxu0 0
        %404 = vmatprep.subr.bf16.mxu0 0
        %405 = vmatpush1.bf16.msra.mxu0 0
        %406 = vmatprep.subr.bf16.mxu0 0
        %407 = vmatpush1.bf16.msra.mxu0 0
        %408 = vmatprep.subr.bf16.mxu0 0
        %409 = vmatpush1.bf16.msra.mxu0 0
        %410 = vmatprep.subr.bf16.mxu0 0
        %411 = vmatpush1.bf16.msra.mxu0 0
        %412 = vmatprep.subr.bf16.mxu0 0
        %413 = vmatpush1.bf16.msra.mxu0 0
        %414 = vmatprep.subr.bf16.mxu0 0
        %415 = vmatpush1.bf16.msra.mxu0 0
        %416 = vmatprep.subr.bf16.mxu0 0
        %417 = vmatpush1.bf16.msra.mxu0 0
        %418 = vmatprep.subr.bf16.mxu0 0
        %419 = vmatpush1.bf16.msra.mxu0 0
        %420 = vmatprep.subr.bf16.mxu0 0
        %421 = vmatpush1.bf16.msra.mxu0 0
        %422 = vmatprep.subr.bf16.mxu0 0
        %423 = vmatpush1.bf16.msra.mxu0 0
        %424 = vmatprep.subr.bf16.mxu0 0
        %425 = vmatpush1.bf16.msra.mxu0 0
        %426 = vmatprep.subr.bf16.mxu0 0
        %427 = vmatpush1.bf16.msra.mxu0 0
        %428 = vmatprep.mubr.bf16.mxu0 0
        %429 = vmatmul.mubr.bf16.gmra.mrb[0].mxu0 %v390
        %v430 = vpop.f32.mrb[0].mxu0
        %v431 = vadd.f32 0.0, %v430
        %v432 = vpop.f32.mrb[0].mxu0
        %v433 = vpop.f32.mrb[0].mxu0
        %v434 = vpop.f32.mrb[0].mxu0
        %435 = vdwg.mxu0
        %v436 = vadd.f32 %v386, %v431
        %437 = vst.msk [vmem:[#allocation4] sm:$0xff] %vm303, %v436
        %438 = vst.msk [vmem:[#allocation2] sm:$0xff] %vm378, %v359
        %v439 = vld [vmem:[%s242] sm:$0xf]
        %v440 = vld [vmem:[%s250] sm:$0xf]
        %v442 = vunpack.c.l.b16 %v439
        %v443 = vpack.c.b16 %v442, %v442
        %444 = vrot.lane.b32.xlu0 %v443, 120
        %v445 = vpop.permute.xlu0 %444
        %v447 = vunpack.c.l.b16 %v440
        %v448 = vpack.c.b16 %v447, %v447
        %449 = vrot.lane.b32.xlu0 %v448, 120
        %v450 = vpop.permute.xlu0 %449
        %v452 = vsel %vm303, %v445, 0
        %v455 = vsel %vm303, %v450, 0
        %457 = vmatprep.subr.bf16.mxu0 0
        %458 = vmatpush1.bf16.xpose.msra.mxu0 %v455
        %459 = vmatprep.subr.bf16.mxu0 0
        %460 = vmatpush1.bf16.xpose.msra.mxu0 0
        %461 = vmatprep.subr.bf16.mxu0 0
        %462 = vmatpush1.bf16.xpose.msra.mxu0 0
        %463 = vmatprep.subr.bf16.mxu0 0
        %464 = vmatpush1.bf16.xpose.msra.mxu0 0
        %465 = vmatprep.subr.bf16.mxu0 0
        %466 = vmatpush1.bf16.xpose.msra.mxu0 0
        %467 = vmatprep.subr.bf16.mxu0 0
        %468 = vmatpush1.bf16.xpose.msra.mxu0 0
        %469 = vmatprep.subr.bf16.mxu0 0
        %470 = vmatpush1.bf16.xpose.msra.mxu0 0
        %471 = vmatprep.subr.bf16.mxu0 0
        %472 = vmatpush1.bf16.xpose.msra.mxu0 0
        %473 = vmatprep.subr.bf16.mxu0 0
        %474 = vmatpush1.bf16.xpose.msra.mxu0 0
        %475 = vmatprep.subr.bf16.mxu0 0
        %476 = vmatpush1.bf16.xpose.msra.mxu0 0
        %477 = vmatprep.subr.bf16.mxu0 0
        %478 = vmatpush1.bf16.xpose.msra.mxu0 0
        %479 = vmatprep.subr.bf16.mxu0 0
        %480 = vmatpush1.bf16.xpose.msra.mxu0 0
        %481 = vmatprep.subr.bf16.mxu0 0
        %482 = vmatpush1.bf16.xpose.msra.mxu0 0
        %483 = vmatprep.subr.bf16.mxu0 0
        %484 = vmatpush1.bf16.xpose.msra.mxu0 0
        %485 = vmatprep.subr.bf16.mxu0 0
        %486 = vmatpush1.bf16.xpose.msra.mxu0 0
        %487 = vmatprep.subr.bf16.mxu0 0
        %488 = vmatpush1.bf16.xpose.msra.mxu0 0
        %489 = vmatprep.mubr.bf16.mxu0 0
        %490 = vmatmul.mubr.bf16.gmra.mrb[0].mxu0 %v452
        %v491 = vpop.f32.mrb[0].mxu0
        %v492 = vadd.f32 0.0, %v491
        %v493 = vpop.f32.mrb[0].mxu0
        %v494 = vpop.f32.mrb[0].mxu0
        %v495 = vpop.f32.mrb[0].mxu0
        %496 = vdwg.mxu0
        %v497 = vmul.f32 %v492, 0.35355338
        %v498 = vmul.f32 %v497, 0.02
        %v499 = vtanh.pop %v498
        %v500 = vmul.f32 %v499, 50.0
        %v501 = vsel %vm300, %v500, -1e+30
        %s502 = scalar_lea.vmem [#allocation2], 8
        %v503 = vld [vmem:[%s502] sm:$0xff]
        %v504 = vsel %vm303, %v501, -inf
        %505 = vmax.xlane.f32.xlu0 %v504
        %v506 = vpop.xlane.xlu0 %505
        %v507 = vmax.f32 %v503, %v506
        %v508 = vsub.f32 %v503, %v507
        %v509 = vmul.f32 %v508, 1.442695
        %v510 = vpow.pop %v509
        %512 = vset.pattern.permute.xlu0 0
        %513 = vperm.xlu0 %512, %v507
        %v514 = vpop.permute.xlu0 %513
        %v516 = vsub.f32 %v501, %v514
        %v517 = vmul.f32 %v516, 1.442695
        %v518 = vpow.pop %v517
        %v519 = vsel %vm300, %v518, 0.0
        %s520 = scalar_lea.vmem [#allocation3], 8
        %v521 = vld [vmem:[%s520] sm:$0xff]
        %v522 = vmul.f32 %v510, %v521
        %v523 = vsel %vm303, %v519, 0.0
        %524 = vadd.xlane.f32.xlu0 %v523
        %v525 = vpop.xlane.xlu0 %524
        %v526 = vadd.f32 %v522, %v525
        %527 = vst.msk [vmem:[%s520] sm:$0xff] %vm378, %v526
        %s528 = scalar_lea.vmem [#allocation4], 8
        %v529 = vld [vmem:[%s528] sm:$0xff]
        %531 = vset.pattern.permute.xlu0 0
        %532 = vperm.xlu0 %531, %v510
        %v533 = vpop.permute.xlu0 %532
        %v535 = vmul.f32 %v533, %v529
        %v536 = vpack.c.bf16 %v519, %v519
        %v537 = vld [vmem:[%s258] sm:$0xf]
        %v539 = vunpack.c.l.b16 %v537
        %v540 = vpack.c.b16 %v539, %v539
        %541 = vrot.lane.b32.xlu0 %v540, 120
        %v542 = vpop.permute.xlu0 %541
        %v544 = vsel %vm303, %v536, 0
        %v547 = vsel %vm392, %v542, 0
        %549 = vmatprep.subr.bf16.mxu0 0
        %550 = vmatpush1.bf16.msra.mxu0 %v547
        %551 = vmatprep.subr.bf16.mxu0 0
        %552 = vmatpush1.bf16.msra.mxu0 0
        %553 = vmatprep.subr.bf16.mxu0 0
        %554 = vmatpush1.bf16.msra.mxu0 0
        %555 = vmatprep.subr.bf16.mxu0 0
        %556 = vmatpush1.bf16.msra.mxu0 0
        %557 = vmatprep.subr.bf16.mxu0 0
        %558 = vmatpush1.bf16.msra.mxu0 0
        %559 = vmatprep.subr.bf16.mxu0 0
        %560 = vmatpush1.bf16.msra.mxu0 0
        %561 = vmatprep.subr.bf16.mxu0 0
        %562 = vmatpush1.bf16.msra.mxu0 0
        %563 = vmatprep.subr.bf16.mxu0 0
        %564 = vmatpush1.bf16.msra.mxu0 0
        %565 = vmatprep.subr.bf16.mxu0 0
        %566 = vmatpush1.bf16.msra.mxu0 0
        %567 = vmatprep.subr.bf16.mxu0 0
        %568 = vmatpush1.bf16.msra.mxu0 0
        %569 = vmatprep.subr.bf16.mxu0 0
        %570 = vmatpush1.bf16.msra.mxu0 0
        %571 = vmatprep.subr.bf16.mxu0 0
        %572 = vmatpush1.bf16.msra.mxu0 0
        %573 = vmatprep.subr.bf16.mxu0 0
        %574 = vmatpush1.bf16.msra.mxu0 0
        %575 = vmatprep.subr.bf16.mxu0 0
        %576 = vmatpush1.bf16.msra.mxu0 0
        %577 = vmatprep.subr.bf16.mxu0 0
        %578 = vmatpush1.bf16.msra.mxu0 0
        %579 = vmatprep.subr.bf16.mxu0 0
        %580 = vmatpush1.bf16.msra.mxu0 0
        %581 = vmatprep.mubr.bf16.mxu0 0
        %582 = vmatmul.mubr.bf16.gmra.mrb[0].mxu0 %v544
        %v583 = vpop.f32.mrb[0].mxu0
        %v584 = vadd.f32 0.0, %v583
        %v585 = vpop.f32.mrb[0].mxu0
        %v586 = vpop.f32.mrb[0].mxu0
        %v587 = vpop.f32.mrb[0].mxu0
        %588 = vdwg.mxu0
        %v589 = vadd.f32 %v535, %v584
        %590 = vst.msk [vmem:[%s528] sm:$0xff] %vm303, %v589
        %591 = vst.msk [vmem:[%s502] sm:$0xff] %vm378, %v507
        %v592 = vld [vmem:[%s242] sm:$0xf]
        %v593 = vld [vmem:[%s250] sm:$0xf]
        %v595 = vunpack.c.l.b16 %v592
        %v596 = vpack.c.b16 %v595, %v595
        %597 = vrot.lane.b32.xlu0 %v596, 112
        %v598 = vpop.permute.xlu0 %597
        %v600 = vunpack.c.l.b16 %v593
        %v601 = vpack.c.b16 %v600, %v600
        %602 = vrot.lane.b32.xlu0 %v601, 112
        %v603 = vpop.permute.xlu0 %602
        %v605 = vsel %vm303, %v598, 0
        %v608 = vsel %vm303, %v603, 0
        %610 = vmatprep.subr.bf16.mxu0 0
        %611 = vmatpush1.bf16.xpose.msra.mxu0 %v608
        %612 = vmatprep.subr.bf16.mxu0 0
        %613 = vmatpush1.bf16.xpose.msra.mxu0 0
        %614 = vmatprep.subr.bf16.mxu0 0
        %615 = vmatpush1.bf16.xpose.msra.mxu0 0
        %616 = vmatprep.subr.bf16.mxu0 0
        %617 = vmatpush1.bf16.xpose.msra.mxu0 0
        %618 = vmatprep.subr.bf16.mxu0 0
        %619 = vmatpush1.bf16.xpose.msra.mxu0 0
        %620 = vmatprep.subr.bf16.mxu0 0
        %621 = vmatpush1.bf16.xpose.msra.mxu0 0
        %622 = vmatprep.subr.bf16.mxu0 0
        %623 = vmatpush1.bf16.xpose.msra.mxu0 0
        %624 = vmatprep.subr.bf16.mxu0 0
        %625 = vmatpush1.bf16.xpose.msra.mxu0 0
        %626 = vmatprep.subr.bf16.mxu0 0
        %627 = vmatpush1.bf16.xpose.msra.mxu0 0
        %628 = vmatprep.subr.bf16.mxu0 0
        %629 = vmatpush1.bf16.xpose.msra.mxu0 0
        %630 = vmatprep.subr.bf16.mxu0 0
        %631 = vmatpush1.bf16.xpose.msra.mxu0 0
        %632 = vmatprep.subr.bf16.mxu0 0
        %633 = vmatpush1.bf16.xpose.msra.mxu0 0
        %634 = vmatprep.subr.bf16.mxu0 0
        %635 = vmatpush1.bf16.xpose.msra.mxu0 0
        %636 = vmatprep.subr.bf16.mxu0 0
        %637 = vmatpush1.bf16.xpose.msra.mxu0 0
        %638 = vmatprep.subr.bf16.mxu0 0
        %639 = vmatpush1.bf16.xpose.msra.mxu0 0
        %640 = vmatprep.subr.bf16.mxu0 0
        %641 = vmatpush1.bf16.xpose.msra.mxu0 0
        %642 = vmatprep.mubr.bf16.mxu0 0
        %643 = vmatmul.mubr.bf16.gmra.mrb[0].mxu0 %v605
        %v644 = vpop.f32.mrb[0].mxu0
        %v645 = vadd.f32 0.0, %v644
        %v646 = vpop.f32.mrb[0].mxu0
        %v647 = vpop.f32.mrb[0].mxu0
        %v648 = vpop.f32.mrb[0].mxu0
        %649 = vdwg.mxu0
        %v650 = vmul.f32 %v645, 0.35355338
        %v651 = vmul.f32 %v650, 0.02
        %v652 = vtanh.pop %v651
        %v653 = vmul.f32 %v652, 50.0
        %v654 = vsel %vm300, %v653, -1e+30
        %s655 = scalar_lea.vmem [#allocation2], 16
        %v656 = vld [vmem:[%s655] sm:$0xff]
        %v657 = vsel %vm303, %v654, -inf
        %658 = vmax.xlane.f32.xlu0 %v657
        %v659 = vpop.xlane.xlu0 %658
        %v660 = vmax.f32 %v656, %v659
        %v661 = vsub.f32 %v656, %v660
        %v662 = vmul.f32 %v661, 1.442695
        %v663 = vpow.pop %v662
        %665 = vset.pattern.permute.xlu0 0
        %666 = vperm.xlu0 %665, %v660
        %v667 = vpop.permute.xlu0 %666
        %v669 = vsub.f32 %v654, %v667
        %v670 = vmul.f32 %v669, 1.442695
        %v671 = vpow.pop %v670
        %v672 = vsel %vm300, %v671, 0.0
        %s673 = scalar_lea.vmem [#allocation3], 16
        %v674 = vld [vmem:[%s673] sm:$0xff]
        %v675 = vmul.f32 %v663, %v674
        %v676 = vsel %vm303, %v672, 0.0
        %677 = vadd.xlane.f32.xlu0 %v676
        %v678 = vpop.xlane.xlu0 %677
        %v679 = vadd.f32 %v675, %v678
        %680 = vst.msk [vmem:[%s673] sm:$0xff] %vm378, %v679
        %s681 = scalar_lea.vmem [#allocation4], 16
        %v682 = vld [vmem:[%s681] sm:$0xff]
        %684 = vset.pattern.permute.xlu0 0
        %685 = vperm.xlu0 %684, %v663
        %v686 = vpop.permute.xlu0 %685
        %v688 = vmul.f32 %v686, %v682
        %v689 = vpack.c.bf16 %v672, %v672
        %v690 = vld [vmem:[%s258] sm:$0xf]
        %v692 = vunpack.c.l.b16 %v690
        %v693 = vpack.c.b16 %v692, %v692
        %694 = vrot.lane.b32.xlu0 %v693, 112
        %v695 = vpop.permute.xlu0 %694
        %v697 = vsel %vm303, %v689, 0
        %v700 = vsel %vm392, %v695, 0
        %702 = vmatprep.subr.bf16.mxu0 0
        %703 = vmatpush1.bf16.msra.mxu0 %v700
        %704 = vmatprep.subr.bf16.mxu0 0
        %705 = vmatpush1.bf16.msra.mxu0 0
        %706 = vmatprep.subr.bf16.mxu0 0
        %707 = vmatpush1.bf16.msra.mxu0 0
        %708 = vmatprep.subr.bf16.mxu0 0
        %709 = vmatpush1.bf16.msra.mxu0 0
        %710 = vmatprep.subr.bf16.mxu0 0
        %711 = vmatpush1.bf16.msra.mxu0 0
        %712 = vmatprep.subr.bf16.mxu0 0
        %713 = vmatpush1.bf16.msra.mxu0 0
        %714 = vmatprep.subr.bf16.mxu0 0
        %715 = vmatpush1.bf16.msra.mxu0 0
        %716 = vmatprep.subr.bf16.mxu0 0
        %717 = vmatpush1.bf16.msra.mxu0 0
        %718 = vmatprep.subr.bf16.mxu0 0
        %719 = vmatpush1.bf16.msra.mxu0 0
        %720 = vmatprep.subr.bf16.mxu0 0
        %721 = vmatpush1.bf16.msra.mxu0 0
        %722 = vmatprep.subr.bf16.mxu0 0
        %723 = vmatpush1.bf16.msra.mxu0 0
        %724 = vmatprep.subr.bf16.mxu0 0
        %725 = vmatpush1.bf16.msra.mxu0 0
        %726 = vmatprep.subr.bf16.mxu0 0
        %727 = vmatpush1.bf16.msra.mxu0 0
        %728 = vmatprep.subr.bf16.mxu0 0
        %729 = vmatpush1.bf16.msra.mxu0 0
        %730 = vmatprep.subr.bf16.mxu0 0
        %731 = vmatpush1.bf16.msra.mxu0 0
        %732 = vmatprep.subr.bf16.mxu0 0
        %733 = vmatpush1.bf16.msra.mxu0 0
        %734 = vmatprep.mubr.bf16.mxu0 0
        %735 = vmatmul.mubr.bf16.gmra.mrb[0].mxu0 %v697
        %v736 = vpop.f32.mrb[0].mxu0
        %v737 = vadd.f32 0.0, %v736
        %v738 = vpop.f32.mrb[0].mxu0
        %v739 = vpop.f32.mrb[0].mxu0
        %v740 = vpop.f32.mrb[0].mxu0
        %741 = vdwg.mxu0
        %v742 = vadd.f32 %v688, %v737
        %743 = vst.msk [vmem:[%s681] sm:$0xff] %vm303, %v742
        %744 = vst.msk [vmem:[%s655] sm:$0xff] %vm378, %v660
        %v745 = vld [vmem:[%s242] sm:$0xf]
        %v746 = vld [vmem:[%s250] sm:$0xf]
        %v748 = vunpack.c.l.b16 %v745
        %v749 = vpack.c.b16 %v748, %v748
        %750 = vrot.lane.b32.xlu0 %v749, 104
        %v751 = vpop.permute.xlu0 %750
        %v753 = vunpack.c.l.b16 %v746
        %v754 = vpack.c.b16 %v753, %v753
        %755 = vrot.lane.b32.xlu0 %v754, 104
        %v756 = vpop.permute.xlu0 %755
        %v758 = vsel %vm303, %v751, 0
        %v761 = vsel %vm303, %v756, 0
        %763 = vmatprep.subr.bf16.mxu0 0
        %764 = vmatpush1.bf16.xpose.msra.mxu0 %v761
        %765 = vmatprep.subr.bf16.mxu0 0
        %766 = vmatpush1.bf16.xpose.msra.mxu0 0
        %767 = vmatprep.subr.bf16.mxu0 0
        %768 = vmatpush1.bf16.xpose.msra.mxu0 0
        %769 = vmatprep.subr.bf16.mxu0 0
        %770 = vmatpush1.bf16.xpose.msra.mxu0 0
        %771 = vmatprep.subr.bf16.mxu0 0
        %772 = vmatpush1.bf16.xpose.msra.mxu0 0
        %773 = vmatprep.subr.bf16.mxu0 0
        %774 = vmatpush1.bf16.xpose.msra.mxu0 0
        %775 = vmatprep.subr.bf16.mxu0 0
        %776 = vmatpush1.bf16.xpose.msra.mxu0 0
        %777 = vmatprep.subr.bf16.mxu0 0
        %778 = vmatpush1.bf16.xpose.msra.mxu0 0
        %779 = vmatprep.subr.bf16.mxu0 0
        %780 = vmatpush1.bf16.xpose.msra.mxu0 0
        %781 = vmatprep.subr.bf16.mxu0 0
        %782 = vmatpush1.bf16.xpose.msra.mxu0 0
        %783 = vmatprep.subr.bf16.mxu0 0
        %784 = vmatpush1.bf16.xpose.msra.mxu0 0
        %785 = vmatprep.subr.bf16.mxu0 0
        %786 = vmatpush1.bf16.xpose.msra.mxu0 0
        %787 = vmatprep.subr.bf16.mxu0 0
        %788 = vmatpush1.bf16.xpose.msra.mxu0 0
        %789 = vmatprep.subr.bf16.mxu0 0
        %790 = vmatpush1.bf16.xpose.msra.mxu0 0
        %791 = vmatprep.subr.bf16.mxu0 0
        %792 = vmatpush1.bf16.xpose.msra.mxu0 0
        %793 = vmatprep.subr.bf16.mxu0 0
        %794 = vmatpush1.bf16.xpose.msra.mxu0 0
        %795 = vmatprep.mubr.bf16.mxu0 0
        %796 = vmatmul.mubr.bf16.gmra.mrb[0].mxu0 %v758
        %v797 = vpop.f32.mrb[0].mxu0
        %v798 = vadd.f32 0.0, %v797
        %v799 = vpop.f32.mrb[0].mxu0
        %v800 = vpop.f32.mrb[0].mxu0
        %v801 = vpop.f32.mrb[0].mxu0
        %802 = vdwg.mxu0
        %v803 = vmul.f32 %v798, 0.35355338
        %v804 = vmul.f32 %v803, 0.02
        %v805 = vtanh.pop %v804
        %v806 = vmul.f32 %v805, 50.0
        %v807 = vsel %vm300, %v806, -1e+30
        %s808 = scalar_lea.vmem [#allocation2], 24
        %v809 = vld [vmem:[%s808] sm:$0xff]
        %v810 = vsel %vm303, %v807, -inf
        %811 = vmax.xlane.f32.xlu0 %v810
        %v812 = vpop.xlane.xlu0 %811
        %v813 = vmax.f32 %v809, %v812
        %v814 = vsub.f32 %v809, %v813
        %v815 = vmul.f32 %v814, 1.442695
        %v816 = vpow.pop %v815
        %818 = vset.pattern.permute.xlu0 0
        %819 = vperm.xlu0 %818, %v813
        %v820 = vpop.permute.xlu0 %819
        %v822 = vsub.f32 %v807, %v820
        %v823 = vmul.f32 %v822, 1.442695
        %v824 = vpow.pop %v823
        %v825 = vsel %vm300, %v824, 0.0
        %s826 = scalar_lea.vmem [#allocation3], 24
        %v827 = vld [vmem:[%s826] sm:$0xff]
        %v828 = vmul.f32 %v816, %v827
        %v829 = vsel %vm303, %v825, 0.0
        %830 = vadd.xlane.f32.xlu0 %v829
        %v831 = vpop.xlane.xlu0 %830
        %v832 = vadd.f32 %v828, %v831
        %833 = vst.msk [vmem:[%s826] sm:$0xff] %vm378, %v832
        %s834 = scalar_lea.vmem [#allocation4], 24
        %v835 = vld [vmem:[%s834] sm:$0xff]
        %837 = vset.pattern.permute.xlu0 0
        %838 = vperm.xlu0 %837, %v816
        %v839 = vpop.permute.xlu0 %838
        %v841 = vmul.f32 %v839, %v835
        %v842 = vpack.c.bf16 %v825, %v825
        %v843 = vld [vmem:[%s258] sm:$0xf]
        %v845 = vunpack.c.l.b16 %v843
        %v846 = vpack.c.b16 %v845, %v845
        %847 = vrot.lane.b32.xlu0 %v846, 104
        %v848 = vpop.permute.xlu0 %847
        %v850 = vsel %vm303, %v842, 0
        %v853 = vsel %vm392, %v848, 0
        %855 = vmatprep.subr.bf16.mxu0 0
        %856 = vmatpush1.bf16.msra.mxu0 %v853
        %857 = vmatprep.subr.bf16.mxu0 0
        %858 = vmatpush1.bf16.msra.mxu0 0
        %859 = vmatprep.subr.bf16.mxu0 0
        %860 = vmatpush1.bf16.msra.mxu0 0
        %861 = vmatprep.subr.bf16.mxu0 0
        %862 = vmatpush1.bf16.msra.mxu0 0
        %863 = vmatprep.subr.bf16.mxu0 0
        %864 = vmatpush1.bf16.msra.mxu0 0
        %865 = vmatprep.subr.bf16.mxu0 0
        %866 = vmatpush1.bf16.msra.mxu0 0
        %867 = vmatprep.subr.bf16.mxu0 0
        %868 = vmatpush1.bf16.msra.mxu0 0
        %869 = vmatprep.subr.bf16.mxu0 0
        %870 = vmatpush1.bf16.msra.mxu0 0
        %871 = vmatprep.subr.bf16.mxu0 0
        %872 = vmatpush1.bf16.msra.mxu0 0
        %873 = vmatprep.subr.bf16.mxu0 0
        %874 = vmatpush1.bf16.msra.mxu0 0
        %875 = vmatprep.subr.bf16.mxu0 0
        %876 = vmatpush1.bf16.msra.mxu0 0
        %877 = vmatprep.subr.bf16.mxu0 0
        %878 = vmatpush1.bf16.msra.mxu0 0
        %879 = vmatprep.subr.bf16.mxu0 0
        %880 = vmatpush1.bf16.msra.mxu0 0
        %881 = vmatprep.subr.bf16.mxu0 0
        %882 = vmatpush1.bf16.msra.mxu0 0
        %883 = vmatprep.subr.bf16.mxu0 0
        %884 = vmatpush1.bf16.msra.mxu0 0
        %885 = vmatprep.subr.bf16.mxu0 0
        %886 = vmatpush1.bf16.msra.mxu0 0
        %887 = vmatprep.mubr.bf16.mxu0 0
        %888 = vmatmul.mubr.bf16.gmra.mrb[0].mxu0 %v850
        %v889 = vpop.f32.mrb[0].mxu0
        %v890 = vadd.f32 0.0, %v889
        %v891 = vpop.f32.mrb[0].mxu0
        %v892 = vpop.f32.mrb[0].mxu0
        %v893 = vpop.f32.mrb[0].mxu0
        %894 = vdwg.mxu0
        %v895 = vadd.f32 %v841, %v890
        %896 = vst.msk [vmem:[%s834] sm:$0xff] %vm303, %v895
        %897 = vst.msk [vmem:[%s808] sm:$0xff] %vm378, %v813
      $region40: #{forward.28} parent=31 // pred_fallthru
        _
      // Predicated region
      $region41: #{forward.28} parent=31 // pred_check
        %p898 = pneg %p267
      $region42: #{forward.28} parent=31 // pred_check_branch
        %900 = sbr.rel (%p898) target = $region44
      $region43: #{forward.28} parent=31 // pred_region
        %v901 = vld [vmem:[#allocation3] sm:$0xff]
        %v902 = vrcp.pop %v901
        %v903 = vld [vmem:[#allocation4] sm:$0xff]
        %905 = vset.pattern.permute.xlu0 0
        %906 = vperm.xlu0 %905, %v902
        %v907 = vpop.permute.xlu0 %906
        %v909 = vmul.f32 %v903, %v907
        %v910 = vpack.c.bf16 %v909, %v909
        %vm911 = vcmask 60416
        %912 = vst.msk [vmem:[%s265] sm:$0xf] %vm911, %v910
        %s913 = scalar_lea.vmem [#allocation3], 8
        %v914 = vld [vmem:[%s913] sm:$0xff]
        %v915 = vrcp.pop %v914
        %s916 = scalar_lea.vmem [#allocation4], 8
        %v917 = vld [vmem:[%s916] sm:$0xff]
        %919 = vset.pattern.permute.xlu0 0
        %920 = vperm.xlu0 %919, %v915
        %v921 = vpop.permute.xlu0 %920
        %v923 = vmul.f32 %v917, %v921
        %v924 = vpack.c.bf16 %v923, %v923
        %v926 = vunpack.c.l.b16 %v924
        %v927 = vpack.c.b16 %v926, %v926
        %928 = vrot.lane.b32.xlu0 %v927, 8
        %v929 = vpop.permute.xlu0 %928
        %vm931 = vcmask 126016
        %932 = vst.msk [vmem:[%s265] sm:$0xf] %vm931, %v929
        %s933 = scalar_lea.vmem [#allocation3], 16
        %v934 = vld [vmem:[%s933] sm:$0xff]
        %v935 = vrcp.pop %v934
        %s936 = scalar_lea.vmem [#allocation4], 16
        %v937 = vld [vmem:[%s936] sm:$0xff]
        %939 = vset.pattern.permute.xlu0 0
        %940 = vperm.xlu0 %939, %v935
        %v941 = vpop.permute.xlu0 %940
        %v943 = vmul.f32 %v937, %v941
        %v944 = vpack.c.bf16 %v943, %v943
        %v946 = vunpack.c.l.b16 %v944
        %v947 = vpack.c.b16 %v946, %v946
        %948 = vrot.lane.b32.xlu0 %v947, 16
        %v949 = vpop.permute.xlu0 %948
        %vm951 = vcmask 191616
        %952 = vst.msk [vmem:[%s265] sm:$0xf] %vm951, %v949
        %s953 = scalar_lea.vmem [#allocation3], 24
        %v954 = vld [vmem:[%s953] sm:$0xff]
        %v955 = vrcp.pop %v954
        %s956 = scalar_lea.vmem [#allocation4], 24
        %v957 = vld [vmem:[%s956] sm:$0xff]
        %959 = vset.pattern.permute.xlu0 0
        %960 = vperm.xlu0 %959, %v955
        %v961 = vpop.permute.xlu0 %960
        %v963 = vmul.f32 %v957, %v961
        %v964 = vpack.c.bf16 %v963, %v963
        %v966 = vunpack.c.l.b16 %v964
        %v967 = vpack.c.b16 %v966, %v966
        %968 = vrot.lane.b32.xlu0 %v967, 24
        %v969 = vpop.permute.xlu0 %968
        %vm971 = vcmask 257216
        %972 = vst.msk [vmem:[%s265] sm:$0xf] %vm971, %v969
      $region44: #{forward.28} parent=31 // pred_fallthru
        _
      %p973 = scmp.lt.s32.totalorder %s19, 1
      %s974 = scalar_select %p973, %s19, 1
      %p975 = scmp.lt.s32.totalorder %s20, 0
      %s976 = scalar_select %p975, %s20, 0
      %s977 = sadd.s32 %s976, %s974
      %s978 = smul.addr %s977, 4
      %s979 = scalar_lea.vmem %s3, %s978
      // Predicated region
      $region45: #{forward.28} parent=31 // pred_check
        %p980 = pneg %p137
      $region46: #{forward.28} parent=31 // pred_check_branch
        %982 = sbr.rel (%p980) target = $region48
      $region47: #{forward.28} parent=31 // pred_region
        _
      $region48: #{forward.28} parent=31 // pred_fallthru
        _
    $region32: #{forward.28} parent=5 // pred_fallthru
      _
    %p983 = scmp.le.s32.totalorder 2, %s9
    // Predicated region
    $region49: #{forward.28} parent=5 // pred_check
      %p984 = pneg %p983
    $region50: #{forward.28} parent=5 // pred_check_branch
      %986 = sbr.rel (%p984) target = $region52
    $region51: #{forward.28} parent=5 // pred_region
      %s987 = ssub.s32 %s9, 2
      // Predicated region
      $region53: #{forward.28} parent=51 // pred_check
        %p988 = pneg %p143
      $region54: #{forward.28} parent=51 // pred_check_branch
        %990 = sbr.rel (%p988) target = $region56
      $region55: #{forward.28} parent=51 // pred_region
        %p991 = scmp.lt.s32.totalorder %s22, 1
        %s992 = scalar_select %p991, %s22, 1
        %p993 = scmp.lt.s32.totalorder %s23, 0
        %s994 = scalar_select %p993, %s23, 0
        %s995 = sadd.s32 %s994, %s992
        %s996 = smul.addr %s995, 4
        %s997 = scalar_lea.vmem %s3, %s996
      $region56: #{forward.28} parent=51 // pred_fallthru
        _
    $region52: #{forward.28} parent=5 // pred_fallthru
      _
  $region6: #{forward.28} parent=0 // loop_footer
    %s13 = sadd.s32 1, %s9
  $region7: #{forward.28} parent=0 // loop_footer_branch
    %8 = sbr.rel target = $region3
  $region8: #{forward.28} parent=0 // loop_exit
    _

// kernel: forward.35
$region0: #{forward.35}
  #allocation0 [shape = 'u32[]', space=smem, size = 0x4, offset = 0x4, fixed_abs, tag = 'smem constant byte address 0x4 - core index']
  #allocation1 [shape = 'u32[144,128]{1,0:T(1,128)}', space=vmem, size = 0x12000, scoped, tag = 'internal scratch']
  #allocation2 [shape = 'f32[1,1]{1,0:T(1,128)S(1)}', space=vmem, size = 0x200, scoped, tag = 'scoped memory for forward.35']
  %s0 = inlined_call_operand.vmem [shape: f32[16,32], index: 0, kind: input, shape index: {}]
  %s1 = inlined_call_operand.vmem [shape: f32[1,32], index: 1, kind: input, shape index: {}]
  %s2 = inlined_call_operand.<no memory space> [shape: f32[1,1], index: 2, kind: input, shape index: {}]
  %s3 = inlined_call_operand.vmem [shape: f32[16,1], index: 3, kind: output, shape index: {0}]
  %s4 = inlined_call_operand.vmem [shape: f32[16,1], index: 4, kind: output, shape index: {1}]
  %5 = xla_tuple %s3, %s4
  %s6 = sld [smem:[#allocation0]]
  $region30: #{forward.35} parent=0
    _
  %s8 = ssub.s32 1, %s6
  %s9 = scalar_select 0, %s8, %s6
  %v10 = vstv %s2
  %11 = vst [vmem:[#allocation2] sm:$0x1] %v10
  // Predicated region
  $region2: #{forward.35} parent=0 // pred_check
    _
  $region3: #{forward.35} parent=0 // pred_check_branch
    %13 = sbr.rel (0) target = $region5
  $region4: #{forward.35} parent=0 // pred_region
    _
  $region5: #{forward.35} parent=0 // pred_fallthru
    _
  // Predicated region
  $region6: #{forward.35} parent=0 // pred_check
    _
  $region7: #{forward.35} parent=0 // pred_check_branch
    %15 = sbr.rel (0) target = $region9
  $region8: #{forward.35} parent=0 // pred_region
    _
  $region9: #{forward.35} parent=0 // pred_fallthru
    _
  // Predicated region
  $region10: #{forward.35} parent=0 // pred_check
    _
  $region11: #{forward.35} parent=0 // pred_check_branch
    %17 = sbr.rel (0) target = $region13
  $region12: #{forward.35} parent=0 // pred_region
    _
  $region13: #{forward.35} parent=0 // pred_fallthru
    _
  %v18 = vld [vmem:[%s0] sm:$0xff]
  %v19 = vld [vmem:[%s0 + $0x8] sm:$0xff]
  %v20 = vld [vmem:[%s1] sm:$0x1]
  %v22 = vlaneseq
  %v23 = vshrl.u32 %v22, 7
  %v24 = vsub.s32 0, %v23
  %v25 = vrot.slane %v20, %v24
  %v27 = vmul.f32 %v18, %v25
  %v28 = vmul.f32 %v19, %v25
  %vm29 = vcmask 261120
  %v30 = vsel %vm29, %v27, 0.0
  %31 = vadd.xlane.f32.xlu0 %v30
  %v32 = vpop.xlane.xlu0 %31
  %v33 = vsel %vm29, %v28, 0.0
  %34 = vadd.xlane.f32.xlu0 %v33
  %v35 = vpop.xlane.xlu0 %34
  %v36 = vld [vmem:[#allocation2] sm:$0x1]
  %v38 = vlaneseq
  %v39 = vshrl.u32 %v38, 7
  %v40 = vsub.s32 0, %v39
  %v41 = vrot.slane %v36, %v40
  %v43 = vadd.f32 %v32, %v41
  %v44 = vadd.f32 %v35, %v41
  %vm45 = vcmask 7168
  %46 = vst.msk [vmem:[%s3] sm:$0xff] %vm45, %v43
  %47 = vst.msk [vmem:[%s3 + $0x8] sm:$0xff] %vm45, %v44
  %v48 = vsub.f32 0.0, %v43
  %v49 = vsub.f32 0.0, %v44
  %v50 = vmul.f32 %v48, 1.442695
  %v51 = vpow.pop %v50
  %v52 = vmul.f32 %v49, 1.442695
  %v53 = vpow.pop %v52
  %v54 = vadd.f32 %v51, 1.0
  %v55 = vadd.f32 %v53, 1.0
  %v56 = vrcp.pop %v54
  %v57 = vmul.f32 1.0, %v56
  %v58 = vrcp.pop %v55
  %v59 = vmul.f32 1.0, %v58
  %60 = vst.msk [vmem:[%s4] sm:$0xff] %vm45, %v57
  %61 = vst.msk [vmem:[%s4 + $0x8] sm:$0xff] %vm45, %v59
  // Predicated region
  $region14: #{forward.35} parent=0 // pred_check
    _
  $region15: #{forward.35} parent=0 // pred_check_branch
    %63 = sbr.rel (0) target = $region17
  $region16: #{forward.35} parent=0 // pred_region
    _
  $region17: #{forward.35} parent=0 // pred_fallthru
    _
  // Predicated region
  $region18: #{forward.35} parent=0 // pred_check
    _
  $region19: #{forward.35} parent=0 // pred_check_branch
    %65 = sbr.rel (0) target = $region21
  $region20: #{forward.35} parent=0 // pred_region
    _
  $region21: #{forward.35} parent=0 // pred_fallthru
    _
  // Predicated region
  $region22: #{forward.35} parent=0 // pred_check
    _
  $region23: #{forward.35} parent=0 // pred_check_branch
    %67 = sbr.rel (0) target = $region25
  $region24: #{forward.35} parent=0 // pred_region
    _
  $region25: #{forward.35} parent=0 // pred_fallthru
    _
  // Predicated region
  $region26: #{forward.35} parent=0 // pred_check
    _
  $region27: #{forward.35} parent=0 // pred_check_branch
    %69 = sbr.rel (0) target = $region29
  $region28: #{forward.35} parent=0 // pred_region
    _
  $region29: #{forward.35} parent=0 // pred_fallthru
    _

// kernel: forward.30
$region0: #{forward.30}
  #allocation0 [shape = 'u32[]', space=smem, size = 0x4, offset = 0x4, fixed_abs, tag = 'smem constant byte address 0x4 - core index']
  #allocation1 [shape = 'u32[144,128]{1,0:T(1,128)}', space=vmem, size = 0x12000, scoped, tag = 'internal scratch']
  #allocation2 [shape = 'bf16[16,32]{1,0:T(16,128)(2,1)}', space=vmem, size = 0x1000, scoped, tag = 'scratch operand']
  #allocation3 [shape = 'f32[16,32]{1,0:T(8,128)}', space=vmem, size = 0x2000, scoped, tag = 'scratch operand']
  %s0 = inlined_call_operand.vmem [shape: f32[16,32], index: 0, kind: input, shape index: {}]
  %s1 = inlined_call_operand.vmem [shape: f32[1,32], index: 1, kind: input, shape index: {}]
  %s2 = inlined_call_operand.vmem [shape: bf16[32,32], index: 2, kind: input, shape index: {}]
  %s3 = inlined_call_operand.vmem [shape: bf16[32,32], index: 3, kind: input, shape index: {}]
  %s4 = inlined_call_operand.vmem [shape: bf16[32,32], index: 4, kind: input, shape index: {}]
  %s5 = inlined_call_operand.vmem [shape: f32[1,32], index: 5, kind: input, shape index: {}]
  %s6 = inlined_call_operand.vmem [shape: f32[16,32], index: 6, kind: output, shape index: {}]
  %s7 = sld [smem:[#allocation0]]
  $region42: #{forward.30} parent=0
    _
  %s9 = ssub.s32 1, %s7
  %s10 = scalar_select 0, %s9, %s7
  // Predicated region
  $region2: #{forward.30} parent=0 // pred_check
    _
  $region3: #{forward.30} parent=0 // pred_check_branch
    %12 = sbr.rel (0) target = $region5
  $region4: #{forward.30} parent=0 // pred_region
    _
  $region5: #{forward.30} parent=0 // pred_fallthru
    _
  // Predicated region
  $region6: #{forward.30} parent=0 // pred_check
    _
  $region7: #{forward.30} parent=0 // pred_check_branch
    %14 = sbr.rel (0) target = $region9
  $region8: #{forward.30} parent=0 // pred_region
    _
  $region9: #{forward.30} parent=0 // pred_fallthru
    _
  // Predicated region
  $region10: #{forward.30} parent=0 // pred_check
    _
  $region11: #{forward.30} parent=0 // pred_check_branch
    %16 = sbr.rel (0) target = $region13
  $region12: #{forward.30} parent=0 // pred_region
    _
  $region13: #{forward.30} parent=0 // pred_fallthru
    _
  // Predicated region
  $region14: #{forward.30} parent=0 // pred_check
    _
  $region15: #{forward.30} parent=0 // pred_check_branch
    %18 = sbr.rel (0) target = $region17
  $region16: #{forward.30} parent=0 // pred_region
    _
  $region17: #{forward.30} parent=0 // pred_fallthru
    _
  // Predicated region
  $region18: #{forward.30} parent=0 // pred_check
    _
  $region19: #{forward.30} parent=0 // pred_check_branch
    %20 = sbr.rel (0) target = $region21
  $region20: #{forward.30} parent=0 // pred_region
    _
  $region21: #{forward.30} parent=0 // pred_fallthru
    _
  // Predicated region
  $region22: #{forward.30} parent=0 // pred_check
    _
  $region23: #{forward.30} parent=0 // pred_check_branch
    %22 = sbr.rel (0) target = $region25
  $region24: #{forward.30} parent=0 // pred_region
    _
  $region25: #{forward.30} parent=0 // pred_fallthru
    _
  %p24 = scmp.eq.s32.totalorder 0, 0
  // Predicated region
  $region26: #{forward.30} parent=0 // pred_check
    %p25 = pneg %p24
  $region27: #{forward.30} parent=0 // pred_check_branch
    %27 = sbr.rel (%p25) target = $region29
  $region28: #{forward.30} parent=0 // pred_region
    %v28 = vld [vmem:[%s0] sm:$0xff]
    %v29 = vld [vmem:[%s0 + $0x8] sm:$0xff]
    %v30 = vld [vmem:[%s1] sm:$0x1]
    %v31 = vmul.f32 %v28, %v28
    %v32 = vmul.f32 %v29, %v29
    %vm33 = vcmask 261120
    %v34 = vsel %vm33, %v31, 0.0
    %35 = vadd.xlane.f32.xlu0 %v34
    %v36 = vpop.xlane.xlu0 %35
    %v37 = vsel %vm33, %v32, 0.0
    %38 = vadd.xlane.f32.xlu0 %v37
    %v39 = vpop.xlane.xlu0 %38
    %v40 = vrcp.pop 32.0
    %v41 = vmul.f32 %v36, %v40
    %v42 = vmul.f32 %v39, %v40
    %v43 = vadd.f32 %v41, 1e-06
    %v44 = vadd.f32 %v42, 1e-06
    %v45 = vrsqrt.pop %v43
    %v46 = vrsqrt.pop %v44
    %v47 = vmul.f32 %v28, %v45
    %v48 = vmul.f32 %v29, %v46
    %v49 = vadd.f32 %v30, 1.0
    %v51 = vlaneseq
    %v52 = vshrl.u32 %v51, 7
    %v53 = vsub.s32 0, %v52
    %v54 = vrot.slane %v49, %v53
    %v56 = vmul.f32 %v47, %v54
    %v57 = vmul.f32 %v48, %v54
    %v58 = vpack.c.bf16 %v57, %v56
    %59 = vst.msk [vmem:[#allocation2] sm:$0xff] %vm33, %v58
    %60 = vst.msk [vmem:[#allocation3] sm:$0xff] %vm33, 0.0
    %61 = vst.msk [vmem:[#allocation3 + $0x8] sm:$0xff] %vm33, 0.0
  $region29: #{forward.30} parent=0 // pred_fallthru
    _
  %v62 = vld [vmem:[#allocation2] sm:$0xff]
  %v63 = vld [vmem:[%s2] sm:$0xf]
  %v64 = vld [vmem:[%s2 + $0x4] sm:$0xf]
  %v65 = vld [vmem:[%s2 + $0x8] sm:$0xf]
  %v66 = vld [vmem:[%s2 + $0xc] sm:$0xf]
  %v71 = vunpack.c.l.b16 %v63
  %v72 = vunpack.c.l.b16 %v64
  %v73 = vunpack.c.l.b16 %v65
  %v74 = vunpack.c.l.b16 %v66
  %v75 = vpack.c.b16 %v72, %v71
  %v76 = vpack.c.b16 %v74, %v73
  %vm79 = vcmask 261120
  %v81 = vsel %vm79, %v62, 0
  %83 = vmatprep.subr.bf16.mxu0 0
  %84 = vmatpush1.bf16.msra.mxu0 %v75
  %85 = vmatprep.subr.bf16.mxu0 0
  %86 = vmatpush1.bf16.msra.mxu0 %v76
  %87 = vmatprep.subr.bf16.mxu0 0
  %88 = vmatpush1.bf16.msra.mxu0 0
  %89 = vmatprep.subr.bf16.mxu0 0
  %90 = vmatpush1.bf16.msra.mxu0 0
  %91 = vmatprep.subr.bf16.mxu0 0
  %92 = vmatpush1.bf16.msra.mxu0 0
  %93 = vmatprep.subr.bf16.mxu0 0
  %94 = vmatpush1.bf16.msra.mxu0 0
  %95 = vmatprep.subr.bf16.mxu0 0
  %96 = vmatpush1.bf16.msra.mxu0 0
  %97 = vmatprep.subr.bf16.mxu0 0
  %98 = vmatpush1.bf16.msra.mxu0 0
  %99 = vmatprep.subr.bf16.mxu0 0
  %100 = vmatpush1.bf16.msra.mxu0 0
  %101 = vmatprep.subr.bf16.mxu0 0
  %102 = vmatpush1.bf16.msra.mxu0 0
  %103 = vmatprep.subr.bf16.mxu0 0
  %104 = vmatpush1.bf16.msra.mxu0 0
  %105 = vmatprep.subr.bf16.mxu0 0
  %106 = vmatpush1.bf16.msra.mxu0 0
  %107 = vmatprep.subr.bf16.mxu0 0
  %108 = vmatpush1.bf16.msra.mxu0 0
  %109 = vmatprep.subr.bf16.mxu0 0
  %110 = vmatpush1.bf16.msra.mxu0 0
  %111 = vmatprep.subr.bf16.mxu0 0
  %112 = vmatpush1.bf16.msra.mxu0 0
  %113 = vmatprep.subr.bf16.mxu0 0
  %114 = vmatpush1.bf16.msra.mxu0 0
  %115 = vmatprep.mubr.bf16.mxu0 0
  %116 = vmatmul.mubr.bf16.gmra.mrb[0].mxu0 %v81
  %v117 = vpop.f32.mrb[0].mxu0
  %v118 = vadd.f32 0.0, %v117
  %v119 = vpop.f32.mrb[0].mxu0
  %v120 = vpop.f32.mrb[0].mxu0
  %v121 = vadd.f32 0.0, %v120
  %v122 = vpop.f32.mrb[0].mxu0
  %123 = vdwg.mxu0
  %v124 = vld [vmem:[%s3] sm:$0xf]
  %v125 = vld [vmem:[%s3 + $0x4] sm:$0xf]
  %v126 = vld [vmem:[%s3 + $0x8] sm:$0xf]
  %v127 = vld [vmem:[%s3 + $0xc] sm:$0xf]
  %v132 = vunpack.c.l.b16 %v124
  %v133 = vunpack.c.l.b16 %v125
  %v134 = vunpack.c.l.b16 %v126
  %v135 = vunpack.c.l.b16 %v127
  %v136 = vpack.c.b16 %v133, %v132
  %v137 = vpack.c.b16 %v135, %v134
  %140 = vmatprep.subr.bf16.mxu0 0
  %141 = vmatpush1.bf16.msra.mxu0 %v136
  %142 = vmatprep.subr.bf16.mxu0 0
  %143 = vmatpush1.bf16.msra.mxu0 %v137
  %144 = vmatprep.subr.bf16.mxu0 0
  %145 = vmatpush1.bf16.msra.mxu0 0
  %146 = vmatprep.subr.bf16.mxu0 0
  %147 = vmatpush1.bf16.msra.mxu0 0
  %148 = vmatprep.subr.bf16.mxu0 0
  %149 = vmatpush1.bf16.msra.mxu0 0
  %150 = vmatprep.subr.bf16.mxu0 0
  %151 = vmatpush1.bf16.msra.mxu0 0
  %152 = vmatprep.subr.bf16.mxu0 0
  %153 = vmatpush1.bf16.msra.mxu0 0
  %154 = vmatprep.subr.bf16.mxu0 0
  %155 = vmatpush1.bf16.msra.mxu0 0
  %156 = vmatprep.subr.bf16.mxu0 0
  %157 = vmatpush1.bf16.msra.mxu0 0
  %158 = vmatprep.subr.bf16.mxu0 0
  %159 = vmatpush1.bf16.msra.mxu0 0
  %160 = vmatprep.subr.bf16.mxu0 0
  %161 = vmatpush1.bf16.msra.mxu0 0
  %162 = vmatprep.subr.bf16.mxu0 0
  %163 = vmatpush1.bf16.msra.mxu0 0
  %164 = vmatprep.subr.bf16.mxu0 0
  %165 = vmatpush1.bf16.msra.mxu0 0
  %166 = vmatprep.subr.bf16.mxu0 0
  %167 = vmatpush1.bf16.msra.mxu0 0
  %168 = vmatprep.subr.bf16.mxu0 0
  %169 = vmatpush1.bf16.msra.mxu0 0
  %170 = vmatprep.subr.bf16.mxu0 0
  %171 = vmatpush1.bf16.msra.mxu0 0
  %172 = vmatprep.mubr.bf16.mxu0 0
  %173 = vmatmul.mubr.bf16.gmra.mrb[0].mxu0 %v81
  %v174 = vpop.f32.mrb[0].mxu0
  %v175 = vadd.f32 0.0, %v174
  %v176 = vpop.f32.mrb[0].mxu0
  %v177 = vpop.f32.mrb[0].mxu0
  %v178 = vadd.f32 0.0, %v177
  %v179 = vpop.f32.mrb[0].mxu0
  %180 = vdwg.mxu0
  %v181 = vmul.f32 %v118, 0.5
  %v182 = vmul.f32 %v121, 0.5
  %v183 = vmul.f32 %v118, 0.044715
  %v184 = vmul.f32 %v121, 0.044715
  %v185 = vmul.f32 %v183, %v118
  %v186 = vmul.f32 %v184, %v121
  %v187 = vmul.f32 %v185, %v118
  %v188 = vmul.f32 %v186, %v121
  %v189 = vadd.f32 %v118, %v187
  %v190 = vadd.f32 %v121, %v188
  %v191 = vmul.f32 %v189, 0.7978846
  %v192 = vmul.f32 %v190, 0.7978846
  %v193 = vtanh.pop %v191
  %v194 = vtanh.pop %v192
  %v195 = vadd.f32 %v193, 1.0
  %v196 = vadd.f32 %v194, 1.0
  %v197 = vmul.f32 %v181, %v195
  %v198 = vmul.f32 %v182, %v196
  %v199 = vld [vmem:[#allocation3] sm:$0xff]
  %v200 = vld [vmem:[#allocation3 + $0x8] sm:$0xff]
  %v201 = vmul.f32 %v197, %v175
  %v202 = vmul.f32 %v198, %v178
  %v203 = vpack.c.bf16 %v202, %v201
  %v204 = vld [vmem:[%s4] sm:$0xf]
  %v205 = vld [vmem:[%s4 + $0x4] sm:$0xf]
  %v206 = vld [vmem:[%s4 + $0x8] sm:$0xf]
  %v207 = vld [vmem:[%s4 + $0xc] sm:$0xf]
  %v212 = vunpack.c.l.b16 %v204
  %v213 = vunpack.c.l.b16 %v205
  %v214 = vunpack.c.l.b16 %v206
  %v215 = vunpack.c.l.b16 %v207
  %v216 = vpack.c.b16 %v213, %v212
  %v217 = vpack.c.b16 %v215, %v214
  %v221 = vsel %vm79, %v203, 0
  %223 = vmatprep.subr.bf16.mxu0 0
  %224 = vmatpush1.bf16.msra.mxu0 %v216
  %225 = vmatprep.subr.bf16.mxu0 0
  %226 = vmatpush1.bf16.msra.mxu0 %v217
  %227 = vmatprep.subr.bf16.mxu0 0
  %228 = vmatpush1.bf16.msra.mxu0 0
  %229 = vmatprep.subr.bf16.mxu0 0
  %230 = vmatpush1.bf16.msra.mxu0 0
  %231 = vmatprep.subr.bf16.mxu0 0
  %232 = vmatpush1.bf16.msra.mxu0 0
  %233 = vmatprep.subr.bf16.mxu0 0
  %234 = vmatpush1.bf16.msra.mxu0 0
  %235 = vmatprep.subr.bf16.mxu0 0
  %236 = vmatpush1.bf16.msra.mxu0 0
  %237 = vmatprep.subr.bf16.mxu0 0
  %238 = vmatpush1.bf16.msra.mxu0 0
  %239 = vmatprep.subr.bf16.mxu0 0
  %240 = vmatpush1.bf16.msra.mxu0 0
  %241 = vmatprep.subr.bf16.mxu0 0
  %242 = vmatpush1.bf16.msra.mxu0 0
  %243 = vmatprep.subr.bf16.mxu0 0
  %244 = vmatpush1.bf16.msra.mxu0 0
  %245 = vmatprep.subr.bf16.mxu0 0
  %246 = vmatpush1.bf16.msra.mxu0 0
  %247 = vmatprep.subr.bf16.mxu0 0
  %248 = vmatpush1.bf16.msra.mxu0 0
  %249 = vmatprep.subr.bf16.mxu0 0
  %250 = vmatpush1.bf16.msra.mxu0 0
  %251 = vmatprep.subr.bf16.mxu0 0
  %252 = vmatpush1.bf16.msra.mxu0 0
  %253 = vmatprep.subr.bf16.mxu0 0
  %254 = vmatpush1.bf16.msra.mxu0 0
  %255 = vmatprep.mubr.bf16.mxu0 0
  %256 = vmatmul.mubr.bf16.gmra.mrb[0].mxu0 %v221
  %v257 = vpop.f32.mrb[0].mxu0
  %v258 = vadd.f32 0.0, %v257
  %v259 = vpop.f32.mrb[0].mxu0
  %v260 = vpop.f32.mrb[0].mxu0
  %v261 = vadd.f32 0.0, %v260
  %v262 = vpop.f32.mrb[0].mxu0
  %263 = vdwg.mxu0
  %v264 = vadd.f32 %v199, %v258
  %v265 = vadd.f32 %v200, %v261
  %266 = vst.msk [vmem:[#allocation3] sm:$0xff] %vm79, %v264
  %267 = vst.msk [vmem:[#allocation3 + $0x8] sm:$0xff] %vm79, %v265
  // Predicated region
  $region30: #{forward.30} parent=0 // pred_check
    %p268 = pneg %p24
  $region31: #{forward.30} parent=0 // pred_check_branch
    %270 = sbr.rel (%p268) target = $region33
  $region32: #{forward.30} parent=0 // pred_region
    %v271 = vld [vmem:[%s0] sm:$0xff]
    %v272 = vld [vmem:[%s0 + $0x8] sm:$0xff]
    %v273 = vld [vmem:[#allocation3] sm:$0xff]
    %v274 = vld [vmem:[#allocation3 + $0x8] sm:$0xff]
    %v275 = vld [vmem:[%s5] sm:$0x1]
    %v276 = vmul.f32 %v273, %v273
    %v277 = vmul.f32 %v274, %v274
    %v278 = vsel %vm79, %v276, 0.0
    %279 = vadd.xlane.f32.xlu0 %v278
    %v280 = vpop.xlane.xlu0 %279
    %v281 = vsel %vm79, %v277, 0.0
    %282 = vadd.xlane.f32.xlu0 %v281
    %v283 = vpop.xlane.xlu0 %282
    %v284 = vrcp.pop 32.0
    %v285 = vmul.f32 %v280, %v284
    %v286 = vmul.f32 %v283, %v284
    %v287 = vadd.f32 %v285, 1e-06
    %v288 = vadd.f32 %v286, 1e-06
    %v289 = vrsqrt.pop %v287
    %v290 = vrsqrt.pop %v288
    %v291 = vmul.f32 %v273, %v289
    %v292 = vmul.f32 %v274, %v290
    %v293 = vadd.f32 %v275, 1.0
    %v295 = vlaneseq
    %v296 = vshrl.u32 %v295, 7
    %v297 = vsub.s32 0, %v296
    %v298 = vrot.slane %v293, %v297
    %v300 = vmul.f32 %v291, %v298
    %v301 = vmul.f32 %v292, %v298
    %v302 = vadd.f32 %v271, %v300
    %v303 = vadd.f32 %v272, %v301
    %304 = vst.msk [vmem:[%s6] sm:$0xff] %vm79, %v302
    %305 = vst.msk [vmem:[%s6 + $0x8] sm:$0xff] %vm79, %v303
  $region33: #{forward.30} parent=0 // pred_fallthru
    _
  // Predicated region
  $region34: #{forward.30} parent=0 // pred_check
    _
  $region35: #{forward.30} parent=0 // pred_check_branch
    %307 = sbr.rel (0) target = $region37
  $region36: #{forward.30} parent=0 // pred_region
    _
  $region37: #{forward.30} parent=0 // pred_fallthru
    _
  // Predicated region
  $region38: #{forward.30} parent=0 // pred_check
    _
  $region39: #{forward.30} parent=0 // pred_check_branch
    %309 = sbr.rel (0) target = $region41
  $region40: #{forward.30} parent=0 // pred_region
    _
  $region41: #{forward.30} parent=0 // pred_fallthru
    _

// kernel: forward.27
$region0: #{forward.27}
  #allocation0 [shape = 'u32[]', space=smem, size = 0x4, offset = 0x4, fixed_abs, tag = 'smem constant byte address 0x4 - core index']
  #allocation1 [shape = 'u32[144,128]{1,0:T(1,128)}', space=vmem, size = 0x12000, scoped, tag = 'internal scratch']
  %s0 = inlined_call_operand.vmem [shape: f32[2,8,32], index: 0, kind: input, shape index: {}]
  %s1 = inlined_call_operand.vmem [shape: f32[1,32], index: 1, kind: input, shape index: {}]
  %s2 = inlined_call_operand.vmem [shape: bf16[3,32,32], index: 2, kind: input, shape index: {}]
  %s3 = inlined_call_operand.vmem [shape: f32[2,8,8], index: 3, kind: input, shape index: {}]
  %s4 = inlined_call_operand.vmem [shape: f32[2,8,8], index: 4, kind: input, shape index: {}]
  %s5 = inlined_call_operand.vmem [shape: bf16[3,2,8,32], index: 5, kind: output, shape index: {}]
  %s6 = sld [smem:[#allocation0]]
  $region53: #{forward.27} parent=0
    _
  %s8 = ssub.s32 1, %s6
  %s9 = scalar_select 0, %s8, %s6
  loop: start=0, step=1, limit=8
  $region2: #{forward.27} parent=0 // loop_pre_header
    _
  $region3: #{forward.27} parent=0 // loop_header
    %s11 = sphi 0, %s15
    %p12 = scmp.ge.s32.totalorder %s11, 8
    %s18 = sphi 0, %s37
    %s19 = sphi 0, %s33
    %s20 = sphi 0, %s29
    %s21 = sphi 0, %s18
    %s22 = sphi 0, %s19
    %s23 = sphi 0, %s20
    %s24 = sphi 0, %s21
    %s25 = sphi 0, %s22
    %s26 = sphi 0, %s23
    %s42 = sphi 0, %s44
    %s45 = sphi 0, %s42
    %s46 = sphi 0, %s45
    %s62 = sphi 0, %s46
    %s66 = sphi 0, %s66
    %s68 = sphi 0, %s66
    %s69 = sphi 0, %s68
    %s83 = sphi 0, %s69
    %s89 = sphi 0, %s91
    %s92 = sphi 0, %s89
    %s93 = sphi 0, %s92
    %s109 = sphi 0, %s93
    %s117 = sphi 0, %s119
    %s120 = sphi 0, %s117
    %s121 = sphi 0, %s120
    %s137 = sphi 0, %s121
    %s145 = sphi 0, %s147
    %s148 = sphi 0, %s145
    %s149 = sphi 0, %s148
    %s165 = sphi 0, %s149
    %s175 = sphi 0, %s177
    %s178 = sphi 0, %s175
    %s179 = sphi 0, %s178
    %s195 = sphi 0, %s179
  $region4: #{forward.27} parent=0 // loop_header_branch
    %14 = sbr.rel (%p12) target = $region8
  $region5: #{forward.27} parent=0 // loop_body
    %s16 = ssub.s32 %s11, 1
    %s17 = ssub.s32 %s11, 2
    %s27 = sadd.s32 1, %s20
    %p28 = scmp.ge.s32.totalorder %s27, 3
    %s29 = scalar_select %p28, 0, %s27
    %s30 = sadd.s32 1, %s19
    %s31 = scalar_select %p28, %s30, %s19
    %p32 = scmp.ge.s32.totalorder %s31, 1
    %s33 = scalar_select %p32, 0, %s31
    %s34 = sadd.s32 1, %s18
    %s35 = scalar_select %p32, %s34, %s18
    %p36 = scmp.ge.s32.totalorder %s35, 2
    %s37 = scalar_select %p36, 0, %s35
    %s38 = ssub.s32 %s18, %s37
    %s39 = ssub.s32 %s19, %s33
    %s40 = sor.u32 %s38, %s39
    %p41 = scmp.eq.s32.totalorder %s40, 0
    %s43 = sadd.s32 %s42, 1
    %s44 = scalar_select %p41, %s42, %s43
    %p47 = pneg %p41
    %p48 = scmp.eq.s32.totalorder %s11, 5
    %p49 = por %p47, %p48
    %p50 = scmp.ne.s32.totalorder %s42, %s45
    %p51 = scmp.eq.s32.totalorder %s11, 0
    %p52 = por %p50, %p51
    %p53 = scmp.ne.s32.totalorder %s42, %s45
    %p54 = scmp.eq.s32.totalorder %s16, 5
    %p55 = por %p53, %p54
    %p56 = scmp.ne.s32.totalorder %s45, %s46
    %p57 = scmp.eq.s32.totalorder %s16, 0
    %p58 = por %p56, %p57
    %p59 = scmp.ne.s32.totalorder %s45, %s46
    %p60 = scmp.eq.s32.totalorder %s17, 5
    %p61 = por %p59, %p60
    %p63 = scmp.ne.s32.totalorder %s46, %s62
    %p64 = scmp.eq.s32.totalorder %s17, 0
    %p65 = por %p63, %p64
    %s67 = sadd.s32 %s66, 1
    %p70 = scmp.eq.s32.totalorder %s11, 5
    %p71 = scmp.ne.s32.totalorder %s66, %s68
    %p72 = scmp.eq.s32.totalorder %s11, 0
    %p73 = por %p71, %p72
    %p74 = scmp.ne.s32.totalorder %s66, %s68
    %p75 = scmp.eq.s32.totalorder %s16, 5
    %p76 = por %p74, %p75
    %p77 = scmp.ne.s32.totalorder %s68, %s69
    %p78 = scmp.eq.s32.totalorder %s16, 0
    %p79 = por %p77, %p78
    %p80 = scmp.ne.s32.totalorder %s68, %s69
    %p81 = scmp.eq.s32.totalorder %s17, 5
    %p82 = por %p80, %p81
    %p84 = scmp.ne.s32.totalorder %s69, %s83
    %p85 = scmp.eq.s32.totalorder %s17, 0
    %p86 = por %p84, %p85
    %s87 = ssub.s32 %s20, %s29
    %p88 = scmp.eq.s32.totalorder %s87, 0
    %s90 = sadd.s32 %s89, 1
    %s91 = scalar_select %p88, %s89, %s90
    %p94 = pneg %p88
    %p95 = scmp.eq.s32.totalorder %s11, 5
    %p96 = por %p94, %p95
    %p97 = scmp.ne.s32.totalorder %s89, %s92
    %p98 = scmp.eq.s32.totalorder %s11, 0
    %p99 = por %p97, %p98
    %p100 = scmp.ne.s32.totalorder %s89, %s92
    %p101 = scmp.eq.s32.totalorder %s16, 5
    %p102 = por %p100, %p101
    %p103 = scmp.ne.s32.totalorder %s92, %s93
    %p104 = scmp.eq.s32.totalorder %s16, 0
    %p105 = por %p103, %p104
    %p106 = scmp.ne.s32.totalorder %s92, %s93
    %p107 = scmp.eq.s32.totalorder %s17, 5
    %p108 = por %p106, %p107
    %p110 = scmp.ne.s32.totalorder %s93, %s109
    %p111 = scmp.eq.s32.totalorder %s17, 0
    %p112 = por %p110, %p111
    %s113 = ssub.s32 %s18, %s37
    %s114 = ssub.s32 %s19, %s33
    %s115 = sor.u32 %s113, %s114
    %p116 = scmp.eq.s32.totalorder %s115, 0
    %s118 = sadd.s32 %s117, 1
    %s119 = scalar_select %p116, %s117, %s118
    %p122 = pneg %p116
    %p123 = scmp.eq.s32.totalorder %s11, 5
    %p124 = por %p122, %p123
    %p125 = scmp.ne.s32.totalorder %s117, %s120
    %p126 = scmp.eq.s32.totalorder %s11, 0
    %p127 = por %p125, %p126
    %p128 = scmp.ne.s32.totalorder %s117, %s120
    %p129 = scmp.eq.s32.totalorder %s16, 5
    %p130 = por %p128, %p129
    %p131 = scmp.ne.s32.totalorder %s120, %s121
    %p132 = scmp.eq.s32.totalorder %s16, 0
    %p133 = por %p131, %p132
    %p134 = scmp.ne.s32.totalorder %s120, %s121
    %p135 = scmp.eq.s32.totalorder %s17, 5
    %p136 = por %p134, %p135
    %p138 = scmp.ne.s32.totalorder %s121, %s137
    %p139 = scmp.eq.s32.totalorder %s17, 0
    %p140 = por %p138, %p139
    %s141 = ssub.s32 %s18, %s37
    %s142 = ssub.s32 %s19, %s33
    %s143 = sor.u32 %s141, %s142
    %p144 = scmp.eq.s32.totalorder %s143, 0
    %s146 = sadd.s32 %s145, 1
    %s147 = scalar_select %p144, %s145, %s146
    %p150 = pneg %p144
    %p151 = scmp.eq.s32.totalorder %s11, 5
    %p152 = por %p150, %p151
    %p153 = scmp.ne.s32.totalorder %s145, %s148
    %p154 = scmp.eq.s32.totalorder %s11, 0
    %p155 = por %p153, %p154
    %p156 = scmp.ne.s32.totalorder %s145, %s148
    %p157 = scmp.eq.s32.totalorder %s16, 5
    %p158 = por %p156, %p157
    %p159 = scmp.ne.s32.totalorder %s148, %s149
    %p160 = scmp.eq.s32.totalorder %s16, 0
    %p161 = por %p159, %p160
    %p162 = scmp.ne.s32.totalorder %s148, %s149
    %p163 = scmp.eq.s32.totalorder %s17, 5
    %p164 = por %p162, %p163
    %p166 = scmp.ne.s32.totalorder %s149, %s165
    %p167 = scmp.eq.s32.totalorder %s17, 0
    %p168 = por %p166, %p167
    %s169 = ssub.s32 %s20, %s29
    %s170 = ssub.s32 %s18, %s37
    %s171 = sor.u32 %s169, %s170
    %s172 = ssub.s32 %s19, %s33
    %s173 = sor.u32 %s171, %s172
    %p174 = scmp.eq.s32.totalorder %s173, 0
    %s176 = sadd.s32 %s175, 1
    %s177 = scalar_select %p174, %s175, %s176
    %p180 = pneg %p174
    %p181 = scmp.eq.s32.totalorder %s11, 5
    %p182 = por %p180, %p181
    %p183 = scmp.ne.s32.totalorder %s175, %s178
    %p184 = scmp.eq.s32.totalorder %s11, 0
    %p185 = por %p183, %p184
    %p186 = scmp.ne.s32.totalorder %s175, %s178
    %p187 = scmp.eq.s32.totalorder %s16, 5
    %p188 = por %p186, %p187
    %p189 = scmp.ne.s32.totalorder %s178, %s179
    %p190 = scmp.eq.s32.totalorder %s16, 0
    %p191 = por %p189, %p190
    %p192 = scmp.ne.s32.totalorder %s178, %s179
    %p193 = scmp.eq.s32.totalorder %s17, 5
    %p194 = por %p192, %p193
    %p196 = scmp.ne.s32.totalorder %s179, %s195
    %p197 = scmp.eq.s32.totalorder %s17, 0
    %p198 = por %p196, %p197
    %p199 = scmp.le.s32.totalorder 1, %s11
    %p200 = scmp.lt.s32.totalorder %s11, 7
    %p201 = pnand %p199, %p200
    %p202 = pneg %p201
    // Predicated region
    $region9: #{forward.27} parent=5 // pred_check
      _
    $region10: #{forward.27} parent=5 // pred_check_branch
      %204 = sbr.rel (%p201) target = $region12
    $region11: #{forward.27} parent=5 // pred_region
      %s205 = ssub.s32 %s11, 1
      // Predicated region
      $region13: #{forward.27} parent=11 // pred_check
        %p206 = pneg %p79
      $region14: #{forward.27} parent=11 // pred_check_branch
        %208 = sbr.rel (%p206) target = $region16
      $region15: #{forward.27} parent=11 // pred_region
        _
      $region16: #{forward.27} parent=11 // pred_fallthru
        _
    $region12: #{forward.27} parent=5 // pred_fallthru
      _
    %p209 = scmp.lt.s32.totalorder %s11, 6
    // Predicated region
    $region17: #{forward.27} parent=5 // pred_check
      %p210 = pneg %p209
    $region18: #{forward.27} parent=5 // pred_check_branch
      %212 = sbr.rel (%p210) target = $region20
    $region19: #{forward.27} parent=5 // pred_region
      // Predicated region
      $region21: #{forward.27} parent=19 // pred_check
        %p213 = pneg %p52
      $region22: #{forward.27} parent=19 // pred_check_branch
        %215 = sbr.rel (%p213) target = $region24
      $region23: #{forward.27} parent=19 // pred_region
        %p216 = scmp.lt.s32.totalorder %s18, 1
        %s217 = scalar_select %p216, %s18, 1
        %p218 = scmp.lt.s32.totalorder %s19, 0
        %s219 = scalar_select %p218, %s19, 0
        %s220 = sadd.s32 %s219, %s217
        %s221 = smul.addr %s220, 8
        %s222 = scalar_lea.vmem %s0, %s221
      $region24: #{forward.27} parent=19 // pred_fallthru
        _
      // Predicated region
      $region25: #{forward.27} parent=19 // pred_check
        %p223 = pneg %p99
      $region26: #{forward.27} parent=19 // pred_check_branch
        %225 = sbr.rel (%p223) target = $region28
      $region27: #{forward.27} parent=19 // pred_region
        %p226 = scmp.lt.s32.totalorder %s20, 2
        %s227 = scalar_select %p226, %s20, 2
        %s228 = smul.addr %s227, 4
        %s229 = smul.addr %s228, 4
        %s230 = scalar_lea.vmem %s2, %s229
      $region28: #{forward.27} parent=19 // pred_fallthru
        _
      // Predicated region
      $region29: #{forward.27} parent=19 // pred_check
        %p231 = pneg %p127
      $region30: #{forward.27} parent=19 // pred_check_branch
        %233 = sbr.rel (%p231) target = $region32
      $region31: #{forward.27} parent=19 // pred_region
        %p234 = scmp.lt.s32.totalorder %s18, 1
        %s235 = scalar_select %p234, %s18, 1
        %p236 = scmp.lt.s32.totalorder %s19, 0
        %s237 = scalar_select %p236, %s19, 0
        %s238 = sadd.s32 %s237, %s235
        %s239 = smul.addr %s238, 8
        %s240 = scalar_lea.vmem %s3, %s239
      $region32: #{forward.27} parent=19 // pred_fallthru
        _
      // Predicated region
      $region33: #{forward.27} parent=19 // pred_check
        %p241 = pneg %p155
      $region34: #{forward.27} parent=19 // pred_check_branch
        %243 = sbr.rel (%p241) target = $region36
      $region35: #{forward.27} parent=19 // pred_region
        %p244 = scmp.lt.s32.totalorder %s18, 1
        %s245 = scalar_select %p244, %s18, 1
        %p246 = scmp.lt.s32.totalorder %s19, 0
        %s247 = scalar_select %p246, %s19, 0
        %s248 = sadd.s32 %s247, %s245
        %s249 = smul.addr %s248, 8
        %s250 = scalar_lea.vmem %s4, %s249
      $region36: #{forward.27} parent=19 // pred_fallthru
        _
    $region20: #{forward.27} parent=5 // pred_fallthru
      _
    %p251 = scmp.le.s32.totalorder 1, %s11
    %p252 = scmp.lt.s32.totalorder %s11, 7
    %p253 = pnand %p251, %p252
    %p254 = pneg %p253
    // Predicated region
    $region37: #{forward.27} parent=5 // pred_check
      _
    $region38: #{forward.27} parent=5 // pred_check_branch
      %256 = sbr.rel (%p253) target = $region40
    $region39: #{forward.27} parent=5 // pred_region
      %s257 = ssub.s32 %s11, 1
      %p258 = scmp.lt.s32.totalorder %s21, 1
      %s259 = scalar_select %p258, %s21, 1
      %p260 = scmp.lt.s32.totalorder %s22, 0
      %s261 = scalar_select %p260, %s22, 0
      %s262 = sadd.s32 %s261, %s259
      %s263 = smul.addr %s262, 8
      %s264 = scalar_lea.vmem %s0, %s263
      %p265 = pneg %p58
      %p266 = pneg %p55
      %p267 = pneg %p79
      %p268 = pneg %p76
      %p269 = scmp.lt.s32.totalorder %s23, 2
      %s270 = scalar_select %p269, %s23, 2
      %s271 = smul.addr %s270, 4
      %s272 = smul.addr %s271, 4
      %s273 = scalar_lea.vmem %s2, %s272
      %p274 = pneg %p105
      %p275 = pneg %p102
      %p276 = scmp.lt.s32.totalorder %s21, 1
      %s277 = scalar_select %p276, %s21, 1
      %p278 = scmp.lt.s32.totalorder %s22, 0
      %s279 = scalar_select %p278, %s22, 0
      %s280 = sadd.s32 %s279, %s277
      %s281 = smul.addr %s280, 8
      %s282 = scalar_lea.vmem %s3, %s281
      %p283 = pneg %p133
      %p284 = pneg %p130
      %p285 = scmp.lt.s32.totalorder %s21, 1
      %s286 = scalar_select %p285, %s21, 1
      %p287 = scmp.lt.s32.totalorder %s22, 0
      %s288 = scalar_select %p287, %s22, 0
      %s289 = sadd.s32 %s288, %s286
      %s290 = smul.addr %s289, 8
      %s291 = scalar_lea.vmem %s4, %s290
      %p292 = pneg %p161
      %p293 = pneg %p158
      %p294 = pneg %p191
      %p295 = pneg %p188
      %p296 = scmp.lt.s32.totalorder %s23, 2
      %s297 = scalar_select %p296, %s23, 2
      %p298 = scmp.lt.s32.totalorder %s21, 1
      %s299 = scalar_select %p298, %s21, 1
      %p300 = scmp.lt.s32.totalorder %s22, 0
      %s301 = scalar_select %p300, %s22, 0
      %s302 = sadd.s32 %s301, %s299
      %s303 = smul.addr %s297, 2
      %s304 = sadd.s32 %s302, %s303
      %s305 = smul.addr %s304, 4
      %s306 = scalar_lea.vmem %s5, %s305
      %p307 = scmp.lt.s32.totalorder %s21, 1
      %s308 = scalar_select %p307, %s21, 1
      %p309 = scmp.lt.s32.totalorder %s22, 0
      %s310 = scalar_select %p309, %s22, 0
      %s311 = sadd.s32 %s310, %s308
      %s312 = smul.addr %s311, 8
      %s313 = scalar_lea.vmem %s0, %s312
      %p314 = scmp.lt.s32.totalorder %s23, 2
      %s315 = scalar_select %p314, %s23, 2
      %s316 = smul.addr %s315, 4
      %s317 = smul.addr %s316, 4
      %s318 = scalar_lea.vmem %s2, %s317
      %p319 = scmp.lt.s32.totalorder %s21, 1
      %s320 = scalar_select %p319, %s21, 1
      %p321 = scmp.lt.s32.totalorder %s22, 0
      %s322 = scalar_select %p321, %s22, 0
      %s323 = sadd.s32 %s322, %s320
      %s324 = smul.addr %s323, 8
      %s325 = scalar_lea.vmem %s3, %s324
      %p326 = scmp.lt.s32.totalorder %s21, 1
      %s327 = scalar_select %p326, %s21, 1
      %p328 = scmp.lt.s32.totalorder %s22, 0
      %s329 = scalar_select %p328, %s22, 0
      %s330 = sadd.s32 %s329, %s327
      %s331 = smul.addr %s330, 8
      %s332 = scalar_lea.vmem %s4, %s331
      %p333 = scmp.lt.s32.totalorder %s23, 2
      %s334 = scalar_select %p333, %s23, 2
      %p335 = scmp.lt.s32.totalorder %s21, 1
      %s336 = scalar_select %p335, %s21, 1
      %p337 = scmp.lt.s32.totalorder %s22, 0
      %s338 = scalar_select %p337, %s22, 0
      %s339 = sadd.s32 %s338, %s336
      %s340 = smul.addr %s334, 2
      %s341 = sadd.s32 %s339, %s340
      %s342 = smul.addr %s341, 4
      %s343 = scalar_lea.vmem %s5, %s342
      %v345 = vld [vmem:[%s313] sm:$0xff]
      %v346 = vld [vmem:[%s1] sm:$0x1]
      %v347 = vmul.f32 %v345, %v345
      %vm348 = vcmask 261120
      %v349 = vsel %vm348, %v347, 0.0
      %350 = vadd.xlane.f32.xlu0 %v349
      %v351 = vpop.xlane.xlu0 %350
      %v352 = vrcp.pop 32.0
      %v353 = vmul.f32 %v351, %v352
      %v354 = vadd.f32 %v353, 1e-06
      %v355 = vrsqrt.pop %v354
      %v356 = vmul.f32 %v345, %v355
      %v357 = vadd.f32 %v346, 1.0
      %v359 = vlaneseq
      %v360 = vshrl.u32 %v359, 7
      %v361 = vsub.s32 0, %v360
      %v362 = vrot.slane %v357, %v361
      %v364 = vmul.f32 %v356, %v362
      %v365 = vpack.c.bf16 %v364, %v364
      %v366 = vld [vmem:[%s318] sm:$0xf]
      %v367 = vld [vmem:[%s318 + $0x4] sm:$0xf]
      %v368 = vld [vmem:[%s318 + $0x8] sm:$0xf]
      %v369 = vld [vmem:[%s318 + $0xc] sm:$0xf]
      %v374 = vunpack.c.l.b16 %v366
      %v375 = vunpack.c.l.b16 %v367
      %v376 = vunpack.c.l.b16 %v368
      %v377 = vunpack.c.l.b16 %v369
      %v378 = vpack.c.b16 %v375, %v374
      %v379 = vpack.c.b16 %v377, %v376
      %v383 = vsel %vm348, %v365, 0
      %385 = vmatprep.subr.bf16.mxu0 0
      %386 = vmatpush1.bf16.msra.mxu0 %v378
      %387 = vmatprep.subr.bf16.mxu0 0
      %388 = vmatpush1.bf16.msra.mxu0 %v379
      %389 = vmatprep.subr.bf16.mxu0 0
      %390 = vmatpush1.bf16.msra.mxu0 0
      %391 = vmatprep.subr.bf16.mxu0 0
      %392 = vmatpush1.bf16.msra.mxu0 0
      %393 = vmatprep.subr.bf16.mxu0 0
      %394 = vmatpush1.bf16.msra.mxu0 0
      %395 = vmatprep.subr.bf16.mxu0 0
      %396 = vmatpush1.bf16.msra.mxu0 0
      %397 = vmatprep.subr.bf16.mxu0 0
      %398 = vmatpush1.bf16.msra.mxu0 0
      %399 = vmatprep.subr.bf16.mxu0 0
      %400 = vmatpush1.bf16.msra.mxu0 0
      %401 = vmatprep.subr.bf16.mxu0 0
      %402 = vmatpush1.bf16.msra.mxu0 0
      %403 = vmatprep.subr.bf16.mxu0 0
      %404 = vmatpush1.bf16.msra.mxu0 0
      %405 = vmatprep.subr.bf16.mxu0 0
      %406 = vmatpush1.bf16.msra.mxu0 0
      %407 = vmatprep.subr.bf16.mxu0 0
      %408 = vmatpush1.bf16.msra.mxu0 0
      %409 = vmatprep.subr.bf16.mxu0 0
      %410 = vmatpush1.bf16.msra.mxu0 0
      %411 = vmatprep.subr.bf16.mxu0 0
      %412 = vmatpush1.bf16.msra.mxu0 0
      %413 = vmatprep.subr.bf16.mxu0 0
      %414 = vmatpush1.bf16.msra.mxu0 0
      %415 = vmatprep.subr.bf16.mxu0 0
      %416 = vmatpush1.bf16.msra.mxu0 0
      %417 = vmatprep.mubr.bf16.mxu0 0
      %418 = vmatmul.mubr.bf16.gmra.mrb[0].mxu0 %v383
      %v419 = vpop.f32.mrb[0].mxu0
      %v420 = vadd.f32 0.0, %v419
      %v421 = vpop.f32.mrb[0].mxu0
      %v422 = vpop.f32.mrb[0].mxu0
      %v423 = vpop.f32.mrb[0].mxu0
      %424 = vdwg.mxu0
      %p425 = scmp.lt.s32.totalorder %s23, 2
      %s426 = scalar_select %p425, 1, 0
      %s427 = scvt.s32.f32 %s426
      %v428 = vld [vmem:[%s325] sm:$0xff]
      %v429 = vstv %s427
      %v430 = vmul.f32 %v428, %v429
      %s431 = ssub.f32 1.0, %s427
      %v432 = vstv %s431
      %v433 = vadd.f32 %v430, %v432
      %v434 = vld [vmem:[%s332] sm:$0xff]
      %v435 = vmul.f32 %v434, %v429
      %v436 = vsub.f32 0.0, %v420
      %438 = vrot.lane.b32.xlu0 %v436, 124
      %v439 = vpop.permute.xlu0 %438
      %442 = vrot.lane.b32.xlu0 %v420, 4
      %v443 = vpop.permute.xlu0 %442
      %vm445 = vcmask 31744
      %v446 = vsel %vm445, %v439, %v443
      %v447 = vmul.f32 %v420, %v433
      %v448 = vmul.f32 %v446, %v435
      %v449 = vadd.f32 %v447, %v448
      %v450 = vpack.c.bf16 %v449, %v449
      %vm451 = vcmask 60416
      %452 = vst.msk [vmem:[%s343] sm:$0xf] %vm451, %v450
      %453 = vrot.lane.b32.xlu0 %v436, 116
      %v454 = vpop.permute.xlu0 %453
      %456 = vrot.lane.b32.xlu0 %v420, 124
      %v457 = vpop.permute.xlu0 %456
      %v459 = vsel %vm445, %v454, %v457
      %461 = vrot.lane.b32.xlu0 %v433, 8
      %v462 = vpop.permute.xlu0 %461
      %v464 = vmul.f32 %v420, %v462
      %v465 = vmul.f32 %v459, %v435
      %467 = vrot.lane.b32.xlu0 %v465, 8
      %v468 = vpop.permute.xlu0 %467
      %v470 = vadd.f32 %v464, %v468
      %v471 = vpack.c.bf16 %v470, %v470
      %vm472 = vcmask 126016
      %473 = vst.msk [vmem:[%s343] sm:$0xf] %vm472, %v471
      %474 = vrot.lane.b32.xlu0 %v436, 108
      %v475 = vpop.permute.xlu0 %474
      %477 = vrot.lane.b32.xlu0 %v420, 116
      %v478 = vpop.permute.xlu0 %477
      %v480 = vsel %vm445, %v475, %v478
      %481 = vrot.lane.b32.xlu0 %v433, 16
      %v482 = vpop.permute.xlu0 %481
      %v484 = vmul.f32 %v420, %v482
      %v485 = vmul.f32 %v480, %v435
      %487 = vrot.lane.b32.xlu0 %v485, 16
      %v488 = vpop.permute.xlu0 %487
      %v490 = vadd.f32 %v484, %v488
      %v491 = vpack.c.bf16 %v490, %v490
      %vm492 = vcmask 191616
      %493 = vst.msk [vmem:[%s343] sm:$0xf] %vm492, %v491
      %494 = vrot.lane.b32.xlu0 %v436, 100
      %v495 = vpop.permute.xlu0 %494
      %497 = vrot.lane.b32.xlu0 %v420, 108
      %v498 = vpop.permute.xlu0 %497
      %v500 = vsel %vm445, %v495, %v498
      %501 = vrot.lane.b32.xlu0 %v433, 24
      %v502 = vpop.permute.xlu0 %501
      %v504 = vmul.f32 %v420, %v502
      %v505 = vmul.f32 %v500, %v435
      %507 = vrot.lane.b32.xlu0 %v505, 24
      %v508 = vpop.permute.xlu0 %507
      %v510 = vadd.f32 %v504, %v508
      %v511 = vpack.c.bf16 %v510, %v510
      %vm512 = vcmask 257216
      %513 = vst.msk [vmem:[%s343] sm:$0xf] %vm512, %v511
      %p514 = scmp.lt.s32.totalorder %s23, 2
      %s515 = scalar_select %p514, %s23, 2
      %p516 = scmp.lt.s32.totalorder %s21, 1
      %s517 = scalar_select %p516, %s21, 1
      %p518 = scmp.lt.s32.totalorder %s22, 0
      %s519 = scalar_select %p518, %s22, 0
      %s520 = sadd.s32 %s519, %s517
      %s521 = smul.addr %s515, 2
      %s522 = sadd.s32 %s520, %s521
      %s523 = smul.addr %s522, 4
      %s524 = scalar_lea.vmem %s5, %s523
      // Predicated region
      $region41: #{forward.27} parent=39 // pred_check
        %p525 = pneg %p188
      $region42: #{forward.27} parent=39 // pred_check_branch
        %527 = sbr.rel (%p525) target = $region44
      $region43: #{forward.27} parent=39 // pred_region
        _
      $region44: #{forward.27} parent=39 // pred_fallthru
        _
    $region40: #{forward.27} parent=5 // pred_fallthru
      _
    %p528 = scmp.le.s32.totalorder 2, %s11
    // Predicated region
    $region45: #{forward.27} parent=5 // pred_check
      %p529 = pneg %p528
    $region46: #{forward.27} parent=5 // pred_check_branch
      %531 = sbr.rel (%p529) target = $region48
    $region47: #{forward.27} parent=5 // pred_region
      %s532 = ssub.s32 %s11, 2
      // Predicated region
      $region49: #{forward.27} parent=47 // pred_check
        %p533 = pneg %p194
      $region50: #{forward.27} parent=47 // pred_check_branch
        %535 = sbr.rel (%p533) target = $region52
      $region51: #{forward.27} parent=47 // pred_region
        %p536 = scmp.lt.s32.totalorder %s26, 2
        %s537 = scalar_select %p536, %s26, 2
        %p538 = scmp.lt.s32.totalorder %s24, 1
        %s539 = scalar_select %p538, %s24, 1
        %p540 = scmp.lt.s32.totalorder %s25, 0
        %s541 = scalar_select %p540, %s25, 0
        %s542 = sadd.s32 %s541, %s539
        %s543 = smul.addr %s537, 2
        %s544 = sadd.s32 %s542, %s543
        %s545 = smul.addr %s544, 4
        %s546 = scalar_lea.vmem %s5, %s545
      $region52: #{forward.27} parent=47 // pred_fallthru
        _
    $region48: #{forward.27} parent=5 // pred_fallthru
      _
  $region6: #{forward.27} parent=0 // loop_footer
    %s15 = sadd.s32 1, %s11
  $region7: #{forward.27} parent=0 // loop_footer_branch
    %10 = sbr.rel target = $region3
  $region8: #{forward.27} parent=0 // loop_exit
    _

// kernel: forward.39
$region0: #{forward.39}
  #allocation0 [shape = 'u32[]', space=smem, size = 0x4, offset = 0x4, fixed_abs, tag = 'smem constant byte address 0x4 - core index']
  #allocation1 [shape = 'u32[144,128]{1,0:T(1,128)}', space=vmem, size = 0x12000, scoped, tag = 'internal scratch']
  #allocation2 [shape = 'bf16[16,32]{1,0:T(16,128)(2,1)}', space=vmem, size = 0x1000, scoped, tag = 'scratch operand']
  #allocation3 [shape = 'f32[16,32]{1,0:T(8,128)}', space=vmem, size = 0x2000, scoped, tag = 'scratch operand']
  %s0 = inlined_call_operand.vmem [shape: f32[16,32], index: 0, kind: input, shape index: {}]
  %s1 = inlined_call_operand.vmem [shape: f32[1,32], index: 1, kind: input, shape index: {}]
  %s2 = inlined_call_operand.vmem [shape: bf16[32,128], index: 2, kind: input, shape index: {}]
  %s3 = inlined_call_operand.vmem [shape: bf16[32,128], index: 3, kind: input, shape index: {}]
  %s4 = inlined_call_operand.vmem [shape: bf16[128,32], index: 4, kind: input, shape index: {}]
  %s5 = inlined_call_operand.vmem [shape: f32[1,32], index: 5, kind: input, shape index: {}]
  %s6 = inlined_call_operand.vmem [shape: f32[16,32], index: 6, kind: output, shape index: {}]
  %s7 = sld [smem:[#allocation0]]
  $region42: #{forward.39} parent=0
    _
  %s9 = ssub.s32 1, %s7
  %s10 = scalar_select 0, %s9, %s7
  // Predicated region
  $region2: #{forward.39} parent=0 // pred_check
    _
  $region3: #{forward.39} parent=0 // pred_check_branch
    %12 = sbr.rel (0) target = $region5
  $region4: #{forward.39} parent=0 // pred_region
    _
  $region5: #{forward.39} parent=0 // pred_fallthru
    _
  // Predicated region
  $region6: #{forward.39} parent=0 // pred_check
    _
  $region7: #{forward.39} parent=0 // pred_check_branch
    %14 = sbr.rel (0) target = $region9
  $region8: #{forward.39} parent=0 // pred_region
    _
  $region9: #{forward.39} parent=0 // pred_fallthru
    _
  // Predicated region
  $region10: #{forward.39} parent=0 // pred_check
    _
  $region11: #{forward.39} parent=0 // pred_check_branch
    %16 = sbr.rel (0) target = $region13
  $region12: #{forward.39} parent=0 // pred_region
    _
  $region13: #{forward.39} parent=0 // pred_fallthru
    _
  // Predicated region
  $region14: #{forward.39} parent=0 // pred_check
    _
  $region15: #{forward.39} parent=0 // pred_check_branch
    %18 = sbr.rel (0) target = $region17
  $region16: #{forward.39} parent=0 // pred_region
    _
  $region17: #{forward.39} parent=0 // pred_fallthru
    _
  // Predicated region
  $region18: #{forward.39} parent=0 // pred_check
    _
  $region19: #{forward.39} parent=0 // pred_check_branch
    %20 = sbr.rel (0) target = $region21
  $region20: #{forward.39} parent=0 // pred_region
    _
  $region21: #{forward.39} parent=0 // pred_fallthru
    _
  // Predicated region
  $region22: #{forward.39} parent=0 // pred_check
    _
  $region23: #{forward.39} parent=0 // pred_check_branch
    %22 = sbr.rel (0) target = $region25
  $region24: #{forward.39} parent=0 // pred_region
    _
  $region25: #{forward.39} parent=0 // pred_fallthru
    _
  %p24 = scmp.eq.s32.totalorder 0, 0
  // Predicated region
  $region26: #{forward.39} parent=0 // pred_check
    %p25 = pneg %p24
  $region27: #{forward.39} parent=0 // pred_check_branch
    %27 = sbr.rel (%p25) target = $region29
  $region28: #{forward.39} parent=0 // pred_region
    %v28 = vld [vmem:[%s0] sm:$0xff]
    %v29 = vld [vmem:[%s0 + $0x8] sm:$0xff]
    %v30 = vld [vmem:[%s1] sm:$0x1]
    %v31 = vmul.f32 %v28, %v28
    %v32 = vmul.f32 %v29, %v29
    %vm33 = vcmask 261120
    %v34 = vsel %vm33, %v31, 0.0
    %35 = vadd.xlane.f32.xlu0 %v34
    %v36 = vpop.xlane.xlu0 %35
    %v37 = vsel %vm33, %v32, 0.0
    %38 = vadd.xlane.f32.xlu0 %v37
    %v39 = vpop.xlane.xlu0 %38
    %v40 = vrcp.pop 32.0
    %v41 = vmul.f32 %v36, %v40
    %v42 = vmul.f32 %v39, %v40
    %v43 = vadd.f32 %v41, 1e-06
    %v44 = vadd.f32 %v42, 1e-06
    %v45 = vrsqrt.pop %v43
    %v46 = vrsqrt.pop %v44
    %v47 = vmul.f32 %v28, %v45
    %v48 = vmul.f32 %v29, %v46
    %v49 = vadd.f32 %v30, 1.0
    %v51 = vlaneseq
    %v52 = vshrl.u32 %v51, 7
    %v53 = vsub.s32 0, %v52
    %v54 = vrot.slane %v49, %v53
    %v56 = vmul.f32 %v47, %v54
    %v57 = vmul.f32 %v48, %v54
    %v58 = vpack.c.bf16 %v57, %v56
    %59 = vst.msk [vmem:[#allocation2] sm:$0xff] %vm33, %v58
    %60 = vst.msk [vmem:[#allocation3] sm:$0xff] %vm33, 0.0
    %61 = vst.msk [vmem:[#allocation3 + $0x8] sm:$0xff] %vm33, 0.0
  $region29: #{forward.39} parent=0 // pred_fallthru
    _
  %v62 = vld [vmem:[#allocation2] sm:$0xff]
  %v63 = vld [vmem:[%s2] sm:$0xf]
  %v64 = vld [vmem:[%s2 + $0x4] sm:$0xf]
  %v65 = vld [vmem:[%s2 + $0x8] sm:$0xf]
  %v66 = vld [vmem:[%s2 + $0xc] sm:$0xf]
  %v71 = vunpack.c.l.b16 %v63
  %v72 = vunpack.c.l.b16 %v64
  %v73 = vunpack.c.l.b16 %v65
  %v74 = vunpack.c.l.b16 %v66
  %v75 = vpack.c.b16 %v72, %v71
  %v76 = vpack.c.b16 %v74, %v73
  %vm79 = vcmask 261120
  %v81 = vsel %vm79, %v62, 0
  %83 = vmatprep.subr.bf16.mxu0 0
  %84 = vmatpush1.bf16.msra.mxu0 %v75
  %85 = vmatprep.subr.bf16.mxu0 0
  %86 = vmatpush1.bf16.msra.mxu0 %v76
  %87 = vmatprep.subr.bf16.mxu0 0
  %88 = vmatpush1.bf16.msra.mxu0 0
  %89 = vmatprep.subr.bf16.mxu0 0
  %90 = vmatpush1.bf16.msra.mxu0 0
  %91 = vmatprep.subr.bf16.mxu0 0
  %92 = vmatpush1.bf16.msra.mxu0 0
  %93 = vmatprep.subr.bf16.mxu0 0
  %94 = vmatpush1.bf16.msra.mxu0 0
  %95 = vmatprep.subr.bf16.mxu0 0
  %96 = vmatpush1.bf16.msra.mxu0 0
  %97 = vmatprep.subr.bf16.mxu0 0
  %98 = vmatpush1.bf16.msra.mxu0 0
  %99 = vmatprep.subr.bf16.mxu0 0
  %100 = vmatpush1.bf16.msra.mxu0 0
  %101 = vmatprep.subr.bf16.mxu0 0
  %102 = vmatpush1.bf16.msra.mxu0 0
  %103 = vmatprep.subr.bf16.mxu0 0
  %104 = vmatpush1.bf16.msra.mxu0 0
  %105 = vmatprep.subr.bf16.mxu0 0
  %106 = vmatpush1.bf16.msra.mxu0 0
  %107 = vmatprep.subr.bf16.mxu0 0
  %108 = vmatpush1.bf16.msra.mxu0 0
  %109 = vmatprep.subr.bf16.mxu0 0
  %110 = vmatpush1.bf16.msra.mxu0 0
  %111 = vmatprep.subr.bf16.mxu0 0
  %112 = vmatpush1.bf16.msra.mxu0 0
  %113 = vmatprep.subr.bf16.mxu0 0
  %114 = vmatpush1.bf16.msra.mxu0 0
  %115 = vmatprep.mubr.bf16.mxu0 0
  %116 = vmatmul.mubr.bf16.gmra.mrb[0].mxu0 %v81
  %v117 = vpop.f32.mrb[0].mxu0
  %v118 = vadd.f32 0.0, %v117
  %v119 = vpop.f32.mrb[0].mxu0
  %v120 = vpop.f32.mrb[0].mxu0
  %v121 = vadd.f32 0.0, %v120
  %v122 = vpop.f32.mrb[0].mxu0
  %123 = vdwg.mxu0
  %v124 = vld [vmem:[%s3] sm:$0xf]
  %v125 = vld [vmem:[%s3 + $0x4] sm:$0xf]
  %v126 = vld [vmem:[%s3 + $0x8] sm:$0xf]
  %v127 = vld [vmem:[%s3 + $0xc] sm:$0xf]
  %v132 = vunpack.c.l.b16 %v124
  %v133 = vunpack.c.l.b16 %v125
  %v134 = vunpack.c.l.b16 %v126
  %v135 = vunpack.c.l.b16 %v127
  %v136 = vpack.c.b16 %v133, %v132
  %v137 = vpack.c.b16 %v135, %v134
  %140 = vmatprep.subr.bf16.mxu0 0
  %141 = vmatpush1.bf16.msra.mxu0 %v136
  %142 = vmatprep.subr.bf16.mxu0 0
  %143 = vmatpush1.bf16.msra.mxu0 %v137
  %144 = vmatprep.subr.bf16.mxu0 0
  %145 = vmatpush1.bf16.msra.mxu0 0
  %146 = vmatprep.subr.bf16.mxu0 0
  %147 = vmatpush1.bf16.msra.mxu0 0
  %148 = vmatprep.subr.bf16.mxu0 0
  %149 = vmatpush1.bf16.msra.mxu0 0
  %150 = vmatprep.subr.bf16.mxu0 0
  %151 = vmatpush1.bf16.msra.mxu0 0
  %152 = vmatprep.subr.bf16.mxu0 0
  %153 = vmatpush1.bf16.msra.mxu0 0
  %154 = vmatprep.subr.bf16.mxu0 0
  %155 = vmatpush1.bf16.msra.mxu0 0
  %156 = vmatprep.subr.bf16.mxu0 0
  %157 = vmatpush1.bf16.msra.mxu0 0
  %158 = vmatprep.subr.bf16.mxu0 0
  %159 = vmatpush1.bf16.msra.mxu0 0
  %160 = vmatprep.subr.bf16.mxu0 0
  %161 = vmatpush1.bf16.msra.mxu0 0
  %162 = vmatprep.subr.bf16.mxu0 0
  %163 = vmatpush1.bf16.msra.mxu0 0
  %164 = vmatprep.subr.bf16.mxu0 0
  %165 = vmatpush1.bf16.msra.mxu0 0
  %166 = vmatprep.subr.bf16.mxu0 0
  %167 = vmatpush1.bf16.msra.mxu0 0
  %168 = vmatprep.subr.bf16.mxu0 0
  %169 = vmatpush1.bf16.msra.mxu0 0
  %170 = vmatprep.subr.bf16.mxu0 0
  %171 = vmatpush1.bf16.msra.mxu0 0
  %172 = vmatprep.mubr.bf16.mxu0 0
  %173 = vmatmul.mubr.bf16.gmra.mrb[0].mxu0 %v81
  %v174 = vpop.f32.mrb[0].mxu0
  %v175 = vadd.f32 0.0, %v174
  %v176 = vpop.f32.mrb[0].mxu0
  %v177 = vpop.f32.mrb[0].mxu0
  %v178 = vadd.f32 0.0, %v177
  %v179 = vpop.f32.mrb[0].mxu0
  %180 = vdwg.mxu0
  %v181 = vmul.f32 %v118, 0.5
  %v182 = vmul.f32 %v121, 0.5
  %v183 = vmul.f32 %v118, 0.044715
  %v184 = vmul.f32 %v121, 0.044715
  %v185 = vmul.f32 %v183, %v118
  %v186 = vmul.f32 %v184, %v121
  %v187 = vmul.f32 %v185, %v118
  %v188 = vmul.f32 %v186, %v121
  %v189 = vadd.f32 %v118, %v187
  %v190 = vadd.f32 %v121, %v188
  %v191 = vmul.f32 %v189, 0.7978846
  %v192 = vmul.f32 %v190, 0.7978846
  %v193 = vtanh.pop %v191
  %v194 = vtanh.pop %v192
  %v195 = vadd.f32 %v193, 1.0
  %v196 = vadd.f32 %v194, 1.0
  %v197 = vmul.f32 %v181, %v195
  %v198 = vmul.f32 %v182, %v196
  %v199 = vld [vmem:[#allocation3] sm:$0xff]
  %v200 = vld [vmem:[#allocation3 + $0x8] sm:$0xff]
  %v201 = vmul.f32 %v197, %v175
  %v202 = vmul.f32 %v198, %v178
  %v203 = vpack.c.bf16 %v202, %v201
  %v204 = vld [vmem:[%s4] sm:$0xf]
  %v205 = vld [vmem:[%s4 + $0x4] sm:$0xf]
  %v206 = vld [vmem:[%s4 + $0x8] sm:$0xf]
  %v207 = vld [vmem:[%s4 + $0xc] sm:$0xf]
  %v208 = vld [vmem:[%s4 + $0x10] sm:$0xf]
  %v209 = vld [vmem:[%s4 + $0x14] sm:$0xf]
  %v210 = vld [vmem:[%s4 + $0x18] sm:$0xf]
  %v211 = vld [vmem:[%s4 + $0x1c] sm:$0xf]
  %v212 = vld [vmem:[%s4 + $0x20] sm:$0xf]
  %v213 = vld [vmem:[%s4 + $0x24] sm:$0xf]
  %v214 = vld [vmem:[%s4 + $0x28] sm:$0xf]
  %v215 = vld [vmem:[%s4 + $0x2c] sm:$0xf]
  %v216 = vld [vmem:[%s4 + $0x30] sm:$0xf]
  %v217 = vld [vmem:[%s4 + $0x34] sm:$0xf]
  %v218 = vld [vmem:[%s4 + $0x38] sm:$0xf]
  %v219 = vld [vmem:[%s4 + $0x3c] sm:$0xf]
  %v236 = vunpack.c.l.b16 %v204
  %v237 = vunpack.c.l.b16 %v205
  %v238 = vunpack.c.l.b16 %v206
  %v239 = vunpack.c.l.b16 %v207
  %v240 = vunpack.c.l.b16 %v208
  %v241 = vunpack.c.l.b16 %v209
  %v242 = vunpack.c.l.b16 %v210
  %v243 = vunpack.c.l.b16 %v211
  %v244 = vunpack.c.l.b16 %v212
  %v245 = vunpack.c.l.b16 %v213
  %v246 = vunpack.c.l.b16 %v214
  %v247 = vunpack.c.l.b16 %v215
  %v248 = vunpack.c.l.b16 %v216
  %v249 = vunpack.c.l.b16 %v217
  %v250 = vunpack.c.l.b16 %v218
  %v251 = vunpack.c.l.b16 %v219
  %v252 = vpack.c.b16 %v237, %v236
  %v253 = vpack.c.b16 %v239, %v238
  %v254 = vpack.c.b16 %v241, %v240
  %v255 = vpack.c.b16 %v243, %v242
  %v256 = vpack.c.b16 %v245, %v244
  %v257 = vpack.c.b16 %v247, %v246
  %v258 = vpack.c.b16 %v249, %v248
  %v259 = vpack.c.b16 %v251, %v250
  %268 = vmatprep.subr.bf16.mxu0 0
  %269 = vmatpush1.bf16.msra.mxu0 %v252
  %270 = vmatprep.subr.bf16.mxu0 0
  %271 = vmatpush1.bf16.msra.mxu0 %v253
  %272 = vmatprep.subr.bf16.mxu0 0
  %273 = vmatpush1.bf16.msra.mxu0 %v254
  %274 = vmatprep.subr.bf16.mxu0 0
  %275 = vmatpush1.bf16.msra.mxu0 %v255
  %276 = vmatprep.subr.bf16.mxu0 0
  %277 = vmatpush1.bf16.msra.mxu0 %v256
  %278 = vmatprep.subr.bf16.mxu0 0
  %279 = vmatpush1.bf16.msra.mxu0 %v257
  %280 = vmatprep.subr.bf16.mxu0 0
  %281 = vmatpush1.bf16.msra.mxu0 %v258
  %282 = vmatprep.subr.bf16.mxu0 0
  %283 = vmatpush1.bf16.msra.mxu0 %v259
  %284 = vmatprep.subr.bf16.mxu0 0
  %285 = vmatpush1.bf16.msra.mxu0 0
  %286 = vmatprep.subr.bf16.mxu0 0
  %287 = vmatpush1.bf16.msra.mxu0 0
  %288 = vmatprep.subr.bf16.mxu0 0
  %289 = vmatpush1.bf16.msra.mxu0 0
  %290 = vmatprep.subr.bf16.mxu0 0
  %291 = vmatpush1.bf16.msra.mxu0 0
  %292 = vmatprep.subr.bf16.mxu0 0
  %293 = vmatpush1.bf16.msra.mxu0 0
  %294 = vmatprep.subr.bf16.mxu0 0
  %295 = vmatpush1.bf16.msra.mxu0 0
  %296 = vmatprep.subr.bf16.mxu0 0
  %297 = vmatpush1.bf16.msra.mxu0 0
  %298 = vmatprep.subr.bf16.mxu0 0
  %299 = vmatpush1.bf16.msra.mxu0 0
  %300 = vmatprep.mubr.bf16.mxu0 0
  %301 = vmatmul.mubr.bf16.gmra.mrb[0].mxu0 %v203
  %v302 = vpop.f32.mrb[0].mxu0
  %v303 = vadd.f32 0.0, %v302
  %v304 = vpop.f32.mrb[0].mxu0
  %v305 = vpop.f32.mrb[0].mxu0
  %v306 = vadd.f32 0.0, %v305
  %v307 = vpop.f32.mrb[0].mxu0
  %308 = vdwg.mxu0
  %v309 = vadd.f32 %v199, %v303
  %v310 = vadd.f32 %v200, %v306
  %311 = vst.msk [vmem:[#allocation3] sm:$0xff] %vm79, %v309
  %312 = vst.msk [vmem:[#allocation3 + $0x8] sm:$0xff] %vm79, %v310
  // Predicated region
  $region30: #{forward.39} parent=0 // pred_check
    %p313 = pneg %p24
  $region31: #{forward.39} parent=0 // pred_check_branch
    %315 = sbr.rel (%p313) target = $region33
  $region32: #{forward.39} parent=0 // pred_region
    %v316 = vld [vmem:[%s0] sm:$0xff]
    %v317 = vld [vmem:[%s0 + $0x8] sm:$0xff]
    %v318 = vld [vmem:[#allocation3] sm:$0xff]
    %v319 = vld [vmem:[#allocation3 + $0x8] sm:$0xff]
    %v320 = vld [vmem:[%s5] sm:$0x1]
    %v321 = vmul.f32 %v318, %v318
    %v322 = vmul.f32 %v319, %v319
    %v323 = vsel %vm79, %v321, 0.0
    %324 = vadd.xlane.f32.xlu0 %v323
    %v325 = vpop.xlane.xlu0 %324
    %v326 = vsel %vm79, %v322, 0.0
    %327 = vadd.xlane.f32.xlu0 %v326
    %v328 = vpop.xlane.xlu0 %327
    %v329 = vrcp.pop 32.0
    %v330 = vmul.f32 %v325, %v329
    %v331 = vmul.f32 %v328, %v329
    %v332 = vadd.f32 %v330, 1e-06
    %v333 = vadd.f32 %v331, 1e-06
    %v334 = vrsqrt.pop %v332
    %v335 = vrsqrt.pop %v333
    %v336 = vmul.f32 %v318, %v334
    %v337 = vmul.f32 %v319, %v335
    %v338 = vadd.f32 %v320, 1.0
    %v340 = vlaneseq
    %v341 = vshrl.u32 %v340, 7
    %v342 = vsub.s32 0, %v341
    %v343 = vrot.slane %v338, %v342
    %v345 = vmul.f32 %v336, %v343
    %v346 = vmul.f32 %v337, %v343
    %v347 = vadd.f32 %v316, %v345
    %v348 = vadd.f32 %v317, %v346
    %349 = vst.msk [vmem:[%s6] sm:$0xff] %vm79, %v347
    %350 = vst.msk [vmem:[%s6 + $0x8] sm:$0xff] %vm79, %v348
  $region33: #{forward.39} parent=0 // pred_fallthru
    _
  // Predicated region
  $region34: #{forward.39} parent=0 // pred_check
    _
  $region35: #{forward.39} parent=0 // pred_check_branch
    %352 = sbr.rel (0) target = $region37
  $region36: #{forward.39} parent=0 // pred_region
    _
  $region37: #{forward.39} parent=0 // pred_fallthru
    _
  // Predicated region
  $region38: #{forward.39} parent=0 // pred_check
    _
  $region39: #{forward.39} parent=0 // pred_check_branch
    %354 = sbr.rel (0) target = $region41
  $region40: #{forward.39} parent=0 // pred_region
    _
  $region41: #{forward.39} parent=0 // pred_fallthru
    _

// kernel: forward.52
$region0: #{forward.52}
  #allocation0 [shape = 'u32[]', space=smem, size = 0x4, offset = 0x4, fixed_abs, tag = 'smem constant byte address 0x4 - core index']
  #allocation1 [shape = 'u32[144,128]{1,0:T(1,128)}', space=vmem, size = 0x12000, scoped, tag = 'internal scratch']
  #allocation2 [shape = 'f32[16,1]{1,0:T(8,128)}', space=vmem, size = 0x2000, scoped, tag = 'scratch operand']
  #allocation3 [shape = 'f32[16,1]{1,0:T(8,128)}', space=vmem, size = 0x2000, scoped, tag = 'scratch operand']
  %s0 = inlined_call_operand.vmem [shape: f32[16,32], index: 0, kind: input, shape index: {}]
  %s1 = inlined_call_operand.vmem [shape: bf16[32,64], index: 1, kind: input, shape index: {}]
  %s2 = inlined_call_operand.vmem [shape: f32[1,64], index: 2, kind: input, shape index: {}]
  %s3 = inlined_call_operand.vmem [shape: f32[16,64], index: 3, kind: output, shape index: {0}]
  %s4 = inlined_call_operand.vmem [shape: f32[16,1], index: 4, kind: output, shape index: {1}]
  %5 = xla_tuple %s3, %s4
  %s6 = sld [smem:[#allocation0]]
  $region38: #{forward.52} parent=0
    _
  %s8 = ssub.s32 1, %s6
  %s9 = scalar_select 0, %s8, %s6
  // Predicated region
  $region2: #{forward.52} parent=0 // pred_check
    _
  $region3: #{forward.52} parent=0 // pred_check_branch
    %11 = sbr.rel (0) target = $region5
  $region4: #{forward.52} parent=0 // pred_region
    _
  $region5: #{forward.52} parent=0 // pred_fallthru
    _
  // Predicated region
  $region6: #{forward.52} parent=0 // pred_check
    _
  $region7: #{forward.52} parent=0 // pred_check_branch
    %13 = sbr.rel (0) target = $region9
  $region8: #{forward.52} parent=0 // pred_region
    _
  $region9: #{forward.52} parent=0 // pred_fallthru
    _
  // Predicated region
  $region10: #{forward.52} parent=0 // pred_check
    _
  $region11: #{forward.52} parent=0 // pred_check_branch
    %15 = sbr.rel (0) target = $region13
  $region12: #{forward.52} parent=0 // pred_region
    _
  $region13: #{forward.52} parent=0 // pred_fallthru
    _
  %p17 = scmp.eq.s32.totalorder 0, 0
  // Predicated region
  $region14: #{forward.52} parent=0 // pred_check
    %p18 = pneg %p17
  $region15: #{forward.52} parent=0 // pred_check_branch
    %20 = sbr.rel (%p18) target = $region17
  $region16: #{forward.52} parent=0 // pred_region
    %vm21 = vcmask 7168
    %22 = vst.msk [vmem:[#allocation2] sm:$0xff] %vm21, -1e+30
    %23 = vst.msk [vmem:[#allocation2 + $0x8] sm:$0xff] %vm21, -1e+30
    %24 = vst.msk [vmem:[#allocation3] sm:$0xff] %vm21, 0.0
    %25 = vst.msk [vmem:[#allocation3 + $0x8] sm:$0xff] %vm21, 0.0
  $region17: #{forward.52} parent=0 // pred_fallthru
    _
  %v26 = vld [vmem:[%s0] sm:$0xff]
  %v27 = vld [vmem:[%s0 + $0x8] sm:$0xff]
  %v28 = vpack.c.bf16 %v27, %v26
  %v29 = vld [vmem:[%s1] sm:$0xf]
  %v30 = vld [vmem:[%s1 + $0x4] sm:$0xf]
  %v31 = vld [vmem:[%s1 + $0x8] sm:$0xf]
  %v32 = vld [vmem:[%s1 + $0xc] sm:$0xf]
  %v33 = vld [vmem:[%s2] sm:$0x1]
  %v35 = vlaneseq
  %v36 = vshrl.u32 %v35, 7
  %v37 = vsub.s32 0, %v36
  %v38 = vrot.slane %v33, %v37
  %v44 = vunpack.c.l.b16 %v29
  %v45 = vunpack.c.l.b16 %v30
  %v46 = vunpack.c.l.b16 %v31
  %v47 = vunpack.c.l.b16 %v32
  %v48 = vpack.c.b16 %v45, %v44
  %v49 = vpack.c.b16 %v47, %v46
  %vm52 = vcmask 261120
  %v54 = vsel %vm52, %v28, 0
  %56 = vmatprep.subr.bf16.mxu0 0
  %57 = vmatpush1.bf16.msra.mxu0 %v48
  %58 = vmatprep.subr.bf16.mxu0 0
  %59 = vmatpush1.bf16.msra.mxu0 %v49
  %60 = vmatprep.subr.bf16.mxu0 0
  %61 = vmatpush1.bf16.msra.mxu0 0
  %62 = vmatprep.subr.bf16.mxu0 0
  %63 = vmatpush1.bf16.msra.mxu0 0
  %64 = vmatprep.subr.bf16.mxu0 0
  %65 = vmatpush1.bf16.msra.mxu0 0
  %66 = vmatprep.subr.bf16.mxu0 0
  %67 = vmatpush1.bf16.msra.mxu0 0
  %68 = vmatprep.subr.bf16.mxu0 0
  %69 = vmatpush1.bf16.msra.mxu0 0
  %70 = vmatprep.subr.bf16.mxu0 0
  %71 = vmatpush1.bf16.msra.mxu0 0
  %72 = vmatprep.subr.bf16.mxu0 0
  %73 = vmatpush1.bf16.msra.mxu0 0
  %74 = vmatprep.subr.bf16.mxu0 0
  %75 = vmatpush1.bf16.msra.mxu0 0
  %76 = vmatprep.subr.bf16.mxu0 0
  %77 = vmatpush1.bf16.msra.mxu0 0
  %78 = vmatprep.subr.bf16.mxu0 0
  %79 = vmatpush1.bf16.msra.mxu0 0
  %80 = vmatprep.subr.bf16.mxu0 0
  %81 = vmatpush1.bf16.msra.mxu0 0
  %82 = vmatprep.subr.bf16.mxu0 0
  %83 = vmatpush1.bf16.msra.mxu0 0
  %84 = vmatprep.subr.bf16.mxu0 0
  %85 = vmatpush1.bf16.msra.mxu0 0
  %86 = vmatprep.subr.bf16.mxu0 0
  %87 = vmatpush1.bf16.msra.mxu0 0
  %88 = vmatprep.mubr.bf16.mxu0 0
  %89 = vmatmul.mubr.bf16.gmra.mrb[0].mxu0 %v54
  %v90 = vpop.f32.mrb[0].mxu0
  %v91 = vadd.f32 %v38, %v90
  %v92 = vpop.f32.mrb[0].mxu0
  %v93 = vpop.f32.mrb[0].mxu0
  %v94 = vadd.f32 %v38, %v93
  %v95 = vpop.f32.mrb[0].mxu0
  %96 = vdwg.mxu0
  %vm97 = vcmask 523264
  %98 = vst.msk [vmem:[%s3] sm:$0xff] %vm97, %v91
  %99 = vst.msk [vmem:[%s3 + $0x8] sm:$0xff] %vm97, %v94
  %v100 = vld [vmem:[#allocation2] sm:$0xff]
  %v101 = vld [vmem:[#allocation2 + $0x8] sm:$0xff]
  %v102 = vsel %vm97, %v91, -inf
  %103 = vmax.xlane.f32.xlu0 %v102
  %v104 = vpop.xlane.xlu0 %103
  %v105 = vsel %vm97, %v94, -inf
  %106 = vmax.xlane.f32.xlu0 %v105
  %v107 = vpop.xlane.xlu0 %106
  %v108 = vmax.f32 %v100, %v104
  %v109 = vmax.f32 %v101, %v107
  %v110 = vld [vmem:[#allocation3] sm:$0xff]
  %v111 = vld [vmem:[#allocation3 + $0x8] sm:$0xff]
  %v112 = vsub.f32 %v100, %v108
  %v113 = vsub.f32 %v101, %v109
  %v114 = vmul.f32 %v112, 1.442695
  %v115 = vpow.pop %v114
  %v116 = vmul.f32 %v113, 1.442695
  %v117 = vpow.pop %v116
  %v118 = vmul.f32 %v110, %v115
  %v119 = vmul.f32 %v111, %v117
  %121 = vset.pattern.permute.xlu0 0
  %122 = vperm.xlu0 %121, %v108
  %v123 = vpop.permute.xlu0 %122
  %126 = vset.pattern.permute.xlu0 0
  %127 = vperm.xlu0 %126, %v109
  %v128 = vpop.permute.xlu0 %127
  %v130 = vsub.f32 %v91, %v123
  %v131 = vsub.f32 %v94, %v128
  %v132 = vmul.f32 %v130, 1.442695
  %v133 = vpow.pop %v132
  %v134 = vmul.f32 %v131, 1.442695
  %v135 = vpow.pop %v134
  %v136 = vsel %vm97, %v133, 0.0
  %137 = vadd.xlane.f32.xlu0 %v136
  %v138 = vpop.xlane.xlu0 %137
  %v139 = vsel %vm97, %v135, 0.0
  %140 = vadd.xlane.f32.xlu0 %v139
  %v141 = vpop.xlane.xlu0 %140
  %v142 = vadd.f32 %v118, %v138
  %v143 = vadd.f32 %v119, %v141
  %vm144 = vcmask 7168
  %145 = vst.msk [vmem:[#allocation3] sm:$0xff] %vm144, %v142
  %146 = vst.msk [vmem:[#allocation3 + $0x8] sm:$0xff] %vm144, %v143
  %147 = vst.msk [vmem:[#allocation2] sm:$0xff] %vm144, %v108
  %148 = vst.msk [vmem:[#allocation2 + $0x8] sm:$0xff] %vm144, %v109
  // Predicated region
  $region18: #{forward.52} parent=0 // pred_check
    %p149 = pneg %p17
  $region19: #{forward.52} parent=0 // pred_check_branch
    %151 = sbr.rel (%p149) target = $region21
  $region20: #{forward.52} parent=0 // pred_region
    %v152 = vld [vmem:[#allocation2] sm:$0xff]
    %v153 = vld [vmem:[#allocation2 + $0x8] sm:$0xff]
    %v154 = vld [vmem:[#allocation3] sm:$0xff]
    %v155 = vld [vmem:[#allocation3 + $0x8] sm:$0xff]
    %v156 = vlog2.pop %v154
    %v157 = vmul.f32 %v156, 0.6931472
    %v158 = vlog2.pop %v155
    %v159 = vmul.f32 %v158, 0.6931472
    %v160 = vadd.f32 %v152, %v157
    %v161 = vadd.f32 %v153, %v159
    %162 = vst.msk [vmem:[%s4] sm:$0xff] %vm144, %v160
    %163 = vst.msk [vmem:[%s4 + $0x8] sm:$0xff] %vm144, %v161
  $region21: #{forward.52} parent=0 // pred_fallthru
    _
  // Predicated region
  $region22: #{forward.52} parent=0 // pred_check
    _
  $region23: #{forward.52} parent=0 // pred_check_branch
    %165 = sbr.rel (0) target = $region25
  $region24: #{forward.52} parent=0 // pred_region
    _
  $region25: #{forward.52} parent=0 // pred_fallthru
    _
  // Predicated region
  $region26: #{forward.52} parent=0 // pred_check
    _
  $region27: #{forward.52} parent=0 // pred_check_branch
    %167 = sbr.rel (0) target = $region29
  $region28: #{forward.52} parent=0 // pred_region
    _
  $region29: #{forward.52} parent=0 // pred_fallthru
    _
  // Predicated region
  $region30: #{forward.52} parent=0 // pred_check
    _
  $region31: #{forward.52} parent=0 // pred_check_branch
    %169 = sbr.rel (0) target = $region33
  $region32: #{forward.52} parent=0 // pred_region
    _
  $region33: #{forward.52} parent=0 // pred_fallthru
    _
  // Predicated region
  $region34: #{forward.52} parent=0 // pred_check
    _
  $region35: #{forward.52} parent=0 // pred_check_branch
    %171 = sbr.rel (0) target = $region37
  $region36: #{forward.52} parent=0 // pred_region
    _
  $region37: #{forward.52} parent=0 // pred_fallthru
    _

// kernel: forward.53
$region0: #{forward.53}
  #allocation0 [shape = 'u32[]', space=smem, size = 0x4, offset = 0x4, fixed_abs, tag = 'smem constant byte address 0x4 - core index']
  #allocation1 [shape = 'u32[144,128]{1,0:T(1,128)}', space=vmem, size = 0x12000, scoped, tag = 'internal scratch']
  %s0 = inlined_call_operand.vmem [shape: f32[16,64], index: 0, kind: input, shape index: {}, may-alias: {0,2}]
  %s1 = inlined_call_operand.vmem [shape: f32[16,1], index: 1, kind: input, shape index: {}]
  %s2 = inlined_call_operand.vmem [shape: f32[16,64], index: 2, kind: output, shape index: {}, may-alias: {0,2}]
  %s3 = sld [smem:[#allocation0]]
  $region18: #{forward.53} parent=0
    _
  %s5 = ssub.s32 1, %s3
  %s6 = scalar_select 0, %s5, %s3
  // Predicated region
  $region2: #{forward.53} parent=0 // pred_check
    _
  $region3: #{forward.53} parent=0 // pred_check_branch
    %8 = sbr.rel (0) target = $region5
  $region4: #{forward.53} parent=0 // pred_region
    _
  $region5: #{forward.53} parent=0 // pred_fallthru
    _
  // Predicated region
  $region6: #{forward.53} parent=0 // pred_check
    _
  $region7: #{forward.53} parent=0 // pred_check_branch
    %10 = sbr.rel (0) target = $region9
  $region8: #{forward.53} parent=0 // pred_region
    _
  $region9: #{forward.53} parent=0 // pred_fallthru
    _
  %v11 = vld [vmem:[%s0] sm:$0xff]
  %v12 = vld [vmem:[%s0 + $0x8] sm:$0xff]
  %v13 = vld [vmem:[%s1] sm:$0xff]
  %v14 = vld [vmem:[%s1 + $0x8] sm:$0xff]
  %16 = vset.pattern.permute.xlu0 0
  %17 = vperm.xlu0 %16, %v13
  %v18 = vpop.permute.xlu0 %17
  %21 = vset.pattern.permute.xlu0 0
  %22 = vperm.xlu0 %21, %v14
  %v23 = vpop.permute.xlu0 %22
  %v25 = vsub.f32 %v11, %v18
  %v26 = vsub.f32 %v12, %v23
  %vm27 = vcmask 523264
  %28 = vst.msk [vmem:[%s2] sm:$0xff] %vm27, %v25
  %29 = vst.msk [vmem:[%s2 + $0x8] sm:$0xff] %vm27, %v26
  // Predicated region
  $region10: #{forward.53} parent=0 // pred_check
    _
  $region11: #{forward.53} parent=0 // pred_check_branch
    %31 = sbr.rel (0) target = $region13
  $region12: #{forward.53} parent=0 // pred_region
    _
  $region13: #{forward.53} parent=0 // pred_fallthru
    _
  // Predicated region
  $region14: #{forward.53} parent=0 // pred_check
    _
  $region15: #{forward.53} parent=0 // pred_check_branch
    %33 = sbr.rel (0) target = $region17
  $region16: #{forward.53} parent=0 // pred_region
    _
  $region17: #{forward.53} parent=0 // pred_fallthru
    _

</llo_original>
